<compile_context>
chip_gen: v6e
topology: v6e:2x2x1
jax: 0.10.0
libtpu: 0.0.40
codegen_flags: <defaults>
</compile_context>

<pallas_src>
import functools
import math

import jax
import jax.numpy as jnp
import numpy as np
from jax.experimental import pallas as pl
from jax.experimental.pallas import tpu as pltpu

# ----------------------------------------------------------------------------
# Small synthetic configuration (consistent with PaliGemmaConfig structure).
# ----------------------------------------------------------------------------
VISION = dict(
    hidden_size=32,
    intermediate_size=64,
    num_hidden_layers=2,
    num_attention_heads=4,
    num_channels=3,
    image_size=16,
    patch_size=8,
    layer_norm_eps=1e-6,
)
TEXT = dict(
    vocab_size=64,
    hidden_size=32,
    intermediate_size=64,
    num_hidden_layers=2,
    num_attention_heads=4,
    num_key_value_heads=2,
    head_dim=16,
    rms_norm_eps=1e-6,
    rope_theta=10000.0,
)
PROJECTION_DIM = TEXT["hidden_size"]          # projector output == text hidden size
IMAGE_TOKEN_INDEX = 63
PAD_TOKEN_ID = -1                             # config.pad_token_id is None -> -1
NUM_IMAGE_TOKENS = (VISION["image_size"] // VISION["patch_size"]) ** 2  # = 4

# ----------------------------------------------------------------------------
# Tiling helpers
# ----------------------------------------------------------------------------
# Preferred tiles (all multiples of 8 and 128).  At prefill sizes these keep the
# per-step working set well under v7x's 48 MiB scoped VMEM while re-streaming the
# big MLP / lm_head weights at most ceil(M/512) times; on v6e/v5e the larger
# vmem_limit below lets the pipeline run deeper.
_TM = 512     # token-row tile
_TN = 512     # output-column tile (vocab / head columns)
_TK = 512     # contraction tile for generic matmul
_TI = 1024    # MLP intermediate tile
_TQ = 256     # flash-attention query tile
_TKV = 256    # flash-attention KV tile


def _vmem_limit_bytes():
    """Raise the scoped VMEM limit where there is headroom (v5e/v6e), stay safe on v7x."""
    try:
        cap = int(getattr(pltpu.get_tpu_info(), "vmem_capacity_bytes"))
        return max(32 << 20, min(cap - (16 << 20), 96 << 20))
    except Exception:
        return 32 << 20


_VMEM_LIMIT = _vmem_limit_bytes()


def _cp(*sem):
    return pltpu.CompilerParams(dimension_semantics=sem,
                                vmem_limit_bytes=_VMEM_LIMIT)


def _ceil_to(x, m):
    return -(-x // m) * m


def _plan(dim, pref):
    """(padded_dim, tile).  If the dim fits in one preferred tile, use the full dim
    (block == full array dim -> no padding, no (8,128) issue).  Otherwise use the
    preferred tile (a multiple of 8 and 128) and pad up to a multiple of it."""
    if dim <= pref:
        return dim, dim
    return _ceil_to(dim, pref), pref


def _bf16(x):
    return x if x.dtype == jnp.bfloat16 else x.astype(jnp.bfloat16)


def _gelu_tanh(x):
    # gelu(approximate='tanh')
    return 0.5 * x * (1.0 + jnp.tanh(0.7978845608028654 * (x + 0.044715 * x * x * x)))


# ----------------------------------------------------------------------------
# Tiled matmul kernel (bf16 operands, f32 VMEM accumulator, optional fused bias
# and residual add in the epilogue).
# ----------------------------------------------------------------------------
def _mm_kernel(*refs, has_bias, has_res):
    a_ref, w_ref = refs[0], refs[1]
    i = 2
    bias_ref = res_ref = None
    if has_bias:
        bias_ref = refs[i]; i += 1
    if has_res:
        res_ref = refs[i]; i += 1
    o_ref, acc_ref = refs[i], refs[i + 1]

    @pl.when(pl.program_id(2) == 0)
    def _():
        acc_ref[...] = jnp.zeros_like(acc_ref)

    acc_ref[...] += jnp.dot(a_ref[...], w_ref[...],
                            preferred_element_type=jnp.float32)

    @pl.when(pl.program_id(2) == pl.num_programs(2) - 1)
    def _():
        out = acc_ref[...]
        if has_bias:
            out = out + bias_ref[...].astype(jnp.float32)
        if has_res:
            out = out + res_ref[...].astype(jnp.float32)
        o_ref[...] = out.astype(o_ref.dtype)


def pl_matmul(x, w, b=None, residual=None, out_dtype=jnp.bfloat16):
    """x:[...,K] @ w:[K,N] (+ bias, + residual) with an (M,N,K)-tiled MXU kernel."""
    orig = x.shape
    K, N = w.shape
    M = int(np.prod(orig[:-1]))
    a = _bf16(x).reshape(M, K)
    wb = _bf16(w)

    Mp, tm = _plan(M, _TM)
    Np, tn = _plan(N, _TN)
    Kp, tk = _plan(K, _TK)
    if Mp != M or Kp != K:
        a = jnp.pad(a, ((0, Mp - M), (0, Kp - K)))
    if Kp != K or Np != N:
        wb = jnp.pad(wb, ((0, Kp - K), (0, Np - N)))

    in_specs = [pl.BlockSpec((tm, tk), lambda m, n, k: (m, k)),
                pl.BlockSpec((tk, tn), lambda m, n, k: (k, n))]
    args = [a, wb]
    if b is not None:
        bb = b.astype(jnp.float32).reshape(1, N)
        if Np != N:
            bb = jnp.pad(bb, ((0, 0), (0, Np - N)))
        in_specs.append(pl.BlockSpec((1, tn), lambda m, n, k: (0, n)))
        args.append(bb)
    if residual is not None:
        r = residual.reshape(M, N)
        if Mp != M or Np != N:
            r = jnp.pad(r, ((0, Mp - M), (0, Np - N)))
        in_specs.append(pl.BlockSpec((tm, tn), lambda m, n, k: (m, n)))
        args.append(r)

    out = pl.pallas_call(
        functools.partial(_mm_kernel, has_bias=b is not None,
                          has_res=residual is not None),
        out_shape=jax.ShapeDtypeStruct((Mp, Np), out_dtype),
        grid=(Mp // tm, Np // tn, Kp // tk),
        in_specs=in_specs,
        out_specs=pl.BlockSpec((tm, tn), lambda m, n, k: (m, n)),
        scratch_shapes=[pltpu.VMEM((tm, tn), jnp.float32)],
        compiler_params=_cp("parallel", "parallel", "arbitrary"),
    )(*args)
    if Mp != M or Np != N:
        out = out[:M, :N]
    return out.reshape(*orig[:-1], N)


# ----------------------------------------------------------------------------
# Fused norm + matmul kernels.  The normalized activations are computed ONCE per
# m-tile into a VMEM bf16 scratch (pl.when n==0) and reused across every output
# column tile, so the lm_head / QKV inner loop is a pure MXU weight stream.
# The n axis must therefore be "arbitrary" (sequential); the m axis stays
# "parallel" for megacore sharding at prefill M.
# ----------------------------------------------------------------------------
def _rms_mm_kernel(x_ref, nw_ref, w_ref, o_ref, xn_sc, *, eps):
    @pl.when(pl.program_id(1) == 0)
    def _():
        x = x_ref[...].astype(jnp.float32)
        var = jnp.mean(x * x, axis=-1, keepdims=True)
        xn_sc[...] = (x * jax.lax.rsqrt(var + eps)
                      * (1.0 + nw_ref[...].astype(jnp.float32))).astype(jnp.bfloat16)

    o_ref[...] = jnp.dot(xn_sc[...], w_ref[...],
                         preferred_element_type=jnp.float32).astype(o_ref.dtype)


def _ln_mm_kernel(x_ref, nw_ref, nb_ref, w_ref, b_ref, o_ref, xn_sc, *, eps):
    @pl.when(pl.program_id(1) == 0)
    def _():
        x = x_ref[...].astype(jnp.float32)
        mu = jnp.mean(x, axis=-1, keepdims=True)
        var = jnp.mean((x - mu) ** 2, axis=-1, keepdims=True)
        xn_sc[...] = ((x - mu) * jax.lax.rsqrt(var + eps) * nw_ref[...]
                      + nb_ref[...]).astype(jnp.bfloat16)

    o_ref[...] = (jnp.dot(xn_sc[...], w_ref[...], preferred_element_type=jnp.float32)
                  + b_ref[...].astype(jnp.float32)).astype(o_ref.dtype)


def _norm_matmul(kernel, norm_args, x, w, b, eps, out_dtype):
    orig = x.shape
    D = orig[-1]
    N = w.shape[1]
    M = int(np.prod(orig[:-1]))
    a = x.reshape(M, D)
    wb = _bf16(w)

    Mp, tm = _plan(M, _TM)
    Np, tn = _plan(N, _TN)
    if Mp != M:
        a = jnp.pad(a, ((0, Mp - M), (0, 0)))
    if Np != N:
        wb = jnp.pad(wb, ((0, 0), (0, Np - N)))

    in_specs = [pl.BlockSpec((tm, D), lambda m, n: (m, 0))]
    args = [a]
    for na in norm_args:
        in_specs.append(pl.BlockSpec((1, D), lambda m, n: (0, 0)))
        args.append(na.astype(jnp.float32).reshape(1, D))
    in_specs.append(pl.BlockSpec((D, tn), lambda m, n: (0, n)))
    args.append(wb)
    if b is not None:
        bb = b.astype(jnp.float32).reshape(1, N)
        if Np != N:
            bb = jnp.pad(bb, ((0, 0), (0, Np - N)))
        in_specs.append(pl.BlockSpec((1, tn), lambda m, n: (0, n)))
        args.append(bb)

    out = pl.pallas_call(
        functools.partial(kernel, eps=eps),
        out_shape=jax.ShapeDtypeStruct((Mp, Np), out_dtype),
        grid=(Mp // tm, Np // tn),
        in_specs=in_specs,
        out_specs=pl.BlockSpec((tm, tn), lambda m, n: (m, n)),
        scratch_shapes=[pltpu.VMEM((tm, D), jnp.bfloat16)],
        compiler_params=_cp("parallel", "arbitrary"),
    )(*args)
    if Mp != M or Np != N:
        out = out[:M, :N]
    return out.reshape(*orig[:-1], N)


def pl_rms_matmul(x, norm_w, w, eps, out_dtype=jnp.bfloat16):
    """Fused GemmaRMSNorm(x) @ w (bias-free)."""
    return _norm_matmul(_rms_mm_kernel, (norm_w,), x, w, None, eps, out_dtype)


def pl_ln_matmul(x, norm_w, norm_b, w, b, eps, out_dtype=jnp.bfloat16):
    """Fused LayerNorm(x) @ w + b."""
    return _norm_matmul(_ln_mm_kernel, (norm_w, norm_b), x, w, b, eps, out_dtype)


# ----------------------------------------------------------------------------
# Fused MLP kernels: norm prologue + up/gate + activation + down projection
# accumulated over intermediate (I) tiles, with the residual add fused into the
# finalize (the x block *is* the residual, already resident).
# ----------------------------------------------------------------------------
def _gemma_mlp_kernel(x_ref, nw_ref, wg_ref, wu_ref, wd_ref, o_ref,
                      xn_sc, acc_sc, *, eps):
    i = pl.program_id(1)

    @pl.when(i == 0)
    def _():
        x = x_ref[...].astype(jnp.float32)
        var = jnp.mean(x * x, axis=-1, keepdims=True)
        xn_sc[...] = (x * jax.lax.rsqrt(var + eps)
                      * (1.0 + nw_ref[...].astype(jnp.float32))).astype(jnp.bfloat16)
        acc_sc[...] = jnp.zeros_like(acc_sc)

    xn = xn_sc[...]
    g = jnp.dot(xn, wg_ref[...], preferred_element_type=jnp.float32)
    u = jnp.dot(xn, wu_ref[...], preferred_element_type=jnp.float32)
    h = (_gelu_tanh(g) * u).astype(jnp.bfloat16)
    acc_sc[...] += jnp.dot(h, wd_ref[...], preferred_element_type=jnp.float32)

    @pl.when(i == pl.num_programs(1) - 1)
    def _():
        # fused residual: MLP(RMSNorm(x)) + x
        o_ref[...] = (acc_sc[...] + x_ref[...].astype(jnp.float32)).astype(o_ref.dtype)


def pl_gemma_mlp(x, norm_w, wg, wu, wd, eps):
    orig = x.shape
    D = orig[-1]
    I = wg.shape[1]
    M = int(np.prod(orig[:-1]))
    a = _bf16(x).reshape(M, D)

    Mp, tm = _plan(M, _TM)
    Ip, ti = _plan(I, _TI)
    if Mp != M:
        a = jnp.pad(a, ((0, Mp - M), (0, 0)))
    wg_, wu_, wd_ = _bf16(wg), _bf16(wu), _bf16(wd)
    if Ip != I:
        wg_ = jnp.pad(wg_, ((0, 0), (0, Ip - I)))
        wu_ = jnp.pad(wu_, ((0, 0), (0, Ip - I)))
        wd_ = jnp.pad(wd_, ((0, Ip - I), (0, 0)))

    out = pl.pallas_call(
        functools.partial(_gemma_mlp_kernel, eps=eps),
        out_shape=jax.ShapeDtypeStruct((Mp, D), jnp.bfloat16),
        grid=(Mp // tm, Ip // ti),
        in_specs=[pl.BlockSpec((tm, D), lambda m, i: (m, 0)),
                  pl.BlockSpec((1, D), lambda m, i: (0, 0)),
                  pl.BlockSpec((D, ti), lambda m, i: (0, i)),
                  pl.BlockSpec((D, ti), lambda m, i: (0, i)),
                  pl.BlockSpec((ti, D), lambda m, i: (i, 0))],
        out_specs=pl.BlockSpec((tm, D), lambda m, i: (m, 0)),
        scratch_shapes=[pltpu.VMEM((tm, D), jnp.bfloat16),
                        pltpu.VMEM((tm, D), jnp.float32)],
        compiler_params=_cp("parallel", "arbitrary"),
    )(a, norm_w.astype(jnp.float32).reshape(1, D), wg_, wu_, wd_)
    if Mp != M:
        out = out[:M]
    return out.reshape(*orig[:-1], D)


def _vision_mlp_kernel(x_ref, nw_ref, nb_ref, w1_ref, b1_ref, w2_ref, b2_ref,
                       o_ref, xn_sc, acc_sc, *, eps):
    i = pl.program_id(1)

    @pl.when(i == 0)
    def _():
        x = x_ref[...].astype(jnp.float32)
        mu = jnp.mean(x, axis=-1, keepdims=True)
        var = jnp.mean((x - mu) ** 2, axis=-1, keepdims=True)
        xn_sc[...] = ((x - mu) * jax.lax.rsqrt(var + eps) * nw_ref[...]
                      + nb_ref[...]).astype(jnp.bfloat16)
        acc_sc[...] = jnp.zeros_like(acc_sc)

    h = (jnp.dot(xn_sc[...], w1_ref[...], preferred_element_type=jnp.float32)
         + b1_ref[...].astype(jnp.float32))
    h = _gelu_tanh(h).astype(jnp.bfloat16)
    acc_sc[...] += jnp.dot(h, w2_ref[...], preferred_element_type=jnp.float32)

    @pl.when(i == pl.num_programs(1) - 1)
    def _():
        # fused residual: MLP(LN(x)) + fc2 bias + x
        o_ref[...] = (acc_sc[...] + b2_ref[...].astype(jnp.float32)
                      + x_ref[...].astype(jnp.float32)).astype(o_ref.dtype)


def pl_vision_mlp(x, norm_w, norm_b, w1, b1, w2, b2, eps):
    orig = x.shape
    D = orig[-1]
    I = w1.shape[1]
    M = int(np.prod(orig[:-1]))
    a = _bf16(x).reshape(M, D)

    Mp, tm = _plan(M, _TM)
    Ip, ti = _plan(I, _TI)
    if Mp != M:
        a = jnp.pad(a, ((0, Mp - M), (0, 0)))
    w1_, w2_ = _bf16(w1), _bf16(w2)
    b1_ = b1.astype(jnp.float32).reshape(1, I)
    if Ip != I:
        w1_ = jnp.pad(w1_, ((0, 0), (0, Ip - I)))
        b1_ = jnp.pad(b1_, ((0, 0), (0, Ip - I)))
        w2_ = jnp.pad(w2_, ((0, Ip - I), (0, 0)))

    out = pl.pallas_call(
        functools.partial(_vision_mlp_kernel, eps=eps),
        out_shape=jax.ShapeDtypeStruct((Mp, D), jnp.bfloat16),
        grid=(Mp // tm, Ip // ti),
        in_specs=[pl.BlockSpec((tm, D), lambda m, i: (m, 0)),
                  pl.BlockSpec((1, D), lambda m, i: (0, 0)),
                  pl.BlockSpec((1, D), lambda m, i: (0, 0)),
                  pl.BlockSpec((D, ti), lambda m, i: (0, i)),
                  pl.BlockSpec((1, ti), lambda m, i: (0, i)),
                  pl.BlockSpec((ti, D), lambda m, i: (i, 0)),
                  pl.BlockSpec((1, D), lambda m, i: (0, 0))],
        out_specs=pl.BlockSpec((tm, D), lambda m, i: (m, 0)),
        scratch_shapes=[pltpu.VMEM((tm, D), jnp.bfloat16),
                        pltpu.VMEM((tm, D), jnp.float32)],
        compiler_params=_cp("parallel", "arbitrary"),
    )(a, norm_w.astype(jnp.float32).reshape(1, D),
      norm_b.astype(jnp.float32).reshape(1, D), w1_, b1_, w2_,
      b2.astype(jnp.float32).reshape(1, D))
    if Mp != M:
        out = out[:M]
    return out.reshape(*orig[:-1], D)


# ----------------------------------------------------------------------------
# Flash-style attention: online softmax over KV tiles, one GQA group per grid
# point, query-tiled (tq<=256) so VMEM / vreg pressure is bounded and the query
# axis can be split across TensorCores.  Softmax scale is folded into Q once in
# the wrapper; padded KV columns (if any) are masked with a static flag.
# ----------------------------------------------------------------------------
def _flash_attn_kernel(q_ref, k_ref, v_ref, o_ref, m_sc, l_sc, acc_sc,
                       *, mask_kv, t_valid):
    t = pl.program_id(3)
    n_rep, tq, Dh = q_ref.shape
    G = n_rep * tq

    @pl.when(t == 0)
    def _():
        m_sc[...] = jnp.full(m_sc.shape, -1e30, dtype=jnp.float32)
        l_sc[...] = jnp.zeros_like(l_sc)
        acc_sc[...] = jnp.zeros_like(acc_sc)

    q = q_ref[...].reshape(G, Dh)                 # all heads of the KV group stacked
    s = jax.lax.dot_general(q, k_ref[...], (((1,), (1,)), ((), ())),
                            preferred_element_type=jnp.float32)     # (G, tkv)
    if mask_kv:
        tkv = k_ref.shape[0]
        col = jax.lax.broadcasted_iota(jnp.int32, (G, tkv), 1) + t * tkv
        s = jnp.where(col < t_valid, s, -1e30)

    m_prev = m_sc[...]
    m_new = jnp.maximum(m_prev, jnp.max(s, axis=-1, keepdims=True))
    alpha = jnp.exp(m_prev - m_new)
    p = jnp.exp(s - m_new)
    l_sc[...] = alpha * l_sc[...] + jnp.sum(p, axis=-1, keepdims=True)
    acc_sc[...] = alpha * acc_sc[...] + jnp.dot(p.astype(jnp.bfloat16), v_ref[...],
                                                preferred_element_type=jnp.float32)
    m_sc[...] = m_new

    @pl.when(t == pl.num_programs(3) - 1)
    def _():
        out = acc_sc[...] * pl.reciprocal(l_sc[...], approx=True)
        o_ref[...] = out.reshape(n_rep, tq, Dh).astype(o_ref.dtype)


def pl_flash_attention(q, k, v, scale):
    """q:[B,Hq,S,Dh]  k,v:[B,Hkv,T,Dh] -> [B,Hq,S,Dh] (bf16).  Full (non-causal)
    attention (SigLIP + PaliGemma prefill): no mask tensor is materialized."""
    B, Hq, S, Dh = q.shape
    Hkv, T = k.shape[1], k.shape[2]
    n_rep = Hq // Hkv

    q = (q * scale).astype(jnp.bfloat16)          # scale folded into Q once
    k = _bf16(k)
    v = _bf16(v)

    Sp, tq = _plan(S, _TQ)
    Tp, tkv = _plan(T, _TKV)
    if Sp != S:
        q = jnp.pad(q, ((0, 0), (0, 0), (0, Sp - S), (0, 0)))
    mask_kv = Tp != T
    if mask_kv:
        k = jnp.pad(k, ((0, 0), (0, 0), (0, Tp - T), (0, 0)))
        v = jnp.pad(v, ((0, 0), (0, 0), (0, Tp - T), (0, 0)))
    G = n_rep * tq

    out = pl.pallas_call(
        functools.partial(_flash_attn_kernel, mask_kv=mask_kv, t_valid=T),
        out_shape=jax.ShapeDtypeStruct((B, Hq, Sp, Dh), jnp.bfloat16),
        grid=(B, Hkv, Sp // tq, Tp // tkv),
        in_specs=[
            # one GQA group of query heads x one query tile stays resident over KV
            pl.BlockSpec((pl.Squeezed(), n_rep, tq, Dh),
                         lambda b, h, qi, ti: (b, h, qi, 0)),
            # each KV tile is fetched once per (group, query tile)
            pl.BlockSpec((pl.Squeezed(), pl.Squeezed(), tkv, Dh),
                         lambda b, h, qi, ti: (b, h, ti, 0)),
            pl.BlockSpec((pl.Squeezed(), pl.Squeezed(), tkv, Dh),
                         lambda b, h, qi, ti: (b, h, ti, 0)),
        ],
        out_specs=pl.BlockSpec((pl.Squeezed(), n_rep, tq, Dh),
                               lambda b, h, qi, ti: (b, h, qi, 0)),
        scratch_shapes=[pltpu.VMEM((G, 1), jnp.float32),
                        pltpu.VMEM((G, 1), jnp.float32),
                        pltpu.VMEM((G, Dh), jnp.float32)],
        compiler_params=_cp("parallel", "parallel", "parallel", "arbitrary"),
    )(q, k, v)
    if Sp != S:
        out = out[:, :, :S]
    return out


# ----------------------------------------------------------------------------
# Model glue (plain JAX around the kernels)
# ----------------------------------------------------------------------------
def rotate_half(x):
    d = x.shape[-1]
    return jnp.concatenate([-x[..., d // 2:], x[..., :d // 2]], axis=-1)


def apply_rotatory_pos_emb(q, k, cos, sin):
    cos = cos[:, None]  # unsqueeze_dim=1
    sin = sin[:, None]
    return q * cos + rotate_half(q) * sin, k * cos + rotate_half(k) * sin


def rope_cos_sin(position_ids, head_dim, theta):
    inv_freq = 1.0 / (theta ** (jnp.arange(0, head_dim, 2, dtype=jnp.float32) / head_dim))
    freqs = position_ids.astype(jnp.float32)[..., None] * inv_freq[None, None, :]
    emb = jnp.concatenate([freqs, freqs], axis=-1)          # [B, S, Dh]
    return jnp.cos(emb), jnp.sin(emb)


def siglip_layer(lp, h):
    B, S, Dv = h.shape
    H = VISION["num_attention_heads"]
    Dh = Dv // H
    eps = VISION["layer_norm_eps"]
    # fused LayerNorm + concatenated QKV projection (bf16 activations)
    qkv = pl_ln_matmul(h, lp["ln1_w"], lp["ln1_b"], lp["qkv_w"], lp["qkv_b"], eps)
    q, k, v = jnp.split(qkv, 3, axis=-1)

    def heads(t):
        return t.reshape(B, S, H, Dh).transpose(0, 2, 1, 3)

    o = pl_flash_attention(heads(q), heads(k), heads(v), scale=Dh ** -0.5)
    o = o.transpose(0, 2, 1, 3).reshape(B, S, Dv)
    # o_proj with residual add fused into the epilogue
    h = pl_matmul(o, lp["o_w"], lp["o_b"], residual=h)
    # LN + fc1 + gelu + fc2 + residual, all in one kernel
    h = pl_vision_mlp(h, lp["ln2_w"], lp["ln2_b"],
                      lp["fc1_w"], lp["fc1_b"], lp["fc2_w"], lp["fc2_b"], eps)
    return h


def siglip_vision_forward(vp, pixel_values):
    # pixel_values NCHW [B, C, H, W] (PyTorch convention)
    p = VISION["patch_size"]
    B, C, H, W = pixel_values.shape
    # non-overlapping patch extraction == Conv2d(kernel=stride=patch) as a matmul
    x = pixel_values.reshape(B, C, H // p, p, W // p, p)
    x = x.transpose(0, 2, 4, 1, 3, 5).reshape(B, (H // p) * (W // p), C * p * p)
    h = pl_matmul(x, vp["patch_w"], vp["patch_b"], out_dtype=jnp.float32)
    h = (h + vp["pos_emb"][None]).astype(jnp.bfloat16)      # learned position embedding
    for lp in vp["layers"]:
        h = siglip_layer(lp, h)
    return h                                                # post-LN fused with projector


def gemma_layer(lp, h, cos, sin):
    B, S, D = h.shape
    Hq = TEXT["num_attention_heads"]
    Hkv = TEXT["num_key_value_heads"]
    Dh = TEXT["head_dim"]
    eps = TEXT["rms_norm_eps"]
    # fused input RMSNorm + concatenated (bias-free) QKV projection
    qkv = pl_rms_matmul(h, lp["in_norm"], lp["qkv_w"], eps)
    q = qkv[..., : Hq * Dh].reshape(B, S, Hq, Dh).transpose(0, 2, 1, 3)
    k = qkv[..., Hq * Dh: (Hq + Hkv) * Dh].reshape(B, S, Hkv, Dh).transpose(0, 2, 1, 3)
    v = qkv[..., (Hq + Hkv) * Dh:].reshape(B, S, Hkv, Dh).transpose(0, 2, 1, 3)
    # RoPE in glue (bf16 -> f32 -> bf16 at the attention wrapper's scale/cast)
    q, k = apply_rotatory_pos_emb(q, k, cos, sin)
    o = pl_flash_attention(q, k, v, scale=1.0 / math.sqrt(Dh))   # GQA inside the kernel
    o = o.transpose(0, 2, 1, 3).reshape(B, S, Hq * Dh)
    h = pl_matmul(o, lp["o_w"], residual=h)                      # o_proj + residual fused
    h = pl_gemma_mlp(h, lp["post_norm"], lp["gate_w"], lp["up_w"], lp["down_w"], eps)
    return h


def gemma_forward(tp, inputs_embeds, position_ids):
    D = TEXT["hidden_size"]
    h = (inputs_embeds * jnp.float32(D ** 0.5)).astype(jnp.bfloat16)
    cos, sin = rope_cos_sin(position_ids, TEXT["head_dim"], TEXT["rope_theta"])
    for lp in tp["layers"]:
        h = gemma_layer(lp, h, cos, sin)
    # fused final RMSNorm + lm_head, vocab-tiled with the normed x cached per m-tile
    logits = pl_rms_matmul(h, tp["final_norm"], tp["lm_head_w"], TEXT["rms_norm_eps"],
                           out_dtype=jnp.float32)
    return logits


def merge_input_ids_with_image_features(image_features, input_embeds, input_ids):
    scaled = image_features / jnp.float32(TEXT["hidden_size"] ** 0.5)
    text_mask = (input_ids != IMAGE_TOKEN_INDEX) & (input_ids != PAD_TOKEN_ID)
    image_mask = input_ids == IMAGE_TOKEN_INDEX
    pad_mask = input_ids == PAD_TOKEN_ID
    # masked_scatter equivalent: k-th image token in a row takes k-th image feature
    idx = jnp.clip(jnp.cumsum(image_mask.astype(jnp.int32), axis=1) - 1, 0,
                   scaled.shape[1] - 1)
    gathered = jnp.take_along_axis(scaled, idx[..., None], axis=1)
    final = jnp.where(text_mask[..., None], input_embeds, 0.0)
    final = jnp.where(image_mask[..., None], gathered, final)
    final = jnp.where(pad_mask[..., None], jnp.zeros_like(final), final)
    return final


def paligemma_forward(params, input_ids, pixel_values, attention_mask):
    # assert torch.all(attention_mask == 1) -- caller guarantees no padding (prefill)
    input_embeds = jnp.take(params["text"]["embed"], input_ids, axis=0)
    vis_h = siglip_vision_forward(params["vision"], pixel_values.astype(jnp.float32))
    # fused vision post-LayerNorm + multi-modal projector linear
    image_feats = pl_ln_matmul(vis_h, params["vision"]["post_ln_w"],
                               params["vision"]["post_ln_b"],
                               params["proj_w"], params["proj_b"],
                               VISION["layer_norm_eps"], out_dtype=jnp.float32)
    embeds = merge_input_ids_with_image_features(image_feats, input_embeds, input_ids)
    position_ids = jnp.where(attention_mask == 0, 1,
                             jnp.cumsum(attention_mask, axis=-1))
    # Prefill path: PaliGemma's additive mask is identically zero, so no mask tensor
    # is built or passed to the attention kernel.
    logits = gemma_forward(params["text"], embeds, position_ids)
    return {"logits": logits}


# ----------------------------------------------------------------------------
# Deterministic parameter initialization (synthetic, shapes from __init__).
# Matmul weights are stored pre-cast to bf16 (MXU-native) once at init so the
# forward pass never re-casts or re-pads them; norms/biases/embeddings stay f32.
# QKV weights stored pre-concatenated (parameter-layout choice, same math).
# ----------------------------------------------------------------------------
def init_params(key):
    keys = iter(jax.random.split(key, 256))

    def nrm(shape, scale=0.02, dtype=jnp.bfloat16):
        return (scale * jax.random.normal(next(keys), shape, dtype=jnp.float32)).astype(dtype)

    Dv, Iv = VISION["hidden_size"], VISION["intermediate_size"]
    C, p = VISION["num_channels"], VISION["patch_size"]
    Np = NUM_IMAGE_TOKENS
    vision = dict(
        patch_w=nrm((C * p * p, Dv)), patch_b=jnp.zeros((Dv,), jnp.float32),
        pos_emb=nrm((Np, Dv), dtype=jnp.float32),
        post_ln_w=jnp.ones((Dv,), jnp.float32), post_ln_b=jnp.zeros((Dv,), jnp.float32),
        layers=[dict(
            ln1_w=jnp.ones((Dv,), jnp.float32), ln1_b=jnp.zeros((Dv,), jnp.float32),
            qkv_w=nrm((Dv, 3 * Dv)), qkv_b=jnp.zeros((3 * Dv,), jnp.float32),
            o_w=nrm((Dv, Dv)), o_b=jnp.zeros((Dv,), jnp.float32),
            ln2_w=jnp.ones((Dv,), jnp.float32), ln2_b=jnp.zeros((Dv,), jnp.float32),
            fc1_w=nrm((Dv, Iv)), fc1_b=jnp.zeros((Iv,), jnp.float32),
            fc2_w=nrm((Iv, Dv)), fc2_b=jnp.zeros((Dv,), jnp.float32),
        ) for _ in range(VISION["num_hidden_layers"])],
    )

    D, I = TEXT["hidden_size"], TEXT["intermediate_size"]
    Hq, Hkv, Dh = TEXT["num_attention_heads"], TEXT["num_key_value_heads"], TEXT["head_dim"]
    V = TEXT["vocab_size"]
    text = dict(
        embed=nrm((V, D), dtype=jnp.float32),
        final_norm=jnp.zeros((D,), jnp.float32),    # GemmaRMSNorm weight init = zeros
        lm_head_w=nrm((D, V)),
        layers=[dict(
            in_norm=jnp.zeros((D,), jnp.float32),
            post_norm=jnp.zeros((D,), jnp.float32),
            qkv_w=nrm((D, (Hq + 2 * Hkv) * Dh)),    # fused [q | k | v] projection
            o_w=nrm((Hq * Dh, D)),
            gate_w=nrm((D, I)), up_w=nrm((D, I)), down_w=nrm((I, D)),
        ) for _ in range(TEXT["num_hidden_layers"])],
    )

    return dict(
        vision=vision,
        text=text,
        proj_w=nrm((Dv, PROJECTION_DIM)),
        proj_b=jnp.zeros((PROJECTION_DIM,), jnp.float32),
    )


# ----------------------------------------------------------------------------
# Main
# ----------------------------------------------------------------------------
if __name__ == "__main__":
    key = jax.random.PRNGKey(0)
    k_param, k_pix, k_txt = jax.random.split(key, 3)

    params = init_params(k_param)

    B = 2
    S = NUM_IMAGE_TOKENS + 4                       # 4 image tokens + 4 text tokens = 8
    pixel_values = jax.random.normal(
        k_pix, (B, VISION["num_channels"], VISION["image_size"], VISION["image_size"]),
        dtype=jnp.float32)                         # NCHW
    text_tokens = jax.random.randint(k_txt, (B, 4), 0, IMAGE_TOKEN_INDEX, dtype=jnp.int32)
    image_tokens = jnp.full((B, NUM_IMAGE_TOKENS), IMAGE_TOKEN_INDEX, dtype=jnp.int32)
    input_ids = jnp.concatenate([image_tokens, text_tokens], axis=1)   # [B, S]
    attention_mask = jnp.ones((B, S), dtype=jnp.int32)

    fwd = jax.jit(paligemma_forward)
    out = fwd(params, input_ids, pixel_values, attention_mask)
    logits = jax.block_until_ready(out["logits"])

    assert logits.shape == (B, S, TEXT["vocab_size"])
    assert logits.dtype == jnp.float32
    assert bool(jnp.all(jnp.isfinite(logits)))
    print("KERNEL_OK")
</pallas_src>

<mosaic_0001>
module attributes {stable_mosaic.version = 11 : i64} {
  func.func @_mm_kernel(%arg0: i32, %arg1: i32, %arg2: i32, %arg3: memref<8x192xbf16, #tpu.memory_space<vmem>>, %arg4: memref<192x32xbf16, #tpu.memory_space<vmem>>, %arg5: memref<1x32xf32, #tpu.memory_space<vmem>>, %arg6: memref<8x32xf32, #tpu.memory_space<vmem>>, %arg7: memref<8x32xf32, #tpu.memory_space<vmem>>) attributes {dimension_semantics = [#tpu.dimension_semantics<parallel>, #tpu.dimension_semantics<parallel>, #tpu.dimension_semantics<arbitrary>], iteration_bounds = array<i64: 1, 1, 1>, scalar_prefetch = 0 : i64, scratch_operands = 1 : i64, tpu.core_type = #tpu.core_type<tc>, window_params = [{transform_indices = @transform_0, window_bounds = array<i64: 8, 192>}, {transform_indices = @transform_1, window_bounds = array<i64: 192, 32>}, {transform_indices = @transform_2, window_bounds = array<i64: 1, 32>}, {transform_indices = @transform_3, window_bounds = array<i64: 8, 32>}]} {
    %c0_i32 = arith.constant 0 : i32
    %0 = arith.cmpi eq, %arg2, %c0_i32 : i32
    %1 = arith.extui %0 : i1 to i32
    %c0_i32_0 = arith.constant 0 : i32
    %2 = arith.cmpi ne, %1, %c0_i32_0 : i32
    scf.if %2 {
      %cst_10 = arith.constant 0.000000e+00 : f32
      %12 = vector.broadcast %cst_10 : f32 to vector<8x32xf32>
      %c0_11 = arith.constant 0 : index
      %c0_12 = arith.constant 0 : index
      %13 = vector.load %arg7[%c0_11, %c0_12] : memref<8x32xf32, #tpu.memory_space<vmem>>, vector<8x32xf32>
      tpu.vector_store %arg7[%c0_11, %c0_12], %12 {strides = array<i32>} : memref<8x32xf32, #tpu.memory_space<vmem>>, vector<8x32xf32>,
    } else {
    }
    %c0 = arith.constant 0 : index
    %c0_1 = arith.constant 0 : index
    %3 = vector.load %arg7[%c0, %c0_1] : memref<8x32xf32, #tpu.memory_space<vmem>>, vector<8x32xf32>
    %c0_2 = arith.constant 0 : index
    %c0_3 = arith.constant 0 : index
    %4 = vector.load %arg3[%c0_2, %c0_3] : memref<8x192xbf16, #tpu.memory_space<vmem>>, vector<8x192xbf16>
    %c0_4 = arith.constant 0 : index
    %c0_5 = arith.constant 0 : index
    %5 = vector.load %arg4[%c0_4, %c0_5] : memref<192x32xbf16, #tpu.memory_space<vmem>>, vector<192x32xbf16>
    %cst = arith.constant dense<0.000000e+00> : vector<8x32xf32>
    %6 = tpu.matmul %4, %5, %cst {dimension_numbers = #tpu.dot_dimension_numbers<[1], [0], [0], [1], [0, 0, 1, 1], [], []>} : vector<8x192xbf16>, vector<192x32xbf16>, vector<8x32xf32> -> vector<8x32xf32>
    %7 = arith.addf %3, %6 : vector<8x32xf32>
    %c0_6 = arith.constant 0 : index
    %c0_7 = arith.constant 0 : index
    %8 = vector.load %arg7[%c0_6, %c0_7] : memref<8x32xf32, #tpu.memory_space<vmem>>, vector<8x32xf32>
    tpu.vector_store %arg7[%c0_6, %c0_7], %7 {strides = array<i32>} : memref<8x32xf32, #tpu.memory_space<vmem>>, vector<8x32xf32>,
    %c0_i32_8 = arith.constant 0 : i32
    %9 = arith.cmpi eq, %arg2, %c0_i32_8 : i32
    %10 = arith.extui %9 : i1 to i32
    %c0_i32_9 = arith.constant 0 : i32
    %11 = arith.cmpi ne, %10, %c0_i32_9 : i32
    scf.if %11 {
      %c0_10 = arith.constant 0 : index
      %c0_11 = arith.constant 0 : index
      %12 = vector.load %arg7[%c0_10, %c0_11] : memref<8x32xf32, #tpu.memory_space<vmem>>, vector<8x32xf32>
      %c0_12 = arith.constant 0 : index
      %c0_13 = arith.constant 0 : index
      %13 = vector.load %arg5[%c0_12, %c0_13] : memref<1x32xf32, #tpu.memory_space<vmem>>, vector<1x32xf32>
      %14 = vector.broadcast %13 : vector<1x32xf32> to vector<8x32xf32>
      %15 = arith.addf %12, %14 : vector<8x32xf32>
      %c0_14 = arith.constant 0 : index
      %c0_15 = arith.constant 0 : index
      %16 = vector.load %arg6[%c0_14, %c0_15] : memref<8x32xf32, #tpu.memory_space<vmem>>, vector<8x32xf32>
      tpu.vector_store %arg6[%c0_14, %c0_15], %15 {strides = array<i32>} : memref<8x32xf32, #tpu.memory_space<vmem>>, vector<8x32xf32>,
    } else {
    }
    return
  }
  func.func @transform_0(%arg0: i32, %arg1: i32, %arg2: i32) -> (i32, i32) {
    %c0_i32 = arith.constant 0 : i32
    return %arg0, %arg2 : i32, i32
  }
  func.func @transform_1(%arg0: i32, %arg1: i32, %arg2: i32) -> (i32, i32) {
    %c0_i32 = arith.constant 0 : i32
    return %arg2, %arg1 : i32, i32
  }
  func.func @transform_2(%arg0: i32, %arg1: i32, %arg2: i32) -> (i32, i32) {
    %c0_i32 = arith.constant 0 : i32
    %c0_i32_0 = arith.constant 0 : i32
    return %c0_i32, %arg1 : i32, i32
  }
  func.func @transform_3(%arg0: i32, %arg1: i32, %arg2: i32) -> (i32, i32) {
    %c0_i32 = arith.constant 0 : i32
    return %arg0, %arg1 : i32, i32
  }
}

module attributes {stable_mosaic.version = 11 : i64} {
  func.func @_ln_mm_kernel(%arg0: i32, %arg1: i32, %arg2: memref<8x32xbf16, #tpu.memory_space<vmem>>, %arg3: memref<1x32xf32, #tpu.memory_space<vmem>>, %arg4: memref<1x32xf32, #tpu.memory_space<vmem>>, %arg5: memref<32x96xbf16, #tpu.memory_space<vmem>>, %arg6: memref<1x96xf32, #tpu.memory_space<vmem>>, %arg7: memref<8x96xbf16, #tpu.memory_space<vmem>>, %arg8: memref<8x32xbf16, #tpu.memory_space<vmem>>) attributes {dimension_semantics = [#tpu.dimension_semantics<parallel>, #tpu.dimension_semantics<arbitrary>], iteration_bounds = array<i64: 1, 1>, scalar_prefetch = 0 : i64, scratch_operands = 1 : i64, tpu.core_type = #tpu.core_type<tc>, window_params = [{transform_indices = @transform_0, window_bounds = array<i64: 8, 32>}, {pipeline_mode = #tpu.pipeline_mode<synchronous>, transform_indices = @transform_1, window_bounds = array<i64: 1, 32>}, {pipeline_mode = #tpu.pipeline_mode<synchronous>, transform_indices = @transform_2, window_bounds = array<i64: 1, 32>}, {transform_indices = @transform_3, window_bounds = array<i64: 32, 96>}, {transform_indices = @transform_4, window_bounds = array<i64: 1, 96>}, {transform_indices = @transform_5, window_bounds = array<i64: 8, 96>}]} {
    %c0_i32 = arith.constant 0 : i32
    %0 = arith.cmpi eq, %arg1, %c0_i32 : i32
    %1 = arith.extui %0 : i1 to i32
    %c0_i32_0 = arith.constant 0 : i32
    %2 = arith.cmpi ne, %1, %c0_i32_0 : i32
    scf.if %2 {
      %c0_8 = arith.constant 0 : index
      %c0_9 = arith.constant 0 : index
      %11 = vector.load %arg2[%c0_8, %c0_9] : memref<8x32xbf16, #tpu.memory_space<vmem>>, vector<8x32xbf16>
      %12 = arith.extf %11 : vector<8x32xbf16> to vector<8x32xf32>
      %cst_10 = arith.constant dense<0.000000e+00> : vector<8xf32>
      %13 = vector.multi_reduction <add>, %12, %cst_10 [1] : vector<8x32xf32> to vector<8xf32>
      %14 = vector.shape_cast %13 : vector<8xf32> to vector<8x1xf32>
      %cst_11 = arith.constant 3.200000e+01 : f32
      %15 = vector.broadcast %cst_11 : f32 to vector<8x1xf32>
      %16 = arith.divf %14, %15 : vector<8x1xf32>
      %17 = vector.broadcast %16 : vector<8x1xf32> to vector<8x32xf32>
      %18 = arith.subf %12, %17 : vector<8x32xf32>
      %19 = arith.mulf %18, %18 : vector<8x32xf32>
      %cst_12 = arith.constant dense<0.000000e+00> : vector<8xf32>
      %20 = vector.multi_reduction <add>, %19, %cst_12 [1] : vector<8x32xf32> to vector<8xf32>
      %21 = vector.shape_cast %20 : vector<8xf32> to vector<8x1xf32>
      %cst_13 = arith.constant 3.200000e+01 : f32
      %22 = vector.broadcast %cst_13 : f32 to vector<8x1xf32>
      %23 = arith.divf %21, %22 : vector<8x1xf32>
      %24 = vector.broadcast %16 : vector<8x1xf32> to vector<8x32xf32>
      %25 = arith.subf %12, %24 : vector<8x32xf32>
      %cst_14 = arith.constant 9.99999997E-7 : f32
      %26 = vector.broadcast %cst_14 : f32 to vector<8x1xf32>
      %27 = arith.addf %23, %26 : vector<8x1xf32>
      %28 = math.rsqrt %27 : vector<8x1xf32>
      %29 = vector.broadcast %28 : vector<8x1xf32> to vector<8x32xf32>
      %30 = arith.mulf %25, %29 : vector<8x32xf32>
      %c0_15 = arith.constant 0 : index
      %c0_16 = arith.constant 0 : index
      %31 = vector.load %arg3[%c0_15, %c0_16] : memref<1x32xf32, #tpu.memory_space<vmem>>, vector<1x32xf32>
      %32 = vector.broadcast %31 : vector<1x32xf32> to vector<8x32xf32>
      %33 = arith.mulf %30, %32 : vector<8x32xf32>
      %c0_17 = arith.constant 0 : index
      %c0_18 = arith.constant 0 : index
      %34 = vector.load %arg4[%c0_17, %c0_18] : memref<1x32xf32, #tpu.memory_space<vmem>>, vector<1x32xf32>
      %35 = vector.broadcast %34 : vector<1x32xf32> to vector<8x32xf32>
      %36 = arith.addf %33, %35 : vector<8x32xf32>
      %37 = arith.truncf %36 : vector<8x32xf32> to vector<8x32xbf16>
      %c0_19 = arith.constant 0 : index
      %c0_20 = arith.constant 0 : index
      %38 = vector.load %arg8[%c0_19, %c0_20] : memref<8x32xbf16, #tpu.memory_space<vmem>>, vector<8x32xbf16>
      tpu.vector_store %arg8[%c0_19, %c0_20], %37 {strides = array<i32>} : memref<8x32xbf16, #tpu.memory_space<vmem>>, vector<8x32xbf16>,
    } else {
    }
    %c0 = arith.constant 0 : index
    %c0_1 = arith.constant 0 : index
    %3 = vector.load %arg8[%c0, %c0_1] : memref<8x32xbf16, #tpu.memory_space<vmem>>, vector<8x32xbf16>
    %c0_2 = arith.constant 0 : index
    %c0_3 = arith.constant 0 : index
    %4 = vector.load %arg5[%c0_2, %c0_3] : memref<32x96xbf16, #tpu.memory_space<vmem>>, vector<32x96xbf16>
    %cst = arith.constant dense<0.000000e+00> : vector<8x96xf32>
    %5 = tpu.matmul %3, %4, %cst {dimension_numbers = #tpu.dot_dimension_numbers<[1], [0], [0], [1], [0, 0, 1, 1], [], []>} : vector<8x32xbf16>, vector<32x96xbf16>, vector<8x96xf32> -> vector<8x96xf32>
    %c0_4 = arith.constant 0 : index
    %c0_5 = arith.constant 0 : index
    %6 = vector.load %arg6[%c0_4, %c0_5] : memref<1x96xf32, #tpu.memory_space<vmem>>, vector<1x96xf32>
    %7 = vector.broadcast %6 : vector<1x96xf32> to vector<8x96xf32>
    %8 = arith.addf %5, %7 : vector<8x96xf32>
    %9 = arith.truncf %8 : vector<8x96xf32> to vector<8x96xbf16>
    %c0_6 = arith.constant 0 : index
    %c0_7 = arith.constant 0 : index
    %10 = vector.load %arg7[%c0_6, %c0_7] : memref<8x96xbf16, #tpu.memory_space<vmem>>, vector<8x96xbf16>
    tpu.vector_store %arg7[%c0_6, %c0_7], %9 {strides = array<i32>} : memref<8x96xbf16, #tpu.memory_space<vmem>>, vector<8x96xbf16>,
    return
  }
  func.func @transform_0(%arg0: i32, %arg1: i32) -> (i32, i32) {
    %c0_i32 = arith.constant 0 : i32
    %c0_i32_0 = arith.constant 0 : i32
    return %arg0, %c0_i32 : i32, i32
  }
  func.func @transform_1(%arg0: i32, %arg1: i32) -> (i32, i32) {
    %c0_i32 = arith.constant 0 : i32
    %c0_i32_0 = arith.constant 0 : i32
    %c0_i32_1 = arith.constant 0 : i32
    return %c0_i32, %c0_i32_0 : i32, i32
  }
  func.func @transform_2(%arg0: i32, %arg1: i32) -> (i32, i32) {
    %c0_i32 = arith.constant 0 : i32
    %c0_i32_0 = arith.constant 0 : i32
    %c0_i32_1 = arith.constant 0 : i32
    return %c0_i32, %c0_i32_0 : i32, i32
  }
  func.func @transform_3(%arg0: i32, %arg1: i32) -> (i32, i32) {
    %c0_i32 = arith.constant 0 : i32
    %c0_i32_0 = arith.constant 0 : i32
    return %c0_i32, %arg1 : i32, i32
  }
  func.func @transform_4(%arg0: i32, %arg1: i32) -> (i32, i32) {
    %c0_i32 = arith.constant 0 : i32
    %c0_i32_0 = arith.constant 0 : i32
    return %c0_i32, %arg1 : i32, i32
  }
  func.func @transform_5(%arg0: i32, %arg1: i32) -> (i32, i32) {
    %c0_i32 = arith.constant 0 : i32
    return %arg0, %arg1 : i32, i32
  }
}

module attributes {stable_mosaic.version = 11 : i64} {
  func.func @_flash_attn_kernel(%arg0: i32, %arg1: i32, %arg2: i32, %arg3: i32, %arg4: memref<1x1x4x8xbf16, #tpu.memory_space<vmem>>, %arg5: memref<1x1x4x8xbf16, #tpu.memory_space<vmem>>, %arg6: memref<1x1x4x8xbf16, #tpu.memory_space<vmem>>, %arg7: memref<1x1x4x8xbf16, #tpu.memory_space<vmem>>, %arg8: memref<4x1xf32, #tpu.memory_space<vmem>>, %arg9: memref<4x1xf32, #tpu.memory_space<vmem>>, %arg10: memref<4x8xf32, #tpu.memory_space<vmem>>) attributes {dimension_semantics = [#tpu.dimension_semantics<parallel>, #tpu.dimension_semantics<parallel>, #tpu.dimension_semantics<parallel>, #tpu.dimension_semantics<arbitrary>], iteration_bounds = array<i64: 2, 4, 1, 1>, scalar_prefetch = 0 : i64, scratch_operands = 3 : i64, tpu.core_type = #tpu.core_type<tc>, window_params = [{transform_indices = @transform_0, window_bounds = array<i64: 1, 1, 4, 8>}, {transform_indices = @transform_1, window_bounds = array<i64: 1, 1, 4, 8>}, {transform_indices = @transform_2, window_bounds = array<i64: 1, 1, 4, 8>}, {transform_indices = @transform_3, window_bounds = array<i64: 1, 1, 4, 8>}]} {
    %c0_i32 = arith.constant 0 : i32
    %0 = arith.cmpi eq, %arg3, %c0_i32 : i32
    %1 = arith.extui %0 : i1 to i32
    %c0_i32_0 = arith.constant 0 : i32
    %2 = arith.cmpi ne, %1, %c0_i32_0 : i32
    scf.if %2 {
      %cst_29 = arith.constant -1.000000e+30 : f32
      %37 = vector.broadcast %cst_29 : f32 to vector<4x1xf32>
      %c0_30 = arith.constant 0 : index
      %c0_31 = arith.constant 0 : index
      %38 = vector.load %arg8[%c0_30, %c0_31] : memref<4x1xf32, #tpu.memory_space<vmem>>, vector<4x1xf32>
      tpu.vector_store %arg8[%c0_30, %c0_31], %37 {strides = array<i32>} : memref<4x1xf32, #tpu.memory_space<vmem>>, vector<4x1xf32>,
      %cst_32 = arith.constant 0.000000e+00 : f32
      %39 = vector.broadcast %cst_32 : f32 to vector<4x1xf32>
      %c0_33 = arith.constant 0 : index
      %c0_34 = arith.constant 0 : index
      %40 = vector.load %arg9[%c0_33, %c0_34] : memref<4x1xf32, #tpu.memory_space<vmem>>, vector<4x1xf32>
      tpu.vector_store %arg9[%c0_33, %c0_34], %39 {strides = array<i32>} : memref<4x1xf32, #tpu.memory_space<vmem>>, vector<4x1xf32>,
      %cst_35 = arith.constant 0.000000e+00 : f32
      %41 = vector.broadcast %cst_35 : f32 to vector<4x8xf32>
      %c0_36 = arith.constant 0 : index
      %c0_37 = arith.constant 0 : index
      %42 = vector.load %arg10[%c0_36, %c0_37] : memref<4x8xf32, #tpu.memory_space<vmem>>, vector<4x8xf32>
      tpu.vector_store %arg10[%c0_36, %c0_37], %41 {strides = array<i32>} : memref<4x8xf32, #tpu.memory_space<vmem>>, vector<4x8xf32>,
    } else {
    }
    %c0 = arith.constant 0 : index
    %c0_1 = arith.constant 0 : index
    %c0_2 = arith.constant 0 : index
    %c0_3 = arith.constant 0 : index
    %3 = vector.load %arg4[%c0, %c0_1, %c0_2, %c0_3] : memref<1x1x4x8xbf16, #tpu.memory_space<vmem>>, vector<1x1x4x8xbf16>
    %4 = vector.shape_cast %3 : vector<1x1x4x8xbf16> to vector<1x4x8xbf16>
    %5 = vector.shape_cast %4 : vector<1x4x8xbf16> to vector<4x8xbf16>
    %c0_4 = arith.constant 0 : index
    %c0_5 = arith.constant 0 : index
    %c0_6 = arith.constant 0 : index
    %c0_7 = arith.constant 0 : index
    %6 = vector.load %arg5[%c0_4, %c0_5, %c0_6, %c0_7] : memref<1x1x4x8xbf16, #tpu.memory_space<vmem>>, vector<1x1x4x8xbf16>
    %7 = vector.shape_cast %6 : vector<1x1x4x8xbf16> to vector<4x8xbf16>
    %cst = arith.constant dense<0.000000e+00> : vector<4x4xf32>
    %8 = tpu.matmul %5, %7, %cst {dimension_numbers = #tpu.dot_dimension_numbers<[1], [1], [0], [0], [0, 0, 1, 0], [], []>} : vector<4x8xbf16>, vector<4x8xbf16>, vector<4x4xf32> -> vector<4x4xf32>
    %c0_8 = arith.constant 0 : index
    %c0_9 = arith.constant 0 : index
    %9 = vector.load %arg8[%c0_8, %c0_9] : memref<4x1xf32, #tpu.memory_space<vmem>>, vector<4x1xf32>
    %cst_10 = arith.constant dense<0xFF800000> : vector<4xf32>
    %10 = vector.multi_reduction <maximumf>, %8, %cst_10 [1] : vector<4x4xf32> to vector<4xf32>
    %11 = vector.shape_cast %10 : vector<4xf32> to vector<4x1xf32>
    %12 = arith.maximumf %9, %11 : vector<4x1xf32>
    %13 = arith.subf %9, %12 : vector<4x1xf32>
    %14 = math.exp %13 : vector<4x1xf32>
    %15 = vector.broadcast %12 : vector<4x1xf32> to vector<4x4xf32>
    %16 = arith.subf %8, %15 : vector<4x4xf32>
    %17 = math.exp %16 : vector<4x4xf32>
    %c0_11 = arith.constant 0 : index
    %c0_12 = arith.constant 0 : index
    %18 = vector.load %arg9[%c0_11, %c0_12] : memref<4x1xf32, #tpu.memory_space<vmem>>, vector<4x1xf32>
    %19 = arith.mulf %14, %18 : vector<4x1xf32>
    %cst_13 = arith.constant dense<0.000000e+00> : vector<4xf32>
    %20 = vector.multi_reduction <add>, %17, %cst_13 [1] : vector<4x4xf32> to vector<4xf32>
    %21 = vector.shape_cast %20 : vector<4xf32> to vector<4x1xf32>
    %22 = arith.addf %19, %21 : vector<4x1xf32>
    %c0_14 = arith.constant 0 : index
    %c0_15 = arith.constant 0 : index
    %23 = vector.load %arg9[%c0_14, %c0_15] : memref<4x1xf32, #tpu.memory_space<vmem>>, vector<4x1xf32>
    tpu.vector_store %arg9[%c0_14, %c0_15], %22 {strides = array<i32>} : memref<4x1xf32, #tpu.memory_space<vmem>>, vector<4x1xf32>,
    %c0_16 = arith.constant 0 : index
    %c0_17 = arith.constant 0 : index
    %24 = vector.load %arg10[%c0_16, %c0_17] : memref<4x8xf32, #tpu.memory_space<vmem>>, vector<4x8xf32>
    %25 = vector.broadcast %14 : vector<4x1xf32> to vector<4x8xf32>
    %26 = arith.mulf %25, %24 : vector<4x8xf32>
    %27 = arith.truncf %17 : vector<4x4xf32> to vector<4x4xbf16>
    %c0_18 = arith.constant 0 : index
    %c0_19 = arith.constant 0 : index
    %c0_20 = arith.constant 0 : index
    %c0_21 = arith.constant 0 : index
    %28 = vector.load %arg6[%c0_18, %c0_19, %c0_20, %c0_21] : memref<1x1x4x8xbf16, #tpu.memory_space<vmem>>, vector<1x1x4x8xbf16>
    %29 = vector.shape_cast %28 : vector<1x1x4x8xbf16> to vector<4x8xbf16>
    %cst_22 = arith.constant dense<0.000000e+00> : vector<4x8xf32>
    %30 = tpu.matmul %27, %29, %cst_22 {dimension_numbers = #tpu.dot_dimension_numbers<[1], [0], [0], [1], [0, 0, 1, 1], [], []>} : vector<4x4xbf16>, vector<4x8xbf16>, vector<4x8xf32> -> vector<4x8xf32>
    %31 = arith.addf %26, %30 : vector<4x8xf32>
    %c0_23 = arith.constant 0 : index
    %c0_24 = arith.constant 0 : index
    %32 = vector.load %arg10[%c0_23, %c0_24] : memref<4x8xf32, #tpu.memory_space<vmem>>, vector<4x8xf32>
    tpu.vector_store %arg10[%c0_23, %c0_24], %31 {strides = array<i32>} : memref<4x8xf32, #tpu.memory_space<vmem>>, vector<4x8xf32>,
    %c0_25 = arith.constant 0 : index
    %c0_26 = arith.constant 0 : index
    %33 = vector.load %arg8[%c0_25, %c0_26] : memref<4x1xf32, #tpu.memory_space<vmem>>, vector<4x1xf32>
    tpu.vector_store %arg8[%c0_25, %c0_26], %12 {strides = array<i32>} : memref<4x1xf32, #tpu.memory_space<vmem>>, vector<4x1xf32>,
    %c0_i32_27 = arith.constant 0 : i32
    %34 = arith.cmpi eq, %arg3, %c0_i32_27 : i32
    %35 = arith.extui %34 : i1 to i32
    %c0_i32_28 = arith.constant 0 : i32
    %36 = arith.cmpi ne, %35, %c0_i32_28 : i32
    scf.if %36 {
      %c0_29 = arith.constant 0 : index
      %c0_30 = arith.constant 0 : index
      %37 = vector.load %arg10[%c0_29, %c0_30] : memref<4x8xf32, #tpu.memory_space<vmem>>, vector<4x8xf32>
      %c0_31 = arith.constant 0 : index
      %c0_32 = arith.constant 0 : index
      %38 = vector.load %arg9[%c0_31, %c0_32] : memref<4x1xf32, #tpu.memory_space<vmem>>, vector<4x1xf32>
      %39 = tpu.reciprocal %38 {approx = true} : vector<4x1xf32> -> vector<4x1xf32>
      %40 = vector.broadcast %39 : vector<4x1xf32> to vector<4x8xf32>
      %41 = arith.mulf %37, %40 : vector<4x8xf32>
      %42 = vector.shape_cast %41 : vector<4x8xf32> to vector<1x4x8xf32>
      %43 = arith.truncf %42 : vector<1x4x8xf32> to vector<1x4x8xbf16>
      %c0_33 = arith.constant 0 : index
      %c0_34 = arith.constant 0 : index
      %c0_35 = arith.constant 0 : index
      %c0_36 = arith.constant 0 : index
      %44 = vector.load %arg7[%c0_33, %c0_34, %c0_35, %c0_36] : memref<1x1x4x8xbf16, #tpu.memory_space<vmem>>, vector<1x1x4x8xbf16>
      %45 = vector.shape_cast %44 : vector<1x1x4x8xbf16> to vector<1x4x8xbf16>
      %46 = vector.shape_cast %43 : vector<1x4x8xbf16> to vector<1x1x4x8xbf16>
      tpu.vector_store %arg7[%c0_33, %c0_34, %c0_35, %c0_36], %46 {strides = array<i32>} : memref<1x1x4x8xbf16, #tpu.memory_space<vmem>>, vector<1x1x4x8xbf16>,
    } else {
    }
    return
  }
  func.func @transform_0(%arg0: i32, %arg1: i32, %arg2: i32, %arg3: i32) -> (i32, i32, i32, i32) {
    %c0_i32 = arith.constant 0 : i32
    %c0_i32_0 = arith.constant 0 : i32
    return %arg0, %arg1, %arg2, %c0_i32 : i32, i32, i32, i32
  }
  func.func @transform_1(%arg0: i32, %arg1: i32, %arg2: i32, %arg3: i32) -> (i32, i32, i32, i32) {
    %c0_i32 = arith.constant 0 : i32
    %c0_i32_0 = arith.constant 0 : i32
    return %arg0, %arg1, %arg3, %c0_i32 : i32, i32, i32, i32
  }
  func.func @transform_2(%arg0: i32, %arg1: i32, %arg2: i32, %arg3: i32) -> (i32, i32, i32, i32) {
    %c0_i32 = arith.constant 0 : i32
    %c0_i32_0 = arith.constant 0 : i32
    return %arg0, %arg1, %arg3, %c0_i32 : i32, i32, i32, i32
  }
  func.func @transform_3(%arg0: i32, %arg1: i32, %arg2: i32, %arg3: i32) -> (i32, i32, i32, i32) {
    %c0_i32 = arith.constant 0 : i32
    %c0_i32_0 = arith.constant 0 : i32
    return %arg0, %arg1, %arg2, %c0_i32 : i32, i32, i32, i32
  }
}

module attributes {stable_mosaic.version = 11 : i64} {
  func.func @_mm_kernel(%arg0: i32, %arg1: i32, %arg2: i32, %arg3: memref<8x32xbf16, #tpu.memory_space<vmem>>, %arg4: memref<32x32xbf16, #tpu.memory_space<vmem>>, %arg5: memref<1x32xf32, #tpu.memory_space<vmem>>, %arg6: memref<8x32xbf16, #tpu.memory_space<vmem>>, %arg7: memref<8x32xbf16, #tpu.memory_space<vmem>>, %arg8: memref<8x32xf32, #tpu.memory_space<vmem>>) attributes {dimension_semantics = [#tpu.dimension_semantics<parallel>, #tpu.dimension_semantics<parallel>, #tpu.dimension_semantics<arbitrary>], iteration_bounds = array<i64: 1, 1, 1>, scalar_prefetch = 0 : i64, scratch_operands = 1 : i64, tpu.core_type = #tpu.core_type<tc>, window_params = [{transform_indices = @transform_0, window_bounds = array<i64: 8, 32>}, {transform_indices = @transform_1, window_bounds = array<i64: 32, 32>}, {transform_indices = @transform_2, window_bounds = array<i64: 1, 32>}, {transform_indices = @transform_3, window_bounds = array<i64: 8, 32>}, {transform_indices = @transform_4, window_bounds = array<i64: 8, 32>}]} {
    %c0_i32 = arith.constant 0 : i32
    %0 = arith.cmpi eq, %arg2, %c0_i32 : i32
    %1 = arith.extui %0 : i1 to i32
    %c0_i32_0 = arith.constant 0 : i32
    %2 = arith.cmpi ne, %1, %c0_i32_0 : i32
    scf.if %2 {
      %cst_10 = arith.constant 0.000000e+00 : f32
      %12 = vector.broadcast %cst_10 : f32 to vector<8x32xf32>
      %c0_11 = arith.constant 0 : index
      %c0_12 = arith.constant 0 : index
      %13 = vector.load %arg8[%c0_11, %c0_12] : memref<8x32xf32, #tpu.memory_space<vmem>>, vector<8x32xf32>
      tpu.vector_store %arg8[%c0_11, %c0_12], %12 {strides = array<i32>} : memref<8x32xf32, #tpu.memory_space<vmem>>, vector<8x32xf32>,
    } else {
    }
    %c0 = arith.constant 0 : index
    %c0_1 = arith.constant 0 : index
    %3 = vector.load %arg8[%c0, %c0_1] : memref<8x32xf32, #tpu.memory_space<vmem>>, vector<8x32xf32>
    %c0_2 = arith.constant 0 : index
    %c0_3 = arith.constant 0 : index
    %4 = vector.load %arg3[%c0_2, %c0_3] : memref<8x32xbf16, #tpu.memory_space<vmem>>, vector<8x32xbf16>
    %c0_4 = arith.constant 0 : index
    %c0_5 = arith.constant 0 : index
    %5 = vector.load %arg4[%c0_4, %c0_5] : memref<32x32xbf16, #tpu.memory_space<vmem>>, vector<32x32xbf16>
    %cst = arith.constant dense<0.000000e+00> : vector<8x32xf32>
    %6 = tpu.matmul %4, %5, %cst {dimension_numbers = #tpu.dot_dimension_numbers<[1], [0], [0], [1], [0, 0, 1, 1], [], []>} : vector<8x32xbf16>, vector<32x32xbf16>, vector<8x32xf32> -> vector<8x32xf32>
    %7 = arith.addf %3, %6 : vector<8x32xf32>
    %c0_6 = arith.constant 0 : index
    %c0_7 = arith.constant 0 : index
    %8 = vector.load %arg8[%c0_6, %c0_7] : memref<8x32xf32, #tpu.memory_space<vmem>>, vector<8x32xf32>
    tpu.vector_store %arg8[%c0_6, %c0_7], %7 {strides = array<i32>} : memref<8x32xf32, #tpu.memory_space<vmem>>, vector<8x32xf32>,
    %c0_i32_8 = arith.constant 0 : i32
    %9 = arith.cmpi eq, %arg2, %c0_i32_8 : i32
    %10 = arith.extui %9 : i1 to i32
    %c0_i32_9 = arith.constant 0 : i32
    %11 = arith.cmpi ne, %10, %c0_i32_9 : i32
    scf.if %11 {
      %c0_10 = arith.constant 0 : index
      %c0_11 = arith.constant 0 : index
      %12 = vector.load %arg8[%c0_10, %c0_11] : memref<8x32xf32, #tpu.memory_space<vmem>>, vector<8x32xf32>
      %c0_12 = arith.constant 0 : index
      %c0_13 = arith.constant 0 : index
      %13 = vector.load %arg5[%c0_12, %c0_13] : memref<1x32xf32, #tpu.memory_space<vmem>>, vector<1x32xf32>
      %14 = vector.broadcast %13 : vector<1x32xf32> to vector<8x32xf32>
      %15 = arith.addf %12, %14 : vector<8x32xf32>
      %c0_14 = arith.constant 0 : index
      %c0_15 = arith.constant 0 : index
      %16 = vector.load %arg6[%c0_14, %c0_15] : memref<8x32xbf16, #tpu.memory_space<vmem>>, vector<8x32xbf16>
      %17 = arith.extf %16 : vector<8x32xbf16> to vector<8x32xf32>
      %18 = arith.addf %15, %17 : vector<8x32xf32>
      %19 = arith.truncf %18 : vector<8x32xf32> to vector<8x32xbf16>
      %c0_16 = arith.constant 0 : index
      %c0_17 = arith.constant 0 : index
      %20 = vector.load %arg7[%c0_16, %c0_17] : memref<8x32xbf16, #tpu.memory_space<vmem>>, vector<8x32xbf16>
      tpu.vector_store %arg7[%c0_16, %c0_17], %19 {strides = array<i32>} : memref<8x32xbf16, #tpu.memory_space<vmem>>, vector<8x32xbf16>,
    } else {
    }
    return
  }
  func.func @transform_0(%arg0: i32, %arg1: i32, %arg2: i32) -> (i32, i32) {
    %c0_i32 = arith.constant 0 : i32
    return %arg0, %arg2 : i32, i32
  }
  func.func @transform_1(%arg0: i32, %arg1: i32, %arg2: i32) -> (i32, i32) {
    %c0_i32 = arith.constant 0 : i32
    return %arg2, %arg1 : i32, i32
  }
  func.func @transform_2(%arg0: i32, %arg1: i32, %arg2: i32) -> (i32, i32) {
    %c0_i32 = arith.constant 0 : i32
    %c0_i32_0 = arith.constant 0 : i32
    return %c0_i32, %arg1 : i32, i32
  }
  func.func @transform_3(%arg0: i32, %arg1: i32, %arg2: i32) -> (i32, i32) {
    %c0_i32 = arith.constant 0 : i32
    return %arg0, %arg1 : i32, i32
  }
  func.func @transform_4(%arg0: i32, %arg1: i32, %arg2: i32) -> (i32, i32) {
    %c0_i32 = arith.constant 0 : i32
    return %arg0, %arg1 : i32, i32
  }
}

module attributes {stable_mosaic.version = 11 : i64} {
  func.func @_vision_mlp_kernel(%arg0: i32, %arg1: i32, %arg2: memref<8x32xbf16, #tpu.memory_space<vmem>>, %arg3: memref<1x32xf32, #tpu.memory_space<vmem>>, %arg4: memref<1x32xf32, #tpu.memory_space<vmem>>, %arg5: memref<32x64xbf16, #tpu.memory_space<vmem>>, %arg6: memref<1x64xf32, #tpu.memory_space<vmem>>, %arg7: memref<64x32xbf16, #tpu.memory_space<vmem>>, %arg8: memref<1x32xf32, #tpu.memory_space<vmem>>, %arg9: memref<8x32xbf16, #tpu.memory_space<vmem>>, %arg10: memref<8x32xbf16, #tpu.memory_space<vmem>>, %arg11: memref<8x32xf32, #tpu.memory_space<vmem>>) attributes {dimension_semantics = [#tpu.dimension_semantics<parallel>, #tpu.dimension_semantics<arbitrary>], iteration_bounds = array<i64: 1, 1>, scalar_prefetch = 0 : i64, scratch_operands = 2 : i64, tpu.core_type = #tpu.core_type<tc>, window_params = [{transform_indices = @transform_0, window_bounds = array<i64: 8, 32>}, {pipeline_mode = #tpu.pipeline_mode<synchronous>, transform_indices = @transform_1, window_bounds = array<i64: 1, 32>}, {pipeline_mode = #tpu.pipeline_mode<synchronous>, transform_indices = @transform_2, window_bounds = array<i64: 1, 32>}, {transform_indices = @transform_3, window_bounds = array<i64: 32, 64>}, {transform_indices = @transform_4, window_bounds = array<i64: 1, 64>}, {transform_indices = @transform_5, window_bounds = array<i64: 64, 32>}, {pipeline_mode = #tpu.pipeline_mode<synchronous>, transform_indices = @transform_6, window_bounds = array<i64: 1, 32>}, {transform_indices = @transform_7, window_bounds = array<i64: 8, 32>}]} {
    %c0_i32 = arith.constant 0 : i32
    %0 = arith.cmpi eq, %arg1, %c0_i32 : i32
    %1 = arith.extui %0 : i1 to i32
    %c0_i32_0 = arith.constant 0 : i32
    %2 = arith.cmpi ne, %1, %c0_i32_0 : i32
    scf.if %2 {
      %c0_19 = arith.constant 0 : index
      %c0_20 = arith.constant 0 : index
      %31 = vector.load %arg2[%c0_19, %c0_20] : memref<8x32xbf16, #tpu.memory_space<vmem>>, vector<8x32xbf16>
      %32 = arith.extf %31 : vector<8x32xbf16> to vector<8x32xf32>
      %cst_21 = arith.constant dense<0.000000e+00> : vector<8xf32>
      %33 = vector.multi_reduction <add>, %32, %cst_21 [1] : vector<8x32xf32> to vector<8xf32>
      %34 = vector.shape_cast %33 : vector<8xf32> to vector<8x1xf32>
      %cst_22 = arith.constant 3.200000e+01 : f32
      %35 = vector.broadcast %cst_22 : f32 to vector<8x1xf32>
      %36 = arith.divf %34, %35 : vector<8x1xf32>
      %37 = vector.broadcast %36 : vector<8x1xf32> to vector<8x32xf32>
      %38 = arith.subf %32, %37 : vector<8x32xf32>
      %39 = arith.mulf %38, %38 : vector<8x32xf32>
      %cst_23 = arith.constant dense<0.000000e+00> : vector<8xf32>
      %40 = vector.multi_reduction <add>, %39, %cst_23 [1] : vector<8x32xf32> to vector<8xf32>
      %41 = vector.shape_cast %40 : vector<8xf32> to vector<8x1xf32>
      %cst_24 = arith.constant 3.200000e+01 : f32
      %42 = vector.broadcast %cst_24 : f32 to vector<8x1xf32>
      %43 = arith.divf %41, %42 : vector<8x1xf32>
      %44 = vector.broadcast %36 : vector<8x1xf32> to vector<8x32xf32>
      %45 = arith.subf %32, %44 : vector<8x32xf32>
      %cst_25 = arith.constant 9.99999997E-7 : f32
      %46 = vector.broadcast %cst_25 : f32 to vector<8x1xf32>
      %47 = arith.addf %43, %46 : vector<8x1xf32>
      %48 = math.rsqrt %47 : vector<8x1xf32>
      %49 = vector.broadcast %48 : vector<8x1xf32> to vector<8x32xf32>
      %50 = arith.mulf %45, %49 : vector<8x32xf32>
      %c0_26 = arith.constant 0 : index
      %c0_27 = arith.constant 0 : index
      %51 = vector.load %arg3[%c0_26, %c0_27] : memref<1x32xf32, #tpu.memory_space<vmem>>, vector<1x32xf32>
      %52 = vector.broadcast %51 : vector<1x32xf32> to vector<8x32xf32>
      %53 = arith.mulf %50, %52 : vector<8x32xf32>
      %c0_28 = arith.constant 0 : index
      %c0_29 = arith.constant 0 : index
      %54 = vector.load %arg4[%c0_28, %c0_29] : memref<1x32xf32, #tpu.memory_space<vmem>>, vector<1x32xf32>
      %55 = vector.broadcast %54 : vector<1x32xf32> to vector<8x32xf32>
      %56 = arith.addf %53, %55 : vector<8x32xf32>
      %57 = arith.truncf %56 : vector<8x32xf32> to vector<8x32xbf16>
      %c0_30 = arith.constant 0 : index
      %c0_31 = arith.constant 0 : index
      %58 = vector.load %arg10[%c0_30, %c0_31] : memref<8x32xbf16, #tpu.memory_space<vmem>>, vector<8x32xbf16>
      tpu.vector_store %arg10[%c0_30, %c0_31], %57 {strides = array<i32>} : memref<8x32xbf16, #tpu.memory_space<vmem>>, vector<8x32xbf16>,
      %cst_32 = arith.constant 0.000000e+00 : f32
      %59 = vector.broadcast %cst_32 : f32 to vector<8x32xf32>
      %c0_33 = arith.constant 0 : index
      %c0_34 = arith.constant 0 : index
      %60 = vector.load %arg11[%c0_33, %c0_34] : memref<8x32xf32, #tpu.memory_space<vmem>>, vector<8x32xf32>
      tpu.vector_store %arg11[%c0_33, %c0_34], %59 {strides = array<i32>} : memref<8x32xf32, #tpu.memory_space<vmem>>, vector<8x32xf32>,
    } else {
    }
    %c0 = arith.constant 0 : index
    %c0_1 = arith.constant 0 : index
    %3 = vector.load %arg10[%c0, %c0_1] : memref<8x32xbf16, #tpu.memory_space<vmem>>, vector<8x32xbf16>
    %c0_2 = arith.constant 0 : index
    %c0_3 = arith.constant 0 : index
    %4 = vector.load %arg5[%c0_2, %c0_3] : memref<32x64xbf16, #tpu.memory_space<vmem>>, vector<32x64xbf16>
    %cst = arith.constant dense<0.000000e+00> : vector<8x64xf32>
    %5 = tpu.matmul %3, %4, %cst {dimension_numbers = #tpu.dot_dimension_numbers<[1], [0], [0], [1], [0, 0, 1, 1], [], []>} : vector<8x32xbf16>, vector<32x64xbf16>, vector<8x64xf32> -> vector<8x64xf32>
    %c0_4 = arith.constant 0 : index
    %c0_5 = arith.constant 0 : index
    %6 = vector.load %arg6[%c0_4, %c0_5] : memref<1x64xf32, #tpu.memory_space<vmem>>, vector<1x64xf32>
    %7 = vector.broadcast %6 : vector<1x64xf32> to vector<8x64xf32>
    %8 = arith.addf %5, %7 : vector<8x64xf32>
    %cst_6 = arith.constant 5.000000e-01 : f32
    %9 = vector.broadcast %cst_6 : f32 to vector<8x64xf32>
    %10 = arith.mulf %9, %8 : vector<8x64xf32>
    %cst_7 = arith.constant 4.471500e-02 : f32
    %11 = vector.broadcast %cst_7 : f32 to vector<8x64xf32>
    %12 = arith.mulf %11, %8 : vector<8x64xf32>
    %13 = arith.mulf %12, %8 : vector<8x64xf32>
    %14 = arith.mulf %13, %8 : vector<8x64xf32>
    %15 = arith.addf %8, %14 : vector<8x64xf32>
    %cst_8 = arith.constant 0.797884583 : f32
    %16 = vector.broadcast %cst_8 : f32 to vector<8x64xf32>
    %17 = arith.mulf %16, %15 : vector<8x64xf32>
    %18 = math.tanh %17 : vector<8x64xf32>
    %cst_9 = arith.constant 1.000000e+00 : f32
    %19 = vector.broadcast %cst_9 : f32 to vector<8x64xf32>
    %20 = arith.addf %19, %18 : vector<8x64xf32>
    %21 = arith.mulf %10, %20 : vector<8x64xf32>
    %22 = arith.truncf %21 : vector<8x64xf32> to vector<8x64xbf16>
    %c0_10 = arith.constant 0 : index
    %c0_11 = arith.constant 0 : index
    %23 = vector.load %arg11[%c0_10, %c0_11] : memref<8x32xf32, #tpu.memory_space<vmem>>, vector<8x32xf32>
    %c0_12 = arith.constant 0 : index
    %c0_13 = arith.constant 0 : index
    %24 = vector.load %arg7[%c0_12, %c0_13] : memref<64x32xbf16, #tpu.memory_space<vmem>>, vector<64x32xbf16>
    %cst_14 = arith.constant dense<0.000000e+00> : vector<8x32xf32>
    %25 = tpu.matmul %22, %24, %cst_14 {dimension_numbers = #tpu.dot_dimension_numbers<[1], [0], [0], [1], [0, 0, 1, 1], [], []>} : vector<8x64xbf16>, vector<64x32xbf16>, vector<8x32xf32> -> vector<8x32xf32>
    %26 = arith.addf %23, %25 : vector<8x32xf32>
    %c0_15 = arith.constant 0 : index
    %c0_16 = arith.constant 0 : index
    %27 = vector.load %arg11[%c0_15, %c0_16] : memref<8x32xf32, #tpu.memory_space<vmem>>, vector<8x32xf32>
    tpu.vector_store %arg11[%c0_15, %c0_16], %26 {strides = array<i32>} : memref<8x32xf32, #tpu.memory_space<vmem>>, vector<8x32xf32>,
    %c0_i32_17 = arith.constant 0 : i32
    %28 = arith.cmpi eq, %arg1, %c0_i32_17 : i32
    %29 = arith.extui %28 : i1 to i32
    %c0_i32_18 = arith.constant 0 : i32
    %30 = arith.cmpi ne, %29, %c0_i32_18 : i32
    scf.if %30 {
      %c0_19 = arith.constant 0 : index
      %c0_20 = arith.constant 0 : index
      %31 = vector.load %arg11[%c0_19, %c0_20] : memref<8x32xf32, #tpu.memory_space<vmem>>, vector<8x32xf32>
      %c0_21 = arith.constant 0 : index
      %c0_22 = arith.constant 0 : index
      %32 = vector.load %arg8[%c0_21, %c0_22] : memref<1x32xf32, #tpu.memory_space<vmem>>, vector<1x32xf32>
      %33 = vector.broadcast %32 : vector<1x32xf32> to vector<8x32xf32>
      %34 = arith.addf %31, %33 : vector<8x32xf32>
      %c0_23 = arith.constant 0 : index
      %c0_24 = arith.constant 0 : index
      %35 = vector.load %arg2[%c0_23, %c0_24] : memref<8x32xbf16, #tpu.memory_space<vmem>>, vector<8x32xbf16>
      %36 = arith.extf %35 : vector<8x32xbf16> to vector<8x32xf32>
      %37 = arith.addf %34, %36 : vector<8x32xf32>
      %38 = arith.truncf %37 : vector<8x32xf32> to vector<8x32xbf16>
      %c0_25 = arith.constant 0 : index
      %c0_26 = arith.constant 0 : index
      %39 = vector.load %arg9[%c0_25, %c0_26] : memref<8x32xbf16, #tpu.memory_space<vmem>>, vector<8x32xbf16>
      tpu.vector_store %arg9[%c0_25, %c0_26], %38 {strides = array<i32>} : memref<8x32xbf16, #tpu.memory_space<vmem>>, vector<8x32xbf16>,
    } else {
    }
    return
  }
  func.func @transform_0(%arg0: i32, %arg1: i32) -> (i32, i32) {
    %c0_i32 = arith.constant 0 : i32
    %c0_i32_0 = arith.constant 0 : i32
    return %arg0, %c0_i32 : i32, i32
  }
  func.func @transform_1(%arg0: i32, %arg1: i32) -> (i32, i32) {
    %c0_i32 = arith.constant 0 : i32
    %c0_i32_0 = arith.constant 0 : i32
    %c0_i32_1 = arith.constant 0 : i32
    return %c0_i32, %c0_i32_0 : i32, i32
  }
  func.func @transform_2(%arg0: i32, %arg1: i32) -> (i32, i32) {
    %c0_i32 = arith.constant 0 : i32
    %c0_i32_0 = arith.constant 0 : i32
    %c0_i32_1 = arith.constant 0 : i32
    return %c0_i32, %c0_i32_0 : i32, i32
  }
  func.func @transform_3(%arg0: i32, %arg1: i32) -> (i32, i32) {
    %c0_i32 = arith.constant 0 : i32
    %c0_i32_0 = arith.constant 0 : i32
    return %c0_i32, %arg1 : i32, i32
  }
  func.func @transform_4(%arg0: i32, %arg1: i32) -> (i32, i32) {
    %c0_i32 = arith.constant 0 : i32
    %c0_i32_0 = arith.constant 0 : i32
    return %c0_i32, %arg1 : i32, i32
  }
  func.func @transform_5(%arg0: i32, %arg1: i32) -> (i32, i32) {
    %c0_i32 = arith.constant 0 : i32
    %c0_i32_0 = arith.constant 0 : i32
    return %arg1, %c0_i32 : i32, i32
  }
  func.func @transform_6(%arg0: i32, %arg1: i32) -> (i32, i32) {
    %c0_i32 = arith.constant 0 : i32
    %c0_i32_0 = arith.constant 0 : i32
    %c0_i32_1 = arith.constant 0 : i32
    return %c0_i32, %c0_i32_0 : i32, i32
  }
  func.func @transform_7(%arg0: i32, %arg1: i32) -> (i32, i32) {
    %c0_i32 = arith.constant 0 : i32
    %c0_i32_0 = arith.constant 0 : i32
    return %arg0, %c0_i32 : i32, i32
  }
}

module attributes {stable_mosaic.version = 11 : i64} {
  func.func @_ln_mm_kernel(%arg0: i32, %arg1: i32, %arg2: memref<8x32xbf16, #tpu.memory_space<vmem>>, %arg3: memref<1x32xf32, #tpu.memory_space<vmem>>, %arg4: memref<1x32xf32, #tpu.memory_space<vmem>>, %arg5: memref<32x32xbf16, #tpu.memory_space<vmem>>, %arg6: memref<1x32xf32, #tpu.memory_space<vmem>>, %arg7: memref<8x32xf32, #tpu.memory_space<vmem>>, %arg8: memref<8x32xbf16, #tpu.memory_space<vmem>>) attributes {dimension_semantics = [#tpu.dimension_semantics<parallel>, #tpu.dimension_semantics<arbitrary>], iteration_bounds = array<i64: 1, 1>, scalar_prefetch = 0 : i64, scratch_operands = 1 : i64, tpu.core_type = #tpu.core_type<tc>, window_params = [{transform_indices = @transform_0, window_bounds = array<i64: 8, 32>}, {pipeline_mode = #tpu.pipeline_mode<synchronous>, transform_indices = @transform_1, window_bounds = array<i64: 1, 32>}, {pipeline_mode = #tpu.pipeline_mode<synchronous>, transform_indices = @transform_2, window_bounds = array<i64: 1, 32>}, {transform_indices = @transform_3, window_bounds = array<i64: 32, 32>}, {transform_indices = @transform_4, window_bounds = array<i64: 1, 32>}, {transform_indices = @transform_5, window_bounds = array<i64: 8, 32>}]} {
    %c0_i32 = arith.constant 0 : i32
    %0 = arith.cmpi eq, %arg1, %c0_i32 : i32
    %1 = arith.extui %0 : i1 to i32
    %c0_i32_0 = arith.constant 0 : i32
    %2 = arith.cmpi ne, %1, %c0_i32_0 : i32
    scf.if %2 {
      %c0_8 = arith.constant 0 : index
      %c0_9 = arith.constant 0 : index
      %10 = vector.load %arg2[%c0_8, %c0_9] : memref<8x32xbf16, #tpu.memory_space<vmem>>, vector<8x32xbf16>
      %11 = arith.extf %10 : vector<8x32xbf16> to vector<8x32xf32>
      %cst_10 = arith.constant dense<0.000000e+00> : vector<8xf32>
      %12 = vector.multi_reduction <add>, %11, %cst_10 [1] : vector<8x32xf32> to vector<8xf32>
      %13 = vector.shape_cast %12 : vector<8xf32> to vector<8x1xf32>
      %cst_11 = arith.constant 3.200000e+01 : f32
      %14 = vector.broadcast %cst_11 : f32 to vector<8x1xf32>
      %15 = arith.divf %13, %14 : vector<8x1xf32>
      %16 = vector.broadcast %15 : vector<8x1xf32> to vector<8x32xf32>
      %17 = arith.subf %11, %16 : vector<8x32xf32>
      %18 = arith.mulf %17, %17 : vector<8x32xf32>
      %cst_12 = arith.constant dense<0.000000e+00> : vector<8xf32>
      %19 = vector.multi_reduction <add>, %18, %cst_12 [1] : vector<8x32xf32> to vector<8xf32>
      %20 = vector.shape_cast %19 : vector<8xf32> to vector<8x1xf32>
      %cst_13 = arith.constant 3.200000e+01 : f32
      %21 = vector.broadcast %cst_13 : f32 to vector<8x1xf32>
      %22 = arith.divf %20, %21 : vector<8x1xf32>
      %23 = vector.broadcast %15 : vector<8x1xf32> to vector<8x32xf32>
      %24 = arith.subf %11, %23 : vector<8x32xf32>
      %cst_14 = arith.constant 9.99999997E-7 : f32
      %25 = vector.broadcast %cst_14 : f32 to vector<8x1xf32>
      %26 = arith.addf %22, %25 : vector<8x1xf32>
      %27 = math.rsqrt %26 : vector<8x1xf32>
      %28 = vector.broadcast %27 : vector<8x1xf32> to vector<8x32xf32>
      %29 = arith.mulf %24, %28 : vector<8x32xf32>
      %c0_15 = arith.constant 0 : index
      %c0_16 = arith.constant 0 : index
      %30 = vector.load %arg3[%c0_15, %c0_16] : memref<1x32xf32, #tpu.memory_space<vmem>>, vector<1x32xf32>
      %31 = vector.broadcast %30 : vector<1x32xf32> to vector<8x32xf32>
      %32 = arith.mulf %29, %31 : vector<8x32xf32>
      %c0_17 = arith.constant 0 : index
      %c0_18 = arith.constant 0 : index
      %33 = vector.load %arg4[%c0_17, %c0_18] : memref<1x32xf32, #tpu.memory_space<vmem>>, vector<1x32xf32>
      %34 = vector.broadcast %33 : vector<1x32xf32> to vector<8x32xf32>
      %35 = arith.addf %32, %34 : vector<8x32xf32>
      %36 = arith.truncf %35 : vector<8x32xf32> to vector<8x32xbf16>
      %c0_19 = arith.constant 0 : index
      %c0_20 = arith.constant 0 : index
      %37 = vector.load %arg8[%c0_19, %c0_20] : memref<8x32xbf16, #tpu.memory_space<vmem>>, vector<8x32xbf16>
      tpu.vector_store %arg8[%c0_19, %c0_20], %36 {strides = array<i32>} : memref<8x32xbf16, #tpu.memory_space<vmem>>, vector<8x32xbf16>,
    } else {
    }
    %c0 = arith.constant 0 : index
    %c0_1 = arith.constant 0 : index
    %3 = vector.load %arg8[%c0, %c0_1] : memref<8x32xbf16, #tpu.memory_space<vmem>>, vector<8x32xbf16>
    %c0_2 = arith.constant 0 : index
    %c0_3 = arith.constant 0 : index
    %4 = vector.load %arg5[%c0_2, %c0_3] : memref<32x32xbf16, #tpu.memory_space<vmem>>, vector<32x32xbf16>
    %cst = arith.constant dense<0.000000e+00> : vector<8x32xf32>
    %5 = tpu.matmul %3, %4, %cst {dimension_numbers = #tpu.dot_dimension_numbers<[1], [0], [0], [1], [0, 0, 1, 1], [], []>} : vector<8x32xbf16>, vector<32x32xbf16>, vector<8x32xf32> -> vector<8x32xf32>
    %c0_4 = arith.constant 0 : index
    %c0_5 = arith.constant 0 : index
    %6 = vector.load %arg6[%c0_4, %c0_5] : memref<1x32xf32, #tpu.memory_space<vmem>>, vector<1x32xf32>
    %7 = vector.broadcast %6 : vector<1x32xf32> to vector<8x32xf32>
    %8 = arith.addf %5, %7 : vector<8x32xf32>
    %c0_6 = arith.constant 0 : index
    %c0_7 = arith.constant 0 : index
    %9 = vector.load %arg7[%c0_6, %c0_7] : memref<8x32xf32, #tpu.memory_space<vmem>>, vector<8x32xf32>
    tpu.vector_store %arg7[%c0_6, %c0_7], %8 {strides = array<i32>} : memref<8x32xf32, #tpu.memory_space<vmem>>, vector<8x32xf32>,
    return
  }
  func.func @transform_0(%arg0: i32, %arg1: i32) -> (i32, i32) {
    %c0_i32 = arith.constant 0 : i32
    %c0_i32_0 = arith.constant 0 : i32
    return %arg0, %c0_i32 : i32, i32
  }
  func.func @transform_1(%arg0: i32, %arg1: i32) -> (i32, i32) {
    %c0_i32 = arith.constant 0 : i32
    %c0_i32_0 = arith.constant 0 : i32
    %c0_i32_1 = arith.constant 0 : i32
    return %c0_i32, %c0_i32_0 : i32, i32
  }
  func.func @transform_2(%arg0: i32, %arg1: i32) -> (i32, i32) {
    %c0_i32 = arith.constant 0 : i32
    %c0_i32_0 = arith.constant 0 : i32
    %c0_i32_1 = arith.constant 0 : i32
    return %c0_i32, %c0_i32_0 : i32, i32
  }
  func.func @transform_3(%arg0: i32, %arg1: i32) -> (i32, i32) {
    %c0_i32 = arith.constant 0 : i32
    %c0_i32_0 = arith.constant 0 : i32
    return %c0_i32, %arg1 : i32, i32
  }
  func.func @transform_4(%arg0: i32, %arg1: i32) -> (i32, i32) {
    %c0_i32 = arith.constant 0 : i32
    %c0_i32_0 = arith.constant 0 : i32
    return %c0_i32, %arg1 : i32, i32
  }
  func.func @transform_5(%arg0: i32, %arg1: i32) -> (i32, i32) {
    %c0_i32 = arith.constant 0 : i32
    return %arg0, %arg1 : i32, i32
  }
}

module attributes {stable_mosaic.version = 11 : i64} {
  func.func @_rms_mm_kernel(%arg0: i32, %arg1: i32, %arg2: memref<16x32xbf16, #tpu.memory_space<vmem>>, %arg3: memref<1x32xf32, #tpu.memory_space<vmem>>, %arg4: memref<32x128xbf16, #tpu.memory_space<vmem>>, %arg5: memref<16x128xbf16, #tpu.memory_space<vmem>>, %arg6: memref<16x32xbf16, #tpu.memory_space<vmem>>) attributes {dimension_semantics = [#tpu.dimension_semantics<parallel>, #tpu.dimension_semantics<arbitrary>], iteration_bounds = array<i64: 1, 1>, scalar_prefetch = 0 : i64, scratch_operands = 1 : i64, tpu.core_type = #tpu.core_type<tc>, window_params = [{transform_indices = @transform_0, window_bounds = array<i64: 16, 32>}, {pipeline_mode = #tpu.pipeline_mode<synchronous>, transform_indices = @transform_1, window_bounds = array<i64: 1, 32>}, {transform_indices = @transform_2, window_bounds = array<i64: 32, 128>}, {transform_indices = @transform_3, window_bounds = array<i64: 16, 128>}]} {
    %c0_i32 = arith.constant 0 : i32
    %0 = arith.cmpi eq, %arg1, %c0_i32 : i32
    %1 = arith.extui %0 : i1 to i32
    %c0_i32_0 = arith.constant 0 : i32
    %2 = arith.cmpi ne, %1, %c0_i32_0 : i32
    scf.if %2 {
      %c0_6 = arith.constant 0 : index
      %c0_7 = arith.constant 0 : index
      %8 = vector.load %arg2[%c0_6, %c0_7] : memref<16x32xbf16, #tpu.memory_space<vmem>>, vector<16x32xbf16>
      %9 = arith.extf %8 : vector<16x32xbf16> to vector<16x32xf32>
      %10 = arith.mulf %9, %9 : vector<16x32xf32>
      %cst_8 = arith.constant dense<0.000000e+00> : vector<16xf32>
      %11 = vector.multi_reduction <add>, %10, %cst_8 [1] : vector<16x32xf32> to vector<16xf32>
      %12 = vector.shape_cast %11 : vector<16xf32> to vector<16x1xf32>
      %cst_9 = arith.constant 3.200000e+01 : f32
      %13 = vector.broadcast %cst_9 : f32 to vector<16x1xf32>
      %14 = arith.divf %12, %13 : vector<16x1xf32>
      %cst_10 = arith.constant 9.99999997E-7 : f32
      %15 = vector.broadcast %cst_10 : f32 to vector<16x1xf32>
      %16 = arith.addf %14, %15 : vector<16x1xf32>
      %17 = math.rsqrt %16 : vector<16x1xf32>
      %18 = vector.broadcast %17 : vector<16x1xf32> to vector<16x32xf32>
      %19 = arith.mulf %9, %18 : vector<16x32xf32>
      %c0_11 = arith.constant 0 : index
      %c0_12 = arith.constant 0 : index
      %20 = vector.load %arg3[%c0_11, %c0_12] : memref<1x32xf32, #tpu.memory_space<vmem>>, vector<1x32xf32>
      %cst_13 = arith.constant 1.000000e+00 : f32
      %21 = vector.broadcast %cst_13 : f32 to vector<1x32xf32>
      %22 = arith.addf %21, %20 : vector<1x32xf32>
      %23 = vector.broadcast %22 : vector<1x32xf32> to vector<16x32xf32>
      %24 = arith.mulf %19, %23 : vector<16x32xf32>
      %25 = arith.truncf %24 : vector<16x32xf32> to vector<16x32xbf16>
      %c0_14 = arith.constant 0 : index
      %c0_15 = arith.constant 0 : index
      %26 = vector.load %arg6[%c0_14, %c0_15] : memref<16x32xbf16, #tpu.memory_space<vmem>>, vector<16x32xbf16>
      tpu.vector_store %arg6[%c0_14, %c0_15], %25 {strides = array<i32>} : memref<16x32xbf16, #tpu.memory_space<vmem>>, vector<16x32xbf16>,
    } else {
    }
    %c0 = arith.constant 0 : index
    %c0_1 = arith.constant 0 : index
    %3 = vector.load %arg6[%c0, %c0_1] : memref<16x32xbf16, #tpu.memory_space<vmem>>, vector<16x32xbf16>
    %c0_2 = arith.constant 0 : index
    %c0_3 = arith.constant 0 : index
    %4 = vector.load %arg4[%c0_2, %c0_3] : memref<32x128xbf16, #tpu.memory_space<vmem>>, vector<32x128xbf16>
    %cst = arith.constant dense<0.000000e+00> : vector<16x128xf32>
    %5 = tpu.matmul %3, %4, %cst {dimension_numbers = #tpu.dot_dimension_numbers<[1], [0], [0], [1], [0, 0, 1, 1], [], []>} : vector<16x32xbf16>, vector<32x128xbf16>, vector<16x128xf32> -> vector<16x128xf32>
    %6 = arith.truncf %5 : vector<16x128xf32> to vector<16x128xbf16>
    %c0_4 = arith.constant 0 : index
    %c0_5 = arith.constant 0 : index
    %7 = vector.load %arg5[%c0_4, %c0_5] : memref<16x128xbf16, #tpu.memory_space<vmem>>, vector<16x128xbf16>
    tpu.vector_store %arg5[%c0_4, %c0_5], %6 {strides = array<i32>} : memref<16x128xbf16, #tpu.memory_space<vmem>>, vector<16x128xbf16>,
    return
  }
  func.func @transform_0(%arg0: i32, %arg1: i32) -> (i32, i32) {
    %c0_i32 = arith.constant 0 : i32
    %c0_i32_0 = arith.constant 0 : i32
    return %arg0, %c0_i32 : i32, i32
  }
  func.func @transform_1(%arg0: i32, %arg1: i32) -> (i32, i32) {
    %c0_i32 = arith.constant 0 : i32
    %c0_i32_0 = arith.constant 0 : i32
    %c0_i32_1 = arith.constant 0 : i32
    return %c0_i32, %c0_i32_0 : i32, i32
  }
  func.func @transform_2(%arg0: i32, %arg1: i32) -> (i32, i32) {
    %c0_i32 = arith.constant 0 : i32
    %c0_i32_0 = arith.constant 0 : i32
    return %c0_i32, %arg1 : i32, i32
  }
  func.func @transform_3(%arg0: i32, %arg1: i32) -> (i32, i32) {
    %c0_i32 = arith.constant 0 : i32
    return %arg0, %arg1 : i32, i32
  }
}

module attributes {stable_mosaic.version = 11 : i64} {
  func.func @_flash_attn_kernel(%arg0: i32, %arg1: i32, %arg2: i32, %arg3: i32, %arg4: memref<1x2x8x16xbf16, #tpu.memory_space<vmem>>, %arg5: memref<1x1x8x16xbf16, #tpu.memory_space<vmem>>, %arg6: memref<1x1x8x16xbf16, #tpu.memory_space<vmem>>, %arg7: memref<1x2x8x16xbf16, #tpu.memory_space<vmem>>, %arg8: memref<16x1xf32, #tpu.memory_space<vmem>>, %arg9: memref<16x1xf32, #tpu.memory_space<vmem>>, %arg10: memref<16x16xf32, #tpu.memory_space<vmem>>) attributes {dimension_semantics = [#tpu.dimension_semantics<parallel>, #tpu.dimension_semantics<parallel>, #tpu.dimension_semantics<parallel>, #tpu.dimension_semantics<arbitrary>], iteration_bounds = array<i64: 2, 2, 1, 1>, scalar_prefetch = 0 : i64, scratch_operands = 3 : i64, tpu.core_type = #tpu.core_type<tc>, window_params = [{transform_indices = @transform_0, window_bounds = array<i64: 1, 2, 8, 16>}, {transform_indices = @transform_1, window_bounds = array<i64: 1, 1, 8, 16>}, {transform_indices = @transform_2, window_bounds = array<i64: 1, 1, 8, 16>}, {transform_indices = @transform_3, window_bounds = array<i64: 1, 2, 8, 16>}]} {
    %c0_i32 = arith.constant 0 : i32
    %0 = arith.cmpi eq, %arg3, %c0_i32 : i32
    %1 = arith.extui %0 : i1 to i32
    %c0_i32_0 = arith.constant 0 : i32
    %2 = arith.cmpi ne, %1, %c0_i32_0 : i32
    scf.if %2 {
      %cst_29 = arith.constant -1.000000e+30 : f32
      %37 = vector.broadcast %cst_29 : f32 to vector<16x1xf32>
      %c0_30 = arith.constant 0 : index
      %c0_31 = arith.constant 0 : index
      %38 = vector.load %arg8[%c0_30, %c0_31] : memref<16x1xf32, #tpu.memory_space<vmem>>, vector<16x1xf32>
      tpu.vector_store %arg8[%c0_30, %c0_31], %37 {strides = array<i32>} : memref<16x1xf32, #tpu.memory_space<vmem>>, vector<16x1xf32>,
      %cst_32 = arith.constant 0.000000e+00 : f32
      %39 = vector.broadcast %cst_32 : f32 to vector<16x1xf32>
      %c0_33 = arith.constant 0 : index
      %c0_34 = arith.constant 0 : index
      %40 = vector.load %arg9[%c0_33, %c0_34] : memref<16x1xf32, #tpu.memory_space<vmem>>, vector<16x1xf32>
      tpu.vector_store %arg9[%c0_33, %c0_34], %39 {strides = array<i32>} : memref<16x1xf32, #tpu.memory_space<vmem>>, vector<16x1xf32>,
      %cst_35 = arith.constant 0.000000e+00 : f32
      %41 = vector.broadcast %cst_35 : f32 to vector<16x16xf32>
      %c0_36 = arith.constant 0 : index
      %c0_37 = arith.constant 0 : index
      %42 = vector.load %arg10[%c0_36, %c0_37] : memref<16x16xf32, #tpu.memory_space<vmem>>, vector<16x16xf32>
      tpu.vector_store %arg10[%c0_36, %c0_37], %41 {strides = array<i32>} : memref<16x16xf32, #tpu.memory_space<vmem>>, vector<16x16xf32>,
    } else {
    }
    %c0 = arith.constant 0 : index
    %c0_1 = arith.constant 0 : index
    %c0_2 = arith.constant 0 : index
    %c0_3 = arith.constant 0 : index
    %3 = vector.load %arg4[%c0, %c0_1, %c0_2, %c0_3] : memref<1x2x8x16xbf16, #tpu.memory_space<vmem>>, vector<1x2x8x16xbf16>
    %4 = vector.shape_cast %3 : vector<1x2x8x16xbf16> to vector<2x8x16xbf16>
    %5 = vector.shape_cast %4 : vector<2x8x16xbf16> to vector<16x16xbf16>
    %c0_4 = arith.constant 0 : index
    %c0_5 = arith.constant 0 : index
    %c0_6 = arith.constant 0 : index
    %c0_7 = arith.constant 0 : index
    %6 = vector.load %arg5[%c0_4, %c0_5, %c0_6, %c0_7] : memref<1x1x8x16xbf16, #tpu.memory_space<vmem>>, vector<1x1x8x16xbf16>
    %7 = vector.shape_cast %6 : vector<1x1x8x16xbf16> to vector<8x16xbf16>
    %cst = arith.constant dense<0.000000e+00> : vector<16x8xf32>
    %8 = tpu.matmul %5, %7, %cst {dimension_numbers = #tpu.dot_dimension_numbers<[1], [1], [0], [0], [0, 0, 1, 0], [], []>} : vector<16x16xbf16>, vector<8x16xbf16>, vector<16x8xf32> -> vector<16x8xf32>
    %c0_8 = arith.constant 0 : index
    %c0_9 = arith.constant 0 : index
    %9 = vector.load %arg8[%c0_8, %c0_9] : memref<16x1xf32, #tpu.memory_space<vmem>>, vector<16x1xf32>
    %cst_10 = arith.constant dense<0xFF800000> : vector<16xf32>
    %10 = vector.multi_reduction <maximumf>, %8, %cst_10 [1] : vector<16x8xf32> to vector<16xf32>
    %11 = vector.shape_cast %10 : vector<16xf32> to vector<16x1xf32>
    %12 = arith.maximumf %9, %11 : vector<16x1xf32>
    %13 = arith.subf %9, %12 : vector<16x1xf32>
    %14 = math.exp %13 : vector<16x1xf32>
    %15 = vector.broadcast %12 : vector<16x1xf32> to vector<16x8xf32>
    %16 = arith.subf %8, %15 : vector<16x8xf32>
    %17 = math.exp %16 : vector<16x8xf32>
    %c0_11 = arith.constant 0 : index
    %c0_12 = arith.constant 0 : index
    %18 = vector.load %arg9[%c0_11, %c0_12] : memref<16x1xf32, #tpu.memory_space<vmem>>, vector<16x1xf32>
    %19 = arith.mulf %14, %18 : vector<16x1xf32>
    %cst_13 = arith.constant dense<0.000000e+00> : vector<16xf32>
    %20 = vector.multi_reduction <add>, %17, %cst_13 [1] : vector<16x8xf32> to vector<16xf32>
    %21 = vector.shape_cast %20 : vector<16xf32> to vector<16x1xf32>
    %22 = arith.addf %19, %21 : vector<16x1xf32>
    %c0_14 = arith.constant 0 : index
    %c0_15 = arith.constant 0 : index
    %23 = vector.load %arg9[%c0_14, %c0_15] : memref<16x1xf32, #tpu.memory_space<vmem>>, vector<16x1xf32>
    tpu.vector_store %arg9[%c0_14, %c0_15], %22 {strides = array<i32>} : memref<16x1xf32, #tpu.memory_space<vmem>>, vector<16x1xf32>,
    %c0_16 = arith.constant 0 : index
    %c0_17 = arith.constant 0 : index
    %24 = vector.load %arg10[%c0_16, %c0_17] : memref<16x16xf32, #tpu.memory_space<vmem>>, vector<16x16xf32>
    %25 = vector.broadcast %14 : vector<16x1xf32> to vector<16x16xf32>
    %26 = arith.mulf %25, %24 : vector<16x16xf32>
    %27 = arith.truncf %17 : vector<16x8xf32> to vector<16x8xbf16>
    %c0_18 = arith.constant 0 : index
    %c0_19 = arith.constant 0 : index
    %c0_20 = arith.constant 0 : index
    %c0_21 = arith.constant 0 : index
    %28 = vector.load %arg6[%c0_18, %c0_19, %c0_20, %c0_21] : memref<1x1x8x16xbf16, #tpu.memory_space<vmem>>, vector<1x1x8x16xbf16>
    %29 = vector.shape_cast %28 : vector<1x1x8x16xbf16> to vector<8x16xbf16>
    %cst_22 = arith.constant dense<0.000000e+00> : vector<16x16xf32>
    %30 = tpu.matmul %27, %29, %cst_22 {dimension_numbers = #tpu.dot_dimension_numbers<[1], [0], [0], [1], [0, 0, 1, 1], [], []>} : vector<16x8xbf16>, vector<8x16xbf16>, vector<16x16xf32> -> vector<16x16xf32>
    %31 = arith.addf %26, %30 : vector<16x16xf32>
    %c0_23 = arith.constant 0 : index
    %c0_24 = arith.constant 0 : index
    %32 = vector.load %arg10[%c0_23, %c0_24] : memref<16x16xf32, #tpu.memory_space<vmem>>, vector<16x16xf32>
    tpu.vector_store %arg10[%c0_23, %c0_24], %31 {strides = array<i32>} : memref<16x16xf32, #tpu.memory_space<vmem>>, vector<16x16xf32>,
    %c0_25 = arith.constant 0 : index
    %c0_26 = arith.constant 0 : index
    %33 = vector.load %arg8[%c0_25, %c0_26] : memref<16x1xf32, #tpu.memory_space<vmem>>, vector<16x1xf32>
    tpu.vector_store %arg8[%c0_25, %c0_26], %12 {strides = array<i32>} : memref<16x1xf32, #tpu.memory_space<vmem>>, vector<16x1xf32>,
    %c0_i32_27 = arith.constant 0 : i32
    %34 = arith.cmpi eq, %arg3, %c0_i32_27 : i32
    %35 = arith.extui %34 : i1 to i32
    %c0_i32_28 = arith.constant 0 : i32
    %36 = arith.cmpi ne, %35, %c0_i32_28 : i32
    scf.if %36 {
      %c0_29 = arith.constant 0 : index
      %c0_30 = arith.constant 0 : index
      %37 = vector.load %arg10[%c0_29, %c0_30] : memref<16x16xf32, #tpu.memory_space<vmem>>, vector<16x16xf32>
      %c0_31 = arith.constant 0 : index
      %c0_32 = arith.constant 0 : index
      %38 = vector.load %arg9[%c0_31, %c0_32] : memref<16x1xf32, #tpu.memory_space<vmem>>, vector<16x1xf32>
      %39 = tpu.reciprocal %38 {approx = true} : vector<16x1xf32> -> vector<16x1xf32>
      %40 = vector.broadcast %39 : vector<16x1xf32> to vector<16x16xf32>
      %41 = arith.mulf %37, %40 : vector<16x16xf32>
      %42 = vector.shape_cast %41 : vector<16x16xf32> to vector<2x8x16xf32>
      %43 = arith.truncf %42 : vector<2x8x16xf32> to vector<2x8x16xbf16>
      %c0_33 = arith.constant 0 : index
      %c0_34 = arith.constant 0 : index
      %c0_35 = arith.constant 0 : index
      %c0_36 = arith.constant 0 : index
      %44 = vector.load %arg7[%c0_33, %c0_34, %c0_35, %c0_36] : memref<1x2x8x16xbf16, #tpu.memory_space<vmem>>, vector<1x2x8x16xbf16>
      %45 = vector.shape_cast %44 : vector<1x2x8x16xbf16> to vector<2x8x16xbf16>
      %46 = vector.shape_cast %43 : vector<2x8x16xbf16> to vector<1x2x8x16xbf16>
      tpu.vector_store %arg7[%c0_33, %c0_34, %c0_35, %c0_36], %46 {strides = array<i32>} : memref<1x2x8x16xbf16, #tpu.memory_space<vmem>>, vector<1x2x8x16xbf16>,
    } else {
    }
    return
  }
  func.func @transform_0(%arg0: i32, %arg1: i32, %arg2: i32, %arg3: i32) -> (i32, i32, i32, i32) {
    %c0_i32 = arith.constant 0 : i32
    %c0_i32_0 = arith.constant 0 : i32
    return %arg0, %arg1, %arg2, %c0_i32 : i32, i32, i32, i32
  }
  func.func @transform_1(%arg0: i32, %arg1: i32, %arg2: i32, %arg3: i32) -> (i32, i32, i32, i32) {
    %c0_i32 = arith.constant 0 : i32
    %c0_i32_0 = arith.constant 0 : i32
    return %arg0, %arg1, %arg3, %c0_i32 : i32, i32, i32, i32
  }
  func.func @transform_2(%arg0: i32, %arg1: i32, %arg2: i32, %arg3: i32) -> (i32, i32, i32, i32) {
    %c0_i32 = arith.constant 0 : i32
    %c0_i32_0 = arith.constant 0 : i32
    return %arg0, %arg1, %arg3, %c0_i32 : i32, i32, i32, i32
  }
  func.func @transform_3(%arg0: i32, %arg1: i32, %arg2: i32, %arg3: i32) -> (i32, i32, i32, i32) {
    %c0_i32 = arith.constant 0 : i32
    %c0_i32_0 = arith.constant 0 : i32
    return %arg0, %arg1, %arg2, %c0_i32 : i32, i32, i32, i32
  }
}

module attributes {stable_mosaic.version = 11 : i64} {
  func.func @_gemma_mlp_kernel(%arg0: i32, %arg1: i32, %arg2: memref<16x32xbf16, #tpu.memory_space<vmem>>, %arg3: memref<1x32xf32, #tpu.memory_space<vmem>>, %arg4: memref<32x64xbf16, #tpu.memory_space<vmem>>, %arg5: memref<32x64xbf16, #tpu.memory_space<vmem>>, %arg6: memref<64x32xbf16, #tpu.memory_space<vmem>>, %arg7: memref<16x32xbf16, #tpu.memory_space<vmem>>, %arg8: memref<16x32xbf16, #tpu.memory_space<vmem>>, %arg9: memref<16x32xf32, #tpu.memory_space<vmem>>) attributes {dimension_semantics = [#tpu.dimension_semantics<parallel>, #tpu.dimension_semantics<arbitrary>], iteration_bounds = array<i64: 1, 1>, scalar_prefetch = 0 : i64, scratch_operands = 2 : i64, tpu.core_type = #tpu.core_type<tc>, window_params = [{transform_indices = @transform_0, window_bounds = array<i64: 16, 32>}, {pipeline_mode = #tpu.pipeline_mode<synchronous>, transform_indices = @transform_1, window_bounds = array<i64: 1, 32>}, {transform_indices = @transform_2, window_bounds = array<i64: 32, 64>}, {transform_indices = @transform_3, window_bounds = array<i64: 32, 64>}, {transform_indices = @transform_4, window_bounds = array<i64: 64, 32>}, {transform_indices = @transform_5, window_bounds = array<i64: 16, 32>}]} {
    %c0_i32 = arith.constant 0 : i32
    %0 = arith.cmpi eq, %arg1, %c0_i32 : i32
    %1 = arith.extui %0 : i1 to i32
    %c0_i32_0 = arith.constant 0 : i32
    %2 = arith.cmpi ne, %1, %c0_i32_0 : i32
    scf.if %2 {
      %c0_20 = arith.constant 0 : index
      %c0_21 = arith.constant 0 : index
      %31 = vector.load %arg2[%c0_20, %c0_21] : memref<16x32xbf16, #tpu.memory_space<vmem>>, vector<16x32xbf16>
      %32 = arith.extf %31 : vector<16x32xbf16> to vector<16x32xf32>
      %33 = arith.mulf %32, %32 : vector<16x32xf32>
      %cst_22 = arith.constant dense<0.000000e+00> : vector<16xf32>
      %34 = vector.multi_reduction <add>, %33, %cst_22 [1] : vector<16x32xf32> to vector<16xf32>
      %35 = vector.shape_cast %34 : vector<16xf32> to vector<16x1xf32>
      %cst_23 = arith.constant 3.200000e+01 : f32
      %36 = vector.broadcast %cst_23 : f32 to vector<16x1xf32>
      %37 = arith.divf %35, %36 : vector<16x1xf32>
      %cst_24 = arith.constant 9.99999997E-7 : f32
      %38 = vector.broadcast %cst_24 : f32 to vector<16x1xf32>
      %39 = arith.addf %37, %38 : vector<16x1xf32>
      %40 = math.rsqrt %39 : vector<16x1xf32>
      %41 = vector.broadcast %40 : vector<16x1xf32> to vector<16x32xf32>
      %42 = arith.mulf %32, %41 : vector<16x32xf32>
      %c0_25 = arith.constant 0 : index
      %c0_26 = arith.constant 0 : index
      %43 = vector.load %arg3[%c0_25, %c0_26] : memref<1x32xf32, #tpu.memory_space<vmem>>, vector<1x32xf32>
      %cst_27 = arith.constant 1.000000e+00 : f32
      %44 = vector.broadcast %cst_27 : f32 to vector<1x32xf32>
      %45 = arith.addf %44, %43 : vector<1x32xf32>
      %46 = vector.broadcast %45 : vector<1x32xf32> to vector<16x32xf32>
      %47 = arith.mulf %42, %46 : vector<16x32xf32>
      %48 = arith.truncf %47 : vector<16x32xf32> to vector<16x32xbf16>
      %c0_28 = arith.constant 0 : index
      %c0_29 = arith.constant 0 : index
      %49 = vector.load %arg8[%c0_28, %c0_29] : memref<16x32xbf16, #tpu.memory_space<vmem>>, vector<16x32xbf16>
      tpu.vector_store %arg8[%c0_28, %c0_29], %48 {strides = array<i32>} : memref<16x32xbf16, #tpu.memory_space<vmem>>, vector<16x32xbf16>,
      %cst_30 = arith.constant 0.000000e+00 : f32
      %50 = vector.broadcast %cst_30 : f32 to vector<16x32xf32>
      %c0_31 = arith.constant 0 : index
      %c0_32 = arith.constant 0 : index
      %51 = vector.load %arg9[%c0_31, %c0_32] : memref<16x32xf32, #tpu.memory_space<vmem>>, vector<16x32xf32>
      tpu.vector_store %arg9[%c0_31, %c0_32], %50 {strides = array<i32>} : memref<16x32xf32, #tpu.memory_space<vmem>>, vector<16x32xf32>,
    } else {
    }
    %c0 = arith.constant 0 : index
    %c0_1 = arith.constant 0 : index
    %3 = vector.load %arg8[%c0, %c0_1] : memref<16x32xbf16, #tpu.memory_space<vmem>>, vector<16x32xbf16>
    %c0_2 = arith.constant 0 : index
    %c0_3 = arith.constant 0 : index
    %4 = vector.load %arg4[%c0_2, %c0_3] : memref<32x64xbf16, #tpu.memory_space<vmem>>, vector<32x64xbf16>
    %cst = arith.constant dense<0.000000e+00> : vector<16x64xf32>
    %5 = tpu.matmul %3, %4, %cst {dimension_numbers = #tpu.dot_dimension_numbers<[1], [0], [0], [1], [0, 0, 1, 1], [], []>} : vector<16x32xbf16>, vector<32x64xbf16>, vector<16x64xf32> -> vector<16x64xf32>
    %c0_4 = arith.constant 0 : index
    %c0_5 = arith.constant 0 : index
    %6 = vector.load %arg5[%c0_4, %c0_5] : memref<32x64xbf16, #tpu.memory_space<vmem>>, vector<32x64xbf16>
    %cst_6 = arith.constant dense<0.000000e+00> : vector<16x64xf32>
    %7 = tpu.matmul %3, %6, %cst_6 {dimension_numbers = #tpu.dot_dimension_numbers<[1], [0], [0], [1], [0, 0, 1, 1], [], []>} : vector<16x32xbf16>, vector<32x64xbf16>, vector<16x64xf32> -> vector<16x64xf32>
    %cst_7 = arith.constant 5.000000e-01 : f32
    %8 = vector.broadcast %cst_7 : f32 to vector<16x64xf32>
    %9 = arith.mulf %8, %5 : vector<16x64xf32>
    %cst_8 = arith.constant 4.471500e-02 : f32
    %10 = vector.broadcast %cst_8 : f32 to vector<16x64xf32>
    %11 = arith.mulf %10, %5 : vector<16x64xf32>
    %12 = arith.mulf %11, %5 : vector<16x64xf32>
    %13 = arith.mulf %12, %5 : vector<16x64xf32>
    %14 = arith.addf %5, %13 : vector<16x64xf32>
    %cst_9 = arith.constant 0.797884583 : f32
    %15 = vector.broadcast %cst_9 : f32 to vector<16x64xf32>
    %16 = arith.mulf %15, %14 : vector<16x64xf32>
    %17 = math.tanh %16 : vector<16x64xf32>
    %cst_10 = arith.constant 1.000000e+00 : f32
    %18 = vector.broadcast %cst_10 : f32 to vector<16x64xf32>
    %19 = arith.addf %18, %17 : vector<16x64xf32>
    %20 = arith.mulf %9, %19 : vector<16x64xf32>
    %21 = arith.mulf %20, %7 : vector<16x64xf32>
    %22 = arith.truncf %21 : vector<16x64xf32> to vector<16x64xbf16>
    %c0_11 = arith.constant 0 : index
    %c0_12 = arith.constant 0 : index
    %23 = vector.load %arg9[%c0_11, %c0_12] : memref<16x32xf32, #tpu.memory_space<vmem>>, vector<16x32xf32>
    %c0_13 = arith.constant 0 : index
    %c0_14 = arith.constant 0 : index
    %24 = vector.load %arg6[%c0_13, %c0_14] : memref<64x32xbf16, #tpu.memory_space<vmem>>, vector<64x32xbf16>
    %cst_15 = arith.constant dense<0.000000e+00> : vector<16x32xf32>
    %25 = tpu.matmul %22, %24, %cst_15 {dimension_numbers = #tpu.dot_dimension_numbers<[1], [0], [0], [1], [0, 0, 1, 1], [], []>} : vector<16x64xbf16>, vector<64x32xbf16>, vector<16x32xf32> -> vector<16x32xf32>
    %26 = arith.addf %23, %25 : vector<16x32xf32>
    %c0_16 = arith.constant 0 : index
    %c0_17 = arith.constant 0 : index
    %27 = vector.load %arg9[%c0_16, %c0_17] : memref<16x32xf32, #tpu.memory_space<vmem>>, vector<16x32xf32>
    tpu.vector_store %arg9[%c0_16, %c0_17], %26 {strides = array<i32>} : memref<16x32xf32, #tpu.memory_space<vmem>>, vector<16x32xf32>,
    %c0_i32_18 = arith.constant 0 : i32
    %28 = arith.cmpi eq, %arg1, %c0_i32_18 : i32
    %29 = arith.extui %28 : i1 to i32
    %c0_i32_19 = arith.constant 0 : i32
    %30 = arith.cmpi ne, %29, %c0_i32_19 : i32
    scf.if %30 {
      %c0_20 = arith.constant 0 : index
      %c0_21 = arith.constant 0 : index
      %31 = vector.load %arg9[%c0_20, %c0_21] : memref<16x32xf32, #tpu.memory_space<vmem>>, vector<16x32xf32>
      %c0_22 = arith.constant 0 : index
      %c0_23 = arith.constant 0 : index
      %32 = vector.load %arg2[%c0_22, %c0_23] : memref<16x32xbf16, #tpu.memory_space<vmem>>, vector<16x32xbf16>
      %33 = arith.extf %32 : vector<16x32xbf16> to vector<16x32xf32>
      %34 = arith.addf %31, %33 : vector<16x32xf32>
      %35 = arith.truncf %34 : vector<16x32xf32> to vector<16x32xbf16>
      %c0_24 = arith.constant 0 : index
      %c0_25 = arith.constant 0 : index
      %36 = vector.load %arg7[%c0_24, %c0_25] : memref<16x32xbf16, #tpu.memory_space<vmem>>, vector<16x32xbf16>
      tpu.vector_store %arg7[%c0_24, %c0_25], %35 {strides = array<i32>} : memref<16x32xbf16, #tpu.memory_space<vmem>>, vector<16x32xbf16>,
    } else {
    }
    return
  }
  func.func @transform_0(%arg0: i32, %arg1: i32) -> (i32, i32) {
    %c0_i32 = arith.constant 0 : i32
    %c0_i32_0 = arith.constant 0 : i32
    return %arg0, %c0_i32 : i32, i32
  }
  func.func @transform_1(%arg0: i32, %arg1: i32) -> (i32, i32) {
    %c0_i32 = arith.constant 0 : i32
    %c0_i32_0 = arith.constant 0 : i32
    %c0_i32_1 = arith.constant 0 : i32
    return %c0_i32, %c0_i32_0 : i32, i32
  }
  func.func @transform_2(%arg0: i32, %arg1: i32) -> (i32, i32) {
    %c0_i32 = arith.constant 0 : i32
    %c0_i32_0 = arith.constant 0 : i32
    return %c0_i32, %arg1 : i32, i32
  }
  func.func @transform_3(%arg0: i32, %arg1: i32) -> (i32, i32) {
    %c0_i32 = arith.constant 0 : i32
    %c0_i32_0 = arith.constant 0 : i32
    return %c0_i32, %arg1 : i32, i32
  }
  func.func @transform_4(%arg0: i32, %arg1: i32) -> (i32, i32) {
    %c0_i32 = arith.constant 0 : i32
    %c0_i32_0 = arith.constant 0 : i32
    return %arg1, %c0_i32 : i32, i32
  }
  func.func @transform_5(%arg0: i32, %arg1: i32) -> (i32, i32) {
    %c0_i32 = arith.constant 0 : i32
    %c0_i32_0 = arith.constant 0 : i32
    return %arg0, %c0_i32 : i32, i32
  }
}

module attributes {stable_mosaic.version = 11 : i64} {
  func.func @_rms_mm_kernel(%arg0: i32, %arg1: i32, %arg2: memref<16x32xbf16, #tpu.memory_space<vmem>>, %arg3: memref<1x32xf32, #tpu.memory_space<vmem>>, %arg4: memref<32x64xbf16, #tpu.memory_space<vmem>>, %arg5: memref<16x64xf32, #tpu.memory_space<vmem>>, %arg6: memref<16x32xbf16, #tpu.memory_space<vmem>>) attributes {dimension_semantics = [#tpu.dimension_semantics<parallel>, #tpu.dimension_semantics<arbitrary>], iteration_bounds = array<i64: 1, 1>, scalar_prefetch = 0 : i64, scratch_operands = 1 : i64, tpu.core_type = #tpu.core_type<tc>, window_params = [{transform_indices = @transform_0, window_bounds = array<i64: 16, 32>}, {pipeline_mode = #tpu.pipeline_mode<synchronous>, transform_indices = @transform_1, window_bounds = array<i64: 1, 32>}, {transform_indices = @transform_2, window_bounds = array<i64: 32, 64>}, {transform_indices = @transform_3, window_bounds = array<i64: 16, 64>}]} {
    %c0_i32 = arith.constant 0 : i32
    %0 = arith.cmpi eq, %arg1, %c0_i32 : i32
    %1 = arith.extui %0 : i1 to i32
    %c0_i32_0 = arith.constant 0 : i32
    %2 = arith.cmpi ne, %1, %c0_i32_0 : i32
    scf.if %2 {
      %c0_6 = arith.constant 0 : index
      %c0_7 = arith.constant 0 : index
      %7 = vector.load %arg2[%c0_6, %c0_7] : memref<16x32xbf16, #tpu.memory_space<vmem>>, vector<16x32xbf16>
      %8 = arith.extf %7 : vector<16x32xbf16> to vector<16x32xf32>
      %9 = arith.mulf %8, %8 : vector<16x32xf32>
      %cst_8 = arith.constant dense<0.000000e+00> : vector<16xf32>
      %10 = vector.multi_reduction <add>, %9, %cst_8 [1] : vector<16x32xf32> to vector<16xf32>
      %11 = vector.shape_cast %10 : vector<16xf32> to vector<16x1xf32>
      %cst_9 = arith.constant 3.200000e+01 : f32
      %12 = vector.broadcast %cst_9 : f32 to vector<16x1xf32>
      %13 = arith.divf %11, %12 : vector<16x1xf32>
      %cst_10 = arith.constant 9.99999997E-7 : f32
      %14 = vector.broadcast %cst_10 : f32 to vector<16x1xf32>
      %15 = arith.addf %13, %14 : vector<16x1xf32>
      %16 = math.rsqrt %15 : vector<16x1xf32>
      %17 = vector.broadcast %16 : vector<16x1xf32> to vector<16x32xf32>
      %18 = arith.mulf %8, %17 : vector<16x32xf32>
      %c0_11 = arith.constant 0 : index
      %c0_12 = arith.constant 0 : index
      %19 = vector.load %arg3[%c0_11, %c0_12] : memref<1x32xf32, #tpu.memory_space<vmem>>, vector<1x32xf32>
      %cst_13 = arith.constant 1.000000e+00 : f32
      %20 = vector.broadcast %cst_13 : f32 to vector<1x32xf32>
      %21 = arith.addf %20, %19 : vector<1x32xf32>
      %22 = vector.broadcast %21 : vector<1x32xf32> to vector<16x32xf32>
      %23 = arith.mulf %18, %22 : vector<16x32xf32>
      %24 = arith.truncf %23 : vector<16x32xf32> to vector<16x32xbf16>
      %c0_14 = arith.constant 0 : index
      %c0_15 = arith.constant 0 : index
      %25 = vector.load %arg6[%c0_14, %c0_15] : memref<16x32xbf16, #tpu.memory_space<vmem>>, vector<16x32xbf16>
      tpu.vector_store %arg6[%c0_14, %c0_15], %24 {strides = array<i32>} : memref<16x32xbf16, #tpu.memory_space<vmem>>, vector<16x32xbf16>,
    } else {
    }
    %c0 = arith.constant 0 : index
    %c0_1 = arith.constant 0 : index
    %3 = vector.load %arg6[%c0, %c0_1] : memref<16x32xbf16, #tpu.memory_space<vmem>>, vector<16x32xbf16>
    %c0_2 = arith.constant 0 : index
    %c0_3 = arith.constant 0 : index
    %4 = vector.load %arg4[%c0_2, %c0_3] : memref<32x64xbf16, #tpu.memory_space<vmem>>, vector<32x64xbf16>
    %cst = arith.constant dense<0.000000e+00> : vector<16x64xf32>
    %5 = tpu.matmul %3, %4, %cst {dimension_numbers = #tpu.dot_dimension_numbers<[1], [0], [0], [1], [0, 0, 1, 1], [], []>} : vector<16x32xbf16>, vector<32x64xbf16>, vector<16x64xf32> -> vector<16x64xf32>
    %c0_4 = arith.constant 0 : index
    %c0_5 = arith.constant 0 : index
    %6 = vector.load %arg5[%c0_4, %c0_5] : memref<16x64xf32, #tpu.memory_space<vmem>>, vector<16x64xf32>
    tpu.vector_store %arg5[%c0_4, %c0_5], %5 {strides = array<i32>} : memref<16x64xf32, #tpu.memory_space<vmem>>, vector<16x64xf32>,
    return
  }
  func.func @transform_0(%arg0: i32, %arg1: i32) -> (i32, i32) {
    %c0_i32 = arith.constant 0 : i32
    %c0_i32_0 = arith.constant 0 : i32
    return %arg0, %c0_i32 : i32, i32
  }
  func.func @transform_1(%arg0: i32, %arg1: i32) -> (i32, i32) {
    %c0_i32 = arith.constant 0 : i32
    %c0_i32_0 = arith.constant 0 : i32
    %c0_i32_1 = arith.constant 0 : i32
    return %c0_i32, %c0_i32_0 : i32, i32
  }
  func.func @transform_2(%arg0: i32, %arg1: i32) -> (i32, i32) {
    %c0_i32 = arith.constant 0 : i32
    %c0_i32_0 = arith.constant 0 : i32
    return %c0_i32, %arg1 : i32, i32
  }
  func.func @transform_3(%arg0: i32, %arg1: i32) -> (i32, i32) {
    %c0_i32 = arith.constant 0 : i32
    return %arg0, %arg1 : i32, i32
  }
}

module attributes {stable_mosaic.version = 11 : i64} {
  func.func @_mm_kernel(%arg0: i32, %arg1: i32, %arg2: i32, %arg3: memref<16x64xbf16, #tpu.memory_space<vmem>>, %arg4: memref<64x32xbf16, #tpu.memory_space<vmem>>, %arg5: memref<16x32xbf16, #tpu.memory_space<vmem>>, %arg6: memref<16x32xbf16, #tpu.memory_space<vmem>>, %arg7: memref<16x32xf32, #tpu.memory_space<vmem>>) attributes {dimension_semantics = [#tpu.dimension_semantics<parallel>, #tpu.dimension_semantics<parallel>, #tpu.dimension_semantics<arbitrary>], iteration_bounds = array<i64: 1, 1, 1>, scalar_prefetch = 0 : i64, scratch_operands = 1 : i64, tpu.core_type = #tpu.core_type<tc>, window_params = [{transform_indices = @transform_0, window_bounds = array<i64: 16, 64>}, {transform_indices = @transform_1, window_bounds = array<i64: 64, 32>}, {transform_indices = @transform_2, window_bounds = array<i64: 16, 32>}, {transform_indices = @transform_3, window_bounds = array<i64: 16, 32>}]} {
    %c0_i32 = arith.constant 0 : i32
    %0 = arith.cmpi eq, %arg2, %c0_i32 : i32
    %1 = arith.extui %0 : i1 to i32
    %c0_i32_0 = arith.constant 0 : i32
    %2 = arith.cmpi ne, %1, %c0_i32_0 : i32
    scf.if %2 {
      %cst_10 = arith.constant 0.000000e+00 : f32
      %12 = vector.broadcast %cst_10 : f32 to vector<16x32xf32>
      %c0_11 = arith.constant 0 : index
      %c0_12 = arith.constant 0 : index
      %13 = vector.load %arg7[%c0_11, %c0_12] : memref<16x32xf32, #tpu.memory_space<vmem>>, vector<16x32xf32>
      tpu.vector_store %arg7[%c0_11, %c0_12], %12 {strides = array<i32>} : memref<16x32xf32, #tpu.memory_space<vmem>>, vector<16x32xf32>,
    } else {
    }
    %c0 = arith.constant 0 : index
    %c0_1 = arith.constant 0 : index
    %3 = vector.load %arg7[%c0, %c0_1] : memref<16x32xf32, #tpu.memory_space<vmem>>, vector<16x32xf32>
    %c0_2 = arith.constant 0 : index
    %c0_3 = arith.constant 0 : index
    %4 = vector.load %arg3[%c0_2, %c0_3] : memref<16x64xbf16, #tpu.memory_space<vmem>>, vector<16x64xbf16>
    %c0_4 = arith.constant 0 : index
    %c0_5 = arith.constant 0 : index
    %5 = vector.load %arg4[%c0_4, %c0_5] : memref<64x32xbf16, #tpu.memory_space<vmem>>, vector<64x32xbf16>
    %cst = arith.constant dense<0.000000e+00> : vector<16x32xf32>
    %6 = tpu.matmul %4, %5, %cst {dimension_numbers = #tpu.dot_dimension_numbers<[1], [0], [0], [1], [0, 0, 1, 1], [], []>} : vector<16x64xbf16>, vector<64x32xbf16>, vector<16x32xf32> -> vector<16x32xf32>
    %7 = arith.addf %3, %6 : vector<16x32xf32>
    %c0_6 = arith.constant 0 : index
    %c0_7 = arith.constant 0 : index
    %8 = vector.load %arg7[%c0_6, %c0_7] : memref<16x32xf32, #tpu.memory_space<vmem>>, vector<16x32xf32>
    tpu.vector_store %arg7[%c0_6, %c0_7], %7 {strides = array<i32>} : memref<16x32xf32, #tpu.memory_space<vmem>>, vector<16x32xf32>,
    %c0_i32_8 = arith.constant 0 : i32
    %9 = arith.cmpi eq, %arg2, %c0_i32_8 : i32
    %10 = arith.extui %9 : i1 to i32
    %c0_i32_9 = arith.constant 0 : i32
    %11 = arith.cmpi ne, %10, %c0_i32_9 : i32
    scf.if %11 {
      %c0_10 = arith.constant 0 : index
      %c0_11 = arith.constant 0 : index
      %12 = vector.load %arg7[%c0_10, %c0_11] : memref<16x32xf32, #tpu.memory_space<vmem>>, vector<16x32xf32>
      %c0_12 = arith.constant 0 : index
      %c0_13 = arith.constant 0 : index
      %13 = vector.load %arg5[%c0_12, %c0_13] : memref<16x32xbf16, #tpu.memory_space<vmem>>, vector<16x32xbf16>
      %14 = arith.extf %13 : vector<16x32xbf16> to vector<16x32xf32>
      %15 = arith.addf %12, %14 : vector<16x32xf32>
      %16 = arith.truncf %15 : vector<16x32xf32> to vector<16x32xbf16>
      %c0_14 = arith.constant 0 : index
      %c0_15 = arith.constant 0 : index
      %17 = vector.load %arg6[%c0_14, %c0_15] : memref<16x32xbf16, #tpu.memory_space<vmem>>, vector<16x32xbf16>
      tpu.vector_store %arg6[%c0_14, %c0_15], %16 {strides = array<i32>} : memref<16x32xbf16, #tpu.memory_space<vmem>>, vector<16x32xbf16>,
    } else {
    }
    return
  }
  func.func @transform_0(%arg0: i32, %arg1: i32, %arg2: i32) -> (i32, i32) {
    %c0_i32 = arith.constant 0 : i32
    return %arg0, %arg2 : i32, i32
  }
  func.func @transform_1(%arg0: i32, %arg1: i32, %arg2: i32) -> (i32, i32) {
    %c0_i32 = arith.constant 0 : i32
    return %arg2, %arg1 : i32, i32
  }
  func.func @transform_2(%arg0: i32, %arg1: i32, %arg2: i32) -> (i32, i32) {
    %c0_i32 = arith.constant 0 : i32
    return %arg0, %arg1 : i32, i32
  }
  func.func @transform_3(%arg0: i32, %arg1: i32, %arg2: i32) -> (i32, i32) {
    %c0_i32 = arith.constant 0 : i32
    return %arg0, %arg1 : i32, i32
  }
}

</mosaic_0001>

<llo_original>
// kernel: paligemma_forward.21
$region0: #{paligemma_forward.21}
  #allocation0 [shape = 'u32[]', space=smem, size = 0x4, offset = 0x4, fixed_abs, tag = 'smem constant byte address 0x4 - core index']
  #allocation1 [shape = 'u32[144,128]{1,0:T(1,128)}', space=vmem, size = 0x12000, scoped, tag = 'internal scratch']
  #allocation2 [shape = 'f32[4,1]{1,0:T(4,128)}', space=vmem, size = 0x800, scoped, tag = 'scratch operand']
  #allocation3 [shape = 'f32[4,1]{1,0:T(4,128)}', space=vmem, size = 0x800, scoped, tag = 'scratch operand']
  #allocation4 [shape = 'f32[4,8]{1,0:T(4,128)}', space=vmem, size = 0x800, scoped, tag = 'scratch operand']
  %s0 = inlined_call_operand.vmem [shape: bf16[2,4,4,8], index: 0, kind: input, shape index: {}]
  %s1 = inlined_call_operand.vmem [shape: bf16[2,4,4,8], index: 1, kind: input, shape index: {}]
  %s2 = inlined_call_operand.vmem [shape: bf16[2,4,4,8], index: 2, kind: input, shape index: {}]
  %s3 = inlined_call_operand.vmem [shape: bf16[2,4,4,8], index: 3, kind: output, shape index: {}]
  %s4 = sld [smem:[#allocation0]]
  $region53: #{paligemma_forward.21} parent=0
    _
  %s6 = ssub.s32 1, %s4
  %s7 = scalar_select 0, %s6, %s4
  loop: start=0, step=1, limit=10
  $region2: #{paligemma_forward.21} parent=0 // loop_pre_header
    _
  $region3: #{paligemma_forward.21} parent=0 // loop_header
    %s9 = sphi 0, %s13
    %p10 = scmp.ge.s32.totalorder %s9, 10
    %s16 = sphi 0, %s42
    %s17 = sphi 0, %s38
    %s18 = sphi 0, %s34
    %s19 = sphi 0, %s30
    %s20 = sphi 0, %s16
    %s21 = sphi 0, %s17
    %s22 = sphi 0, %s18
    %s23 = sphi 0, %s19
    %s24 = sphi 0, %s20
    %s25 = sphi 0, %s21
    %s26 = sphi 0, %s22
    %s27 = sphi 0, %s23
    %s49 = sphi 0, %s51
    %s52 = sphi 0, %s49
    %s53 = sphi 0, %s52
    %s69 = sphi 0, %s53
    %s79 = sphi 0, %s81
    %s82 = sphi 0, %s79
    %s83 = sphi 0, %s82
    %s99 = sphi 0, %s83
    %s109 = sphi 0, %s111
    %s112 = sphi 0, %s109
    %s113 = sphi 0, %s112
    %s129 = sphi 0, %s113
    %s139 = sphi 0, %s141
    %s142 = sphi 0, %s139
    %s143 = sphi 0, %s142
    %s159 = sphi 0, %s143
  $region4: #{paligemma_forward.21} parent=0 // loop_header_branch
    %12 = sbr.rel (%p10) target = $region8
  $region5: #{paligemma_forward.21} parent=0 // loop_body
    %s14 = ssub.s32 %s9, 1
    %s15 = ssub.s32 %s9, 2
    %s28 = sadd.s32 1, %s19
    %p29 = scmp.ge.s32.totalorder %s28, 1
    %s30 = scalar_select %p29, 0, %s28
    %s31 = sadd.s32 1, %s18
    %s32 = scalar_select %p29, %s31, %s18
    %p33 = scmp.ge.s32.totalorder %s32, 1
    %s34 = scalar_select %p33, 0, %s32
    %s35 = sadd.s32 1, %s17
    %s36 = scalar_select %p33, %s35, %s17
    %p37 = scmp.ge.s32.totalorder %s36, 4
    %s38 = scalar_select %p37, 0, %s36
    %s39 = sadd.s32 1, %s16
    %s40 = scalar_select %p37, %s39, %s16
    %p41 = scmp.ge.s32.totalorder %s40, 2
    %s42 = scalar_select %p41, 0, %s40
    %s43 = ssub.s32 %s16, %s42
    %s44 = ssub.s32 %s17, %s38
    %s45 = sor.u32 %s43, %s44
    %s46 = ssub.s32 %s18, %s34
    %s47 = sor.u32 %s45, %s46
    %p48 = scmp.eq.s32.totalorder %s47, 0
    %s50 = sadd.s32 %s49, 1
    %s51 = scalar_select %p48, %s49, %s50
    %p54 = pneg %p48
    %p55 = scmp.eq.s32.totalorder %s9, 7
    %p56 = por %p54, %p55
    %p57 = scmp.ne.s32.totalorder %s49, %s52
    %p58 = scmp.eq.s32.totalorder %s9, 0
    %p59 = por %p57, %p58
    %p60 = scmp.ne.s32.totalorder %s49, %s52
    %p61 = scmp.eq.s32.totalorder %s14, 7
    %p62 = por %p60, %p61
    %p63 = scmp.ne.s32.totalorder %s52, %s53
    %p64 = scmp.eq.s32.totalorder %s14, 0
    %p65 = por %p63, %p64
    %p66 = scmp.ne.s32.totalorder %s52, %s53
    %p67 = scmp.eq.s32.totalorder %s15, 7
    %p68 = por %p66, %p67
    %p70 = scmp.ne.s32.totalorder %s53, %s69
    %p71 = scmp.eq.s32.totalorder %s15, 0
    %p72 = por %p70, %p71
    %s73 = ssub.s32 %s16, %s42
    %s74 = ssub.s32 %s17, %s38
    %s75 = sor.u32 %s73, %s74
    %s76 = ssub.s32 %s19, %s30
    %s77 = sor.u32 %s75, %s76
    %p78 = scmp.eq.s32.totalorder %s77, 0
    %s80 = sadd.s32 %s79, 1
    %s81 = scalar_select %p78, %s79, %s80
    %p84 = pneg %p78
    %p85 = scmp.eq.s32.totalorder %s9, 7
    %p86 = por %p84, %p85
    %p87 = scmp.ne.s32.totalorder %s79, %s82
    %p88 = scmp.eq.s32.totalorder %s9, 0
    %p89 = por %p87, %p88
    %p90 = scmp.ne.s32.totalorder %s79, %s82
    %p91 = scmp.eq.s32.totalorder %s14, 7
    %p92 = por %p90, %p91
    %p93 = scmp.ne.s32.totalorder %s82, %s83
    %p94 = scmp.eq.s32.totalorder %s14, 0
    %p95 = por %p93, %p94
    %p96 = scmp.ne.s32.totalorder %s82, %s83
    %p97 = scmp.eq.s32.totalorder %s15, 7
    %p98 = por %p96, %p97
    %p100 = scmp.ne.s32.totalorder %s83, %s99
    %p101 = scmp.eq.s32.totalorder %s15, 0
    %p102 = por %p100, %p101
    %s103 = ssub.s32 %s16, %s42
    %s104 = ssub.s32 %s17, %s38
    %s105 = sor.u32 %s103, %s104
    %s106 = ssub.s32 %s19, %s30
    %s107 = sor.u32 %s105, %s106
    %p108 = scmp.eq.s32.totalorder %s107, 0
    %s110 = sadd.s32 %s109, 1
    %s111 = scalar_select %p108, %s109, %s110
    %p114 = pneg %p108
    %p115 = scmp.eq.s32.totalorder %s9, 7
    %p116 = por %p114, %p115
    %p117 = scmp.ne.s32.totalorder %s109, %s112
    %p118 = scmp.eq.s32.totalorder %s9, 0
    %p119 = por %p117, %p118
    %p120 = scmp.ne.s32.totalorder %s109, %s112
    %p121 = scmp.eq.s32.totalorder %s14, 7
    %p122 = por %p120, %p121
    %p123 = scmp.ne.s32.totalorder %s112, %s113
    %p124 = scmp.eq.s32.totalorder %s14, 0
    %p125 = por %p123, %p124
    %p126 = scmp.ne.s32.totalorder %s112, %s113
    %p127 = scmp.eq.s32.totalorder %s15, 7
    %p128 = por %p126, %p127
    %p130 = scmp.ne.s32.totalorder %s113, %s129
    %p131 = scmp.eq.s32.totalorder %s15, 0
    %p132 = por %p130, %p131
    %s133 = ssub.s32 %s16, %s42
    %s134 = ssub.s32 %s17, %s38
    %s135 = sor.u32 %s133, %s134
    %s136 = ssub.s32 %s18, %s34
    %s137 = sor.u32 %s135, %s136
    %p138 = scmp.eq.s32.totalorder %s137, 0
    %s140 = sadd.s32 %s139, 1
    %s141 = scalar_select %p138, %s139, %s140
    %p144 = pneg %p138
    %p145 = scmp.eq.s32.totalorder %s9, 7
    %p146 = por %p144, %p145
    %p147 = scmp.ne.s32.totalorder %s139, %s142
    %p148 = scmp.eq.s32.totalorder %s9, 0
    %p149 = por %p147, %p148
    %p150 = scmp.ne.s32.totalorder %s139, %s142
    %p151 = scmp.eq.s32.totalorder %s14, 7
    %p152 = por %p150, %p151
    %p153 = scmp.ne.s32.totalorder %s142, %s143
    %p154 = scmp.eq.s32.totalorder %s14, 0
    %p155 = por %p153, %p154
    %p156 = scmp.ne.s32.totalorder %s142, %s143
    %p157 = scmp.eq.s32.totalorder %s15, 7
    %p158 = por %p156, %p157
    %p160 = scmp.ne.s32.totalorder %s143, %s159
    %p161 = scmp.eq.s32.totalorder %s15, 0
    %p162 = por %p160, %p161
    %p163 = scmp.le.s32.totalorder 1, %s9
    %p164 = scmp.lt.s32.totalorder %s9, 9
    %p165 = pnand %p163, %p164
    %p166 = pneg %p165
    // Predicated region
    $region9: #{paligemma_forward.21} parent=5 // pred_check
      _
    $region10: #{paligemma_forward.21} parent=5 // pred_check_branch
      %168 = sbr.rel (%p165) target = $region12
    $region11: #{paligemma_forward.21} parent=5 // pred_region
      %s169 = ssub.s32 %s9, 1
    $region12: #{paligemma_forward.21} parent=5 // pred_fallthru
      _
    %p170 = scmp.lt.s32.totalorder %s9, 8
    // Predicated region
    $region13: #{paligemma_forward.21} parent=5 // pred_check
      %p171 = pneg %p170
    $region14: #{paligemma_forward.21} parent=5 // pred_check_branch
      %173 = sbr.rel (%p171) target = $region16
    $region15: #{paligemma_forward.21} parent=5 // pred_region
      // Predicated region
      $region17: #{paligemma_forward.21} parent=15 // pred_check
        %p174 = pneg %p59
      $region18: #{paligemma_forward.21} parent=15 // pred_check_branch
        %176 = sbr.rel (%p174) target = $region20
      $region19: #{paligemma_forward.21} parent=15 // pred_region
        %p177 = scmp.lt.s32.totalorder %s16, 1
        %s178 = scalar_select %p177, %s16, 1
        %p179 = scmp.lt.s32.totalorder %s17, 3
        %s180 = scalar_select %p179, %s17, 3
        %p181 = scmp.lt.s32.totalorder %s18, 0
        %s182 = scalar_select %p181, %s18, 0
        %s183 = sadd.s32 %s182, %s180
        %s184 = smul.addr %s178, 4
        %s185 = sadd.s32 %s183, %s184
        %s186 = smul.addr %s185, 2
        %s187 = scalar_lea.vmem %s0, %s186
      $region20: #{paligemma_forward.21} parent=15 // pred_fallthru
        _
      // Predicated region
      $region21: #{paligemma_forward.21} parent=15 // pred_check
        %p188 = pneg %p89
      $region22: #{paligemma_forward.21} parent=15 // pred_check_branch
        %190 = sbr.rel (%p188) target = $region24
      $region23: #{paligemma_forward.21} parent=15 // pred_region
        %p191 = scmp.lt.s32.totalorder %s16, 1
        %s192 = scalar_select %p191, %s16, 1
        %p193 = scmp.lt.s32.totalorder %s17, 3
        %s194 = scalar_select %p193, %s17, 3
        %p195 = scmp.lt.s32.totalorder %s19, 0
        %s196 = scalar_select %p195, %s19, 0
        %s197 = sadd.s32 %s196, %s194
        %s198 = smul.addr %s192, 4
        %s199 = sadd.s32 %s197, %s198
        %s200 = smul.addr %s199, 2
        %s201 = scalar_lea.vmem %s1, %s200
      $region24: #{paligemma_forward.21} parent=15 // pred_fallthru
        _
      // Predicated region
      $region25: #{paligemma_forward.21} parent=15 // pred_check
        %p202 = pneg %p119
      $region26: #{paligemma_forward.21} parent=15 // pred_check_branch
        %204 = sbr.rel (%p202) target = $region28
      $region27: #{paligemma_forward.21} parent=15 // pred_region
        %p205 = scmp.lt.s32.totalorder %s16, 1
        %s206 = scalar_select %p205, %s16, 1
        %p207 = scmp.lt.s32.totalorder %s17, 3
        %s208 = scalar_select %p207, %s17, 3
        %p209 = scmp.lt.s32.totalorder %s19, 0
        %s210 = scalar_select %p209, %s19, 0
        %s211 = sadd.s32 %s210, %s208
        %s212 = smul.addr %s206, 4
        %s213 = sadd.s32 %s211, %s212
        %s214 = smul.addr %s213, 2
        %s215 = scalar_lea.vmem %s2, %s214
      $region28: #{paligemma_forward.21} parent=15 // pred_fallthru
        _
    $region16: #{paligemma_forward.21} parent=5 // pred_fallthru
      _
    %p216 = scmp.le.s32.totalorder 1, %s9
    %p217 = scmp.lt.s32.totalorder %s9, 9
    %p218 = pnand %p216, %p217
    %p219 = pneg %p218
    // Predicated region
    $region29: #{paligemma_forward.21} parent=5 // pred_check
      _
    $region30: #{paligemma_forward.21} parent=5 // pred_check_branch
      %221 = sbr.rel (%p218) target = $region32
    $region31: #{paligemma_forward.21} parent=5 // pred_region
      %s222 = ssub.s32 %s9, 1
      %p223 = scmp.lt.s32.totalorder %s20, 1
      %s224 = scalar_select %p223, %s20, 1
      %p225 = scmp.lt.s32.totalorder %s21, 3
      %s226 = scalar_select %p225, %s21, 3
      %p227 = scmp.lt.s32.totalorder %s22, 0
      %s228 = scalar_select %p227, %s22, 0
      %s229 = sadd.s32 %s228, %s226
      %s230 = smul.addr %s224, 4
      %s231 = sadd.s32 %s229, %s230
      %s232 = smul.addr %s231, 2
      %s233 = scalar_lea.vmem %s0, %s232
      %p234 = pneg %p65
      %p235 = pneg %p62
      %p236 = scmp.lt.s32.totalorder %s20, 1
      %s237 = scalar_select %p236, %s20, 1
      %p238 = scmp.lt.s32.totalorder %s21, 3
      %s239 = scalar_select %p238, %s21, 3
      %p240 = scmp.lt.s32.totalorder %s23, 0
      %s241 = scalar_select %p240, %s23, 0
      %s242 = sadd.s32 %s241, %s239
      %s243 = smul.addr %s237, 4
      %s244 = sadd.s32 %s242, %s243
      %s245 = smul.addr %s244, 2
      %s246 = scalar_lea.vmem %s1, %s245
      %p247 = pneg %p95
      %p248 = pneg %p92
      %p249 = scmp.lt.s32.totalorder %s20, 1
      %s250 = scalar_select %p249, %s20, 1
      %p251 = scmp.lt.s32.totalorder %s21, 3
      %s252 = scalar_select %p251, %s21, 3
      %p253 = scmp.lt.s32.totalorder %s23, 0
      %s254 = scalar_select %p253, %s23, 0
      %s255 = sadd.s32 %s254, %s252
      %s256 = smul.addr %s250, 4
      %s257 = sadd.s32 %s255, %s256
      %s258 = smul.addr %s257, 2
      %s259 = scalar_lea.vmem %s2, %s258
      %p260 = pneg %p125
      %p261 = pneg %p122
      %p262 = pneg %p155
      %p263 = pneg %p152
      %p264 = scmp.lt.s32.totalorder %s20, 1
      %s265 = scalar_select %p264, %s20, 1
      %p266 = scmp.lt.s32.totalorder %s21, 3
      %s267 = scalar_select %p266, %s21, 3
      %p268 = scmp.lt.s32.totalorder %s22, 0
      %s269 = scalar_select %p268, %s22, 0
      %s270 = sadd.s32 %s269, %s267
      %s271 = smul.addr %s265, 4
      %s272 = sadd.s32 %s270, %s271
      %s273 = smul.addr %s272, 2
      %s274 = scalar_lea.vmem %s3, %s273
      %p275 = scmp.lt.s32.totalorder %s20, 1
      %s276 = scalar_select %p275, %s20, 1
      %p277 = scmp.lt.s32.totalorder %s21, 3
      %s278 = scalar_select %p277, %s21, 3
      %p279 = scmp.lt.s32.totalorder %s22, 0
      %s280 = scalar_select %p279, %s22, 0
      %s281 = sadd.s32 %s280, %s278
      %s282 = smul.addr %s276, 4
      %s283 = sadd.s32 %s281, %s282
      %s284 = smul.addr %s283, 2
      %s285 = scalar_lea.vmem %s0, %s284
      %p286 = scmp.lt.s32.totalorder %s20, 1
      %s287 = scalar_select %p286, %s20, 1
      %p288 = scmp.lt.s32.totalorder %s21, 3
      %s289 = scalar_select %p288, %s21, 3
      %p290 = scmp.lt.s32.totalorder %s23, 0
      %s291 = scalar_select %p290, %s23, 0
      %s292 = sadd.s32 %s291, %s289
      %s293 = smul.addr %s287, 4
      %s294 = sadd.s32 %s292, %s293
      %s295 = smul.addr %s294, 2
      %s296 = scalar_lea.vmem %s1, %s295
      %p297 = scmp.lt.s32.totalorder %s20, 1
      %s298 = scalar_select %p297, %s20, 1
      %p299 = scmp.lt.s32.totalorder %s21, 3
      %s300 = scalar_select %p299, %s21, 3
      %p301 = scmp.lt.s32.totalorder %s23, 0
      %s302 = scalar_select %p301, %s23, 0
      %s303 = sadd.s32 %s302, %s300
      %s304 = smul.addr %s298, 4
      %s305 = sadd.s32 %s303, %s304
      %s306 = smul.addr %s305, 2
      %s307 = scalar_lea.vmem %s2, %s306
      %p308 = scmp.lt.s32.totalorder %s20, 1
      %s309 = scalar_select %p308, %s20, 1
      %p310 = scmp.lt.s32.totalorder %s21, 3
      %s311 = scalar_select %p310, %s21, 3
      %p312 = scmp.lt.s32.totalorder %s22, 0
      %s313 = scalar_select %p312, %s22, 0
      %s314 = sadd.s32 %s313, %s311
      %s315 = smul.addr %s309, 4
      %s316 = sadd.s32 %s314, %s315
      %s317 = smul.addr %s316, 2
      %s318 = scalar_lea.vmem %s3, %s317
      %p320 = scmp.eq.s32.totalorder %s23, 0
      // Predicated region
      $region33: #{paligemma_forward.21} parent=31 // pred_check
        %p321 = pneg %p320
      $region34: #{paligemma_forward.21} parent=31 // pred_check_branch
        %323 = sbr.rel (%p321) target = $region36
      $region35: #{paligemma_forward.21} parent=31 // pred_region
        %vm324 = vcmask 3072
        %325 = vst.msk [vmem:[#allocation2] sm:$0xf] %vm324, -1e+30
        %326 = vst.msk [vmem:[#allocation3] sm:$0xf] %vm324, 0.0
        %vm327 = vcmask 60416
        %328 = vst.msk [vmem:[#allocation4] sm:$0xf] %vm327, 0.0
      $region36: #{paligemma_forward.21} parent=31 // pred_fallthru
        _
      %v329 = vld [vmem:[%s285] sm:$0x3]
      %v330 = vld [vmem:[%s296] sm:$0x3]
      %vm331 = vcmask 64512
      %v333 = vsel %vm331, %v329, 0
      %v336 = vsel %vm331, %v330, 0
      %338 = vmatprep.subr.bf16.mxu0 0
      %339 = vmatpush1.bf16.xpose.msra.mxu0 0
      %340 = vmatprep.subr.bf16.mxu0 0
      %341 = vmatpush1.bf16.xpose.msra.mxu0 0
      %342 = vmatprep.subr.bf16.mxu0 0
      %343 = vmatpush1.bf16.xpose.msra.mxu0 0
      %344 = vmatprep.subr.bf16.mxu0 0
      %345 = vmatpush1.bf16.xpose.msra.mxu0 0
      %346 = vmatprep.subr.bf16.mxu0 0
      %347 = vmatpush1.bf16.xpose.msra.mxu0 0
      %348 = vmatprep.subr.bf16.mxu0 0
      %349 = vmatpush1.bf16.xpose.msra.mxu0 0
      %350 = vmatprep.subr.bf16.mxu0 0
      %351 = vmatpush1.bf16.xpose.msra.mxu0 0
      %352 = vmatprep.subr.bf16.mxu0 0
      %353 = vmatpush1.bf16.xpose.msra.mxu0 %v336
      %354 = vmatprep.subr.bf16.mxu0 0
      %355 = vmatpush2.bf16.xpose.msra.mxu0 0
      %356 = vmatprep.subr.bf16.mxu0 0
      %357 = vmatpush2.bf16.xpose.msra.mxu0 0
      %358 = vmatprep.subr.bf16.mxu0 0
      %359 = vmatpush2.bf16.xpose.msra.mxu0 0
      %360 = vmatprep.subr.bf16.mxu0 0
      %361 = vmatpush2.bf16.xpose.msra.mxu0 0
      %362 = vmatprep.subr.bf16.mxu0 0
      %363 = vmatpush2.bf16.xpose.msra.mxu0 0
      %364 = vmatprep.subr.bf16.mxu0 0
      %365 = vmatpush2.bf16.xpose.msra.mxu0 0
      %366 = vmatprep.subr.bf16.mxu0 0
      %367 = vmatpush2.bf16.xpose.msra.mxu0 0
      %368 = vmatprep.subr.bf16.mxu0 0
      %369 = vmatpush2.bf16.xpose.msra.mxu0 0
      %370 = vmatprep.mubr.bf16.mxu0 0
      %371 = vmatmul.mubr.bf16.gmra.mxu0 %v333
      %v372 = vpop.f32.mrf.mxu0
      %v373 = vadd.f32 0.0, %v372
      %v374 = vpop.f32.mrf.mxu0
      %v375 = vpop.f32.mrf.mxu0
      %v376 = vpop.f32.mrf.mxu0
      %377 = vdwg.mxu0
      %v378 = vld [vmem:[#allocation2] sm:$0xf]
      %vm379 = vcmask 27648
      %v380 = vsel %vm379, %v373, -inf
      %381 = vmax.xlane.f32.xlu0 %v380
      %v382 = vpop.xlane.xlu0 %381
      %v383 = vmax.f32 %v378, %v382
      %v384 = vsub.f32 %v378, %v383
      %v385 = vmul.f32 %v384, 1.442695
      %v386 = vpow.pop %v385
      %388 = vset.pattern.permute.xlu0 0
      %389 = vperm.xlu0 %388, %v383
      %v390 = vpop.permute.xlu0 %389
      %v392 = vsub.f32 %v373, %v390
      %v393 = vmul.f32 %v392, 1.442695
      %v394 = vpow.pop %v393
      %v395 = vld [vmem:[#allocation3] sm:$0xf]
      %v396 = vmul.f32 %v386, %v395
      %v397 = vsel %vm379, %v394, 0.0
      %398 = vadd.xlane.f32.xlu0 %v397
      %v399 = vpop.xlane.xlu0 %398
      %v400 = vadd.f32 %v396, %v399
      %vm401 = vcmask 3072
      %402 = vst.msk [vmem:[#allocation3] sm:$0xf] %vm401, %v400
      %v403 = vld [vmem:[#allocation4] sm:$0xf]
      %405 = vset.pattern.permute.xlu0 0
      %406 = vperm.xlu0 %405, %v386
      %v407 = vpop.permute.xlu0 %406
      %v409 = vmul.f32 %v407, %v403
      %v410 = vpack.c.bf16 %v394, %v394
      %v411 = vld [vmem:[%s307] sm:$0x3]
      %vm412 = vcmask 31744
      %v414 = vsel %vm412, %v410, 0
      %vm416 = vcmask 1041408
      %v418 = vsel %vm416, %v411, 0
      %420 = vmatprep.subr.bf16.mxu0 0
      %421 = vmatpush1.bf16.msra.mxu0 0
      %422 = vmatprep.subr.bf16.mxu0 0
      %423 = vmatpush1.bf16.msra.mxu0 0
      %424 = vmatprep.subr.bf16.mxu0 0
      %425 = vmatpush1.bf16.msra.mxu0 0
      %426 = vmatprep.subr.bf16.mxu0 0
      %427 = vmatpush1.bf16.msra.mxu0 0
      %428 = vmatprep.subr.bf16.mxu0 0
      %429 = vmatpush1.bf16.msra.mxu0 0
      %430 = vmatprep.subr.bf16.mxu0 0
      %431 = vmatpush1.bf16.msra.mxu0 0
      %432 = vmatprep.subr.bf16.mxu0 0
      %433 = vmatpush1.bf16.msra.mxu0 0
      %434 = vmatprep.subr.bf16.mxu0 0
      %435 = vmatpush1.bf16.msra.mxu0 %v418
      %436 = vmatprep.subr.bf16.mxu0 0
      %437 = vmatpush2.bf16.msra.mxu0 0
      %438 = vmatprep.subr.bf16.mxu0 0
      %439 = vmatpush2.bf16.msra.mxu0 0
      %440 = vmatprep.subr.bf16.mxu0 0
      %441 = vmatpush2.bf16.msra.mxu0 0
      %442 = vmatprep.subr.bf16.mxu0 0
      %443 = vmatpush2.bf16.msra.mxu0 0
      %444 = vmatprep.subr.bf16.mxu0 0
      %445 = vmatpush2.bf16.msra.mxu0 0
      %446 = vmatprep.subr.bf16.mxu0 0
      %447 = vmatpush2.bf16.msra.mxu0 0
      %448 = vmatprep.subr.bf16.mxu0 0
      %449 = vmatpush2.bf16.msra.mxu0 0
      %450 = vmatprep.subr.bf16.mxu0 0
      %451 = vmatpush2.bf16.msra.mxu0 0
      %452 = vmatprep.mubr.bf16.mxu0 0
      %453 = vmatmul.mubr.bf16.gmra.mxu0 %v414
      %v454 = vpop.f32.mrf.mxu0
      %v455 = vadd.f32 0.0, %v454
      %v456 = vpop.f32.mrf.mxu0
      %v457 = vpop.f32.mrf.mxu0
      %v458 = vpop.f32.mrf.mxu0
      %459 = vdwg.mxu0
      %v460 = vadd.f32 %v409, %v455
      %vm461 = vcmask 60416
      %462 = vst.msk [vmem:[#allocation4] sm:$0xf] %vm461, %v460
      %463 = vst.msk [vmem:[#allocation2] sm:$0xf] %vm401, %v383
      // Predicated region
      $region37: #{paligemma_forward.21} parent=31 // pred_check
        %p464 = pneg %p320
      $region38: #{paligemma_forward.21} parent=31 // pred_check_branch
        %466 = sbr.rel (%p464) target = $region40
      $region39: #{paligemma_forward.21} parent=31 // pred_region
        %v467 = vld [vmem:[#allocation4] sm:$0xf]
        %v468 = vld [vmem:[#allocation3] sm:$0xf]
        %v469 = vrcp.pop %v468
        %471 = vset.pattern.permute.xlu0 0
        %472 = vperm.xlu0 %471, %v469
        %v473 = vpop.permute.xlu0 %472
        %v475 = vmul.f32 %v467, %v473
        %v476 = vpack.c.bf16 %v475, %v475
        %vm477 = vcmask 58368
        %478 = vst.msk [vmem:[%s318] sm:$0x3] %vm477, %v476
      $region40: #{paligemma_forward.21} parent=31 // pred_fallthru
        _
      %p479 = scmp.lt.s32.totalorder %s20, 1
      %s480 = scalar_select %p479, %s20, 1
      %p481 = scmp.lt.s32.totalorder %s21, 3
      %s482 = scalar_select %p481, %s21, 3
      %p483 = scmp.lt.s32.totalorder %s22, 0
      %s484 = scalar_select %p483, %s22, 0
      %s485 = sadd.s32 %s484, %s482
      %s486 = smul.addr %s480, 4
      %s487 = sadd.s32 %s485, %s486
      %s488 = smul.addr %s487, 2
      %s489 = scalar_lea.vmem %s3, %s488
      // Predicated region
      $region41: #{paligemma_forward.21} parent=31 // pred_check
        %p490 = pneg %p152
      $region42: #{paligemma_forward.21} parent=31 // pred_check_branch
        %492 = sbr.rel (%p490) target = $region44
      $region43: #{paligemma_forward.21} parent=31 // pred_region
        _
      $region44: #{paligemma_forward.21} parent=31 // pred_fallthru
        _
    $region32: #{paligemma_forward.21} parent=5 // pred_fallthru
      _
    %p493 = scmp.le.s32.totalorder 2, %s9
    // Predicated region
    $region45: #{paligemma_forward.21} parent=5 // pred_check
      %p494 = pneg %p493
    $region46: #{paligemma_forward.21} parent=5 // pred_check_branch
      %496 = sbr.rel (%p494) target = $region48
    $region47: #{paligemma_forward.21} parent=5 // pred_region
      %s497 = ssub.s32 %s9, 2
      // Predicated region
      $region49: #{paligemma_forward.21} parent=47 // pred_check
        %p498 = pneg %p158
      $region50: #{paligemma_forward.21} parent=47 // pred_check_branch
        %500 = sbr.rel (%p498) target = $region52
      $region51: #{paligemma_forward.21} parent=47 // pred_region
        %p501 = scmp.lt.s32.totalorder %s24, 1
        %s502 = scalar_select %p501, %s24, 1
        %p503 = scmp.lt.s32.totalorder %s25, 3
        %s504 = scalar_select %p503, %s25, 3
        %p505 = scmp.lt.s32.totalorder %s26, 0
        %s506 = scalar_select %p505, %s26, 0
        %s507 = sadd.s32 %s506, %s504
        %s508 = smul.addr %s502, 4
        %s509 = sadd.s32 %s507, %s508
        %s510 = smul.addr %s509, 2
        %s511 = scalar_lea.vmem %s3, %s510
      $region52: #{paligemma_forward.21} parent=47 // pred_fallthru
        _
    $region48: #{paligemma_forward.21} parent=5 // pred_fallthru
      _
  $region6: #{paligemma_forward.21} parent=0 // loop_footer
    %s13 = sadd.s32 1, %s9
  $region7: #{paligemma_forward.21} parent=0 // loop_footer_branch
    %8 = sbr.rel target = $region3
  $region8: #{paligemma_forward.21} parent=0 // loop_exit
    _

// kernel: paligemma_forward.20
$region0: #{paligemma_forward.20}
  #allocation0 [shape = 'u32[]', space=smem, size = 0x4, offset = 0x4, fixed_abs, tag = 'smem constant byte address 0x4 - core index']
  #allocation1 [shape = 'u32[144,128]{1,0:T(1,128)}', space=vmem, size = 0x12000, scoped, tag = 'internal scratch']
  #allocation2 [shape = 'bf16[8,32]{1,0:T(8,128)(2,1)}', space=vmem, size = 0x800, scoped, tag = 'scratch operand']
  %s0 = inlined_call_operand.vmem [shape: bf16[8,32], index: 0, kind: input, shape index: {}]
  %s1 = inlined_call_operand.vmem [shape: f32[1,32], index: 1, kind: input, shape index: {}]
  %s2 = inlined_call_operand.vmem [shape: f32[1,32], index: 2, kind: input, shape index: {}]
  %s3 = inlined_call_operand.vmem [shape: bf16[32,96], index: 3, kind: input, shape index: {}]
  %s4 = inlined_call_operand.vmem [shape: f32[1,96], index: 4, kind: input, shape index: {}]
  %s5 = inlined_call_operand.vmem [shape: bf16[8,96], index: 5, kind: output, shape index: {}]
  %s6 = sld [smem:[#allocation0]]
  $region34: #{paligemma_forward.20} parent=0
    _
  %s8 = ssub.s32 1, %s6
  %s9 = scalar_select 0, %s8, %s6
  // Predicated region
  $region2: #{paligemma_forward.20} parent=0 // pred_check
    _
  $region3: #{paligemma_forward.20} parent=0 // pred_check_branch
    %11 = sbr.rel (0) target = $region5
  $region4: #{paligemma_forward.20} parent=0 // pred_region
    _
  $region5: #{paligemma_forward.20} parent=0 // pred_fallthru
    _
  // Predicated region
  $region6: #{paligemma_forward.20} parent=0 // pred_check
    _
  $region7: #{paligemma_forward.20} parent=0 // pred_check_branch
    %13 = sbr.rel (0) target = $region9
  $region8: #{paligemma_forward.20} parent=0 // pred_region
    _
  $region9: #{paligemma_forward.20} parent=0 // pred_fallthru
    _
  // Predicated region
  $region10: #{paligemma_forward.20} parent=0 // pred_check
    _
  $region11: #{paligemma_forward.20} parent=0 // pred_check_branch
    %15 = sbr.rel (0) target = $region13
  $region12: #{paligemma_forward.20} parent=0 // pred_region
    _
  $region13: #{paligemma_forward.20} parent=0 // pred_fallthru
    _
  // Predicated region
  $region14: #{paligemma_forward.20} parent=0 // pred_check
    _
  $region15: #{paligemma_forward.20} parent=0 // pred_check_branch
    %17 = sbr.rel (0) target = $region17
  $region16: #{paligemma_forward.20} parent=0 // pred_region
    _
  $region17: #{paligemma_forward.20} parent=0 // pred_fallthru
    _
  // Predicated region
  $region18: #{paligemma_forward.20} parent=0 // pred_check
    _
  $region19: #{paligemma_forward.20} parent=0 // pred_check_branch
    %19 = sbr.rel (0) target = $region21
  $region20: #{paligemma_forward.20} parent=0 // pred_region
    _
  $region21: #{paligemma_forward.20} parent=0 // pred_fallthru
    _
  %p21 = scmp.eq.s32.totalorder 0, 0
  // Predicated region
  $region22: #{paligemma_forward.20} parent=0 // pred_check
    %p22 = pneg %p21
  $region23: #{paligemma_forward.20} parent=0 // pred_check_branch
    %24 = sbr.rel (%p22) target = $region25
  $region24: #{paligemma_forward.20} parent=0 // pred_region
    %v25 = vld [vmem:[%s0] sm:$0xf]
    %v26 = vunpack.c.l.bf16 %v25
    %vm27 = vcmask 261120
    %v28 = vsel %vm27, %v26, 0.0
    %29 = vadd.xlane.f32.xlu0 %v28
    %v30 = vpop.xlane.xlu0 %29
    %v31 = vrcp.pop 32.0
    %v32 = vmul.f32 %v30, %v31
    %v33 = vsub.f32 %v26, %v32
    %v34 = vmul.f32 %v33, %v33
    %v35 = vsel %vm27, %v34, 0.0
    %36 = vadd.xlane.f32.xlu0 %v35
    %v37 = vpop.xlane.xlu0 %36
    %v38 = vmul.f32 %v37, %v31
    %v39 = vadd.f32 %v38, 1e-06
    %v40 = vrsqrt.pop %v39
    %v41 = vmul.f32 %v33, %v40
    %v42 = vld [vmem:[%s1] sm:$0x1]
    %v44 = vlaneseq
    %v45 = vshrl.u32 %v44, 7
    %v46 = vsub.s32 0, %v45
    %v47 = vrot.slane %v42, %v46
    %v49 = vmul.f32 %v41, %v47
    %v50 = vld [vmem:[%s2] sm:$0x1]
    %v52 = vlaneseq
    %v53 = vshrl.u32 %v52, 7
    %v54 = vsub.s32 0, %v53
    %v55 = vrot.slane %v50, %v54
    %v57 = vadd.f32 %v49, %v55
    %v58 = vpack.c.bf16 %v57, %v57
    %vm59 = vcmask 257024
    %60 = vst.msk [vmem:[#allocation2] sm:$0xf] %vm59, %v58
  $region25: #{paligemma_forward.20} parent=0 // pred_fallthru
    _
  %v61 = vld [vmem:[#allocation2] sm:$0xf]
  %v62 = vld [vmem:[%s3] sm:$0xf]
  %v63 = vld [vmem:[%s3 + $0x4] sm:$0xf]
  %v64 = vld [vmem:[%s3 + $0x8] sm:$0xf]
  %v65 = vld [vmem:[%s3 + $0xc] sm:$0xf]
  %v66 = vld [vmem:[%s4] sm:$0x1]
  %v68 = vlaneseq
  %v69 = vshrl.u32 %v68, 7
  %v70 = vsub.s32 0, %v69
  %v71 = vrot.slane %v66, %v70
  %v77 = vunpack.c.l.b16 %v62
  %v78 = vunpack.c.l.b16 %v63
  %v79 = vunpack.c.l.b16 %v64
  %v80 = vunpack.c.l.b16 %v65
  %v81 = vpack.c.b16 %v78, %v77
  %v82 = vpack.c.b16 %v80, %v79
  %vm85 = vcmask 261120
  %v87 = vsel %vm85, %v61, 0
  %89 = vmatprep.subr.bf16.mxu0 0
  %90 = vmatpush1.bf16.msra.mxu0 0
  %91 = vmatprep.subr.bf16.mxu0 0
  %92 = vmatpush1.bf16.msra.mxu0 0
  %93 = vmatprep.subr.bf16.mxu0 0
  %94 = vmatpush1.bf16.msra.mxu0 0
  %95 = vmatprep.subr.bf16.mxu0 0
  %96 = vmatpush1.bf16.msra.mxu0 0
  %97 = vmatprep.subr.bf16.mxu0 0
  %98 = vmatpush1.bf16.msra.mxu0 0
  %99 = vmatprep.subr.bf16.mxu0 0
  %100 = vmatpush1.bf16.msra.mxu0 0
  %101 = vmatprep.subr.bf16.mxu0 0
  %102 = vmatpush1.bf16.msra.mxu0 %v82
  %103 = vmatprep.subr.bf16.mxu0 0
  %104 = vmatpush1.bf16.msra.mxu0 %v81
  %105 = vmatprep.subr.bf16.mxu0 0
  %106 = vmatpush2.bf16.msra.mxu0 0
  %107 = vmatprep.subr.bf16.mxu0 0
  %108 = vmatpush2.bf16.msra.mxu0 0
  %109 = vmatprep.subr.bf16.mxu0 0
  %110 = vmatpush2.bf16.msra.mxu0 0
  %111 = vmatprep.subr.bf16.mxu0 0
  %112 = vmatpush2.bf16.msra.mxu0 0
  %113 = vmatprep.subr.bf16.mxu0 0
  %114 = vmatpush2.bf16.msra.mxu0 0
  %115 = vmatprep.subr.bf16.mxu0 0
  %116 = vmatpush2.bf16.msra.mxu0 0
  %117 = vmatprep.subr.bf16.mxu0 0
  %118 = vmatpush2.bf16.msra.mxu0 0
  %119 = vmatprep.subr.bf16.mxu0 0
  %120 = vmatpush2.bf16.msra.mxu0 0
  %121 = vmatprep.mubr.bf16.mxu0 0
  %122 = vmatmul.mubr.bf16.gmra.mxu0 %v87
  %v123 = vpop.f32.mrf.mxu0
  %v124 = vadd.f32 %v71, %v123
  %v125 = vpop.f32.mrf.mxu0
  %v126 = vpop.f32.mrf.mxu0
  %v127 = vpop.f32.mrf.mxu0
  %128 = vdwg.mxu0
  %v129 = vpack.c.bf16 %v124, %v124
  %vm130 = vcmask 781312
  %131 = vst.msk [vmem:[%s5] sm:$0xf] %vm130, %v129
  // Predicated region
  $region26: #{paligemma_forward.20} parent=0 // pred_check
    _
  $region27: #{paligemma_forward.20} parent=0 // pred_check_branch
    %133 = sbr.rel (0) target = $region29
  $region28: #{paligemma_forward.20} parent=0 // pred_region
    _
  $region29: #{paligemma_forward.20} parent=0 // pred_fallthru
    _
  // Predicated region
  $region30: #{paligemma_forward.20} parent=0 // pred_check
    _
  $region31: #{paligemma_forward.20} parent=0 // pred_check_branch
    %135 = sbr.rel (0) target = $region33
  $region32: #{paligemma_forward.20} parent=0 // pred_region
    _
  $region33: #{paligemma_forward.20} parent=0 // pred_fallthru
    _

// kernel: paligemma_forward.19
$region0: #{paligemma_forward.19}
  #allocation0 [shape = 'u32[]', space=smem, size = 0x4, offset = 0x4, fixed_abs, tag = 'smem constant byte address 0x4 - core index']
  #allocation1 [shape = 'u32[144,128]{1,0:T(1,128)}', space=vmem, size = 0x12000, scoped, tag = 'internal scratch']
  #allocation2 [shape = 'f32[8,32]{1,0:T(8,128)}', space=vmem, size = 0x1000, scoped, tag = 'scratch operand']
  %s0 = inlined_call_operand.vmem [shape: bf16[8,192], index: 0, kind: input, shape index: {}]
  %s1 = inlined_call_operand.vmem [shape: bf16[192,32], index: 1, kind: input, shape index: {}]
  %s2 = inlined_call_operand.vmem [shape: f32[1,32], index: 2, kind: input, shape index: {}]
  %s3 = inlined_call_operand.vmem [shape: f32[8,32], index: 3, kind: output, shape index: {}]
  %s4 = sld [smem:[#allocation0]]
  $region30: #{paligemma_forward.19} parent=0
    _
  %s6 = ssub.s32 1, %s4
  %s7 = scalar_select 0, %s6, %s4
  // Predicated region
  $region2: #{paligemma_forward.19} parent=0 // pred_check
    _
  $region3: #{paligemma_forward.19} parent=0 // pred_check_branch
    %9 = sbr.rel (0) target = $region5
  $region4: #{paligemma_forward.19} parent=0 // pred_region
    _
  $region5: #{paligemma_forward.19} parent=0 // pred_fallthru
    _
  // Predicated region
  $region6: #{paligemma_forward.19} parent=0 // pred_check
    _
  $region7: #{paligemma_forward.19} parent=0 // pred_check_branch
    %11 = sbr.rel (0) target = $region9
  $region8: #{paligemma_forward.19} parent=0 // pred_region
    _
  $region9: #{paligemma_forward.19} parent=0 // pred_fallthru
    _
  // Predicated region
  $region10: #{paligemma_forward.19} parent=0 // pred_check
    _
  $region11: #{paligemma_forward.19} parent=0 // pred_check_branch
    %13 = sbr.rel (0) target = $region13
  $region12: #{paligemma_forward.19} parent=0 // pred_region
    _
  $region13: #{paligemma_forward.19} parent=0 // pred_fallthru
    _
  %p15 = scmp.eq.s32.totalorder 0, 0
  // Predicated region
  $region14: #{paligemma_forward.19} parent=0 // pred_check
    %p16 = pneg %p15
  $region15: #{paligemma_forward.19} parent=0 // pred_check_branch
    %18 = sbr.rel (%p16) target = $region17
  $region16: #{paligemma_forward.19} parent=0 // pred_region
    %vm19 = vcmask 261120
    %20 = vst.msk [vmem:[#allocation2] sm:$0xff] %vm19, 0.0
  $region17: #{paligemma_forward.19} parent=0 // pred_fallthru
    _
  %v21 = vld [vmem:[#allocation2] sm:$0xff]
  %v22 = vld [vmem:[%s0] sm:$0xff]
  %v23 = vld [vmem:[%s1] sm:$0xf]
  %v24 = vld [vmem:[%s1 + $0x4] sm:$0xf]
  %v25 = vld [vmem:[%s1 + $0x8] sm:$0xf]
  %v26 = vld [vmem:[%s1 + $0xc] sm:$0xf]
  %v27 = vld [vmem:[%s1 + $0x10] sm:$0xf]
  %v28 = vld [vmem:[%s1 + $0x14] sm:$0xf]
  %v29 = vld [vmem:[%s1 + $0x18] sm:$0xf]
  %v30 = vld [vmem:[%s1 + $0x1c] sm:$0xf]
  %v31 = vld [vmem:[%s1 + $0x20] sm:$0xf]
  %v32 = vld [vmem:[%s1 + $0x24] sm:$0xf]
  %v33 = vld [vmem:[%s1 + $0x28] sm:$0xf]
  %v34 = vld [vmem:[%s1 + $0x2c] sm:$0xf]
  %v35 = vld [vmem:[%s1 + $0x30] sm:$0xf]
  %v36 = vld [vmem:[%s1 + $0x34] sm:$0xf]
  %v37 = vld [vmem:[%s1 + $0x38] sm:$0xf]
  %v38 = vld [vmem:[%s1 + $0x3c] sm:$0xf]
  %v39 = vld [vmem:[%s1 + $0x40] sm:$0xf]
  %v40 = vld [vmem:[%s1 + $0x44] sm:$0xf]
  %v41 = vld [vmem:[%s1 + $0x48] sm:$0xf]
  %v42 = vld [vmem:[%s1 + $0x4c] sm:$0xf]
  %v43 = vld [vmem:[%s1 + $0x50] sm:$0xf]
  %v44 = vld [vmem:[%s1 + $0x54] sm:$0xf]
  %v45 = vld [vmem:[%s1 + $0x58] sm:$0xf]
  %v46 = vld [vmem:[%s1 + $0x5c] sm:$0xf]
  %v48 = vunpack.c.l.b16 %v22
  %v49 = vunpack.c.h.b16 %v22
  %v50 = vpack.c.b16 %v48, %v48
  %v51 = vpack.c.b16 %v49, %v49
  %v77 = vunpack.c.l.b16 %v23
  %v78 = vunpack.c.l.b16 %v24
  %v79 = vunpack.c.l.b16 %v25
  %v80 = vunpack.c.l.b16 %v26
  %v81 = vunpack.c.l.b16 %v27
  %v82 = vunpack.c.l.b16 %v28
  %v83 = vunpack.c.l.b16 %v29
  %v84 = vunpack.c.l.b16 %v30
  %v85 = vunpack.c.l.b16 %v31
  %v86 = vunpack.c.l.b16 %v32
  %v87 = vunpack.c.l.b16 %v33
  %v88 = vunpack.c.l.b16 %v34
  %v89 = vunpack.c.l.b16 %v35
  %v90 = vunpack.c.l.b16 %v36
  %v91 = vunpack.c.l.b16 %v37
  %v92 = vunpack.c.l.b16 %v38
  %v93 = vunpack.c.l.b16 %v39
  %v94 = vunpack.c.l.b16 %v40
  %v95 = vunpack.c.l.b16 %v41
  %v96 = vunpack.c.l.b16 %v42
  %v97 = vunpack.c.l.b16 %v43
  %v98 = vunpack.c.l.b16 %v44
  %v99 = vunpack.c.l.b16 %v45
  %v100 = vunpack.c.l.b16 %v46
  %v101 = vpack.c.b16 %v78, %v77
  %v102 = vpack.c.b16 %v80, %v79
  %v103 = vpack.c.b16 %v82, %v81
  %v104 = vpack.c.b16 %v84, %v83
  %v105 = vpack.c.b16 %v86, %v85
  %v106 = vpack.c.b16 %v88, %v87
  %v107 = vpack.c.b16 %v90, %v89
  %v108 = vpack.c.b16 %v92, %v91
  %v109 = vpack.c.b16 %v94, %v93
  %v110 = vpack.c.b16 %v96, %v95
  %v111 = vpack.c.b16 %v98, %v97
  %v112 = vpack.c.b16 %v100, %v99
  %vm125 = vcmask 523264
  %v127 = vsel %vm125, %v51, 0
  %129 = vmatprep.subr.bf16.mxu0 0
  %130 = vmatpush1.bf16.msra.mxu0 %v108
  %131 = vmatprep.subr.bf16.mxu0 0
  %132 = vmatpush1.bf16.msra.mxu0 %v107
  %133 = vmatprep.subr.bf16.mxu0 0
  %134 = vmatpush1.bf16.msra.mxu0 %v106
  %135 = vmatprep.subr.bf16.mxu0 0
  %136 = vmatpush1.bf16.msra.mxu0 %v105
  %137 = vmatprep.subr.bf16.mxu0 0
  %138 = vmatpush1.bf16.msra.mxu0 %v104
  %139 = vmatprep.subr.bf16.mxu0 0
  %140 = vmatpush1.bf16.msra.mxu0 %v103
  %141 = vmatprep.subr.bf16.mxu0 0
  %142 = vmatpush1.bf16.msra.mxu0 %v102
  %143 = vmatprep.subr.bf16.mxu0 0
  %144 = vmatpush1.bf16.msra.mxu0 %v101
  %145 = vmatprep.subr.bf16.mxu0 0
  %146 = vmatpush2.bf16.msra.mxu0 0
  %147 = vmatprep.subr.bf16.mxu0 0
  %148 = vmatpush2.bf16.msra.mxu0 0
  %149 = vmatprep.subr.bf16.mxu0 0
  %150 = vmatpush2.bf16.msra.mxu0 0
  %151 = vmatprep.subr.bf16.mxu0 0
  %152 = vmatpush2.bf16.msra.mxu0 0
  %153 = vmatprep.subr.bf16.mxu0 0
  %154 = vmatpush2.bf16.msra.mxu0 %v112
  %155 = vmatprep.subr.bf16.mxu0 0
  %156 = vmatpush2.bf16.msra.mxu0 %v111
  %157 = vmatprep.subr.bf16.mxu0 0
  %158 = vmatpush2.bf16.msra.mxu0 %v110
  %159 = vmatprep.subr.bf16.mxu0 0
  %160 = vmatpush2.bf16.msra.mxu0 %v109
  %161 = vmatprep.mubr.bf16.mxu0 %v127
  %162 = vmatmul.mubr.bf16.gmra.mxu0 %v50
  %v163 = vpop.f32.mrf.mxu0
  %v164 = vadd.f32 0.0, %v163
  %v165 = vpop.f32.mrf.mxu0
  %v166 = vpop.f32.mrf.mxu0
  %v167 = vpop.f32.mrf.mxu0
  %168 = vdwg.mxu0
  %v169 = vadd.f32 %v21, %v164
  %vm170 = vcmask 261120
  %171 = vst.msk [vmem:[#allocation2] sm:$0xff] %vm170, %v169
  // Predicated region
  $region18: #{paligemma_forward.19} parent=0 // pred_check
    %p172 = pneg %p15
  $region19: #{paligemma_forward.19} parent=0 // pred_check_branch
    %174 = sbr.rel (%p172) target = $region21
  $region20: #{paligemma_forward.19} parent=0 // pred_region
    %v175 = vld [vmem:[#allocation2] sm:$0xff]
    %v176 = vld [vmem:[%s2] sm:$0x1]
    %v178 = vlaneseq
    %v179 = vshrl.u32 %v178, 7
    %v180 = vsub.s32 0, %v179
    %v181 = vrot.slane %v176, %v180
    %v183 = vadd.f32 %v175, %v181
    %184 = vst.msk [vmem:[%s3] sm:$0xff] %vm170, %v183
  $region21: #{paligemma_forward.19} parent=0 // pred_fallthru
    _
  // Predicated region
  $region22: #{paligemma_forward.19} parent=0 // pred_check
    _
  $region23: #{paligemma_forward.19} parent=0 // pred_check_branch
    %186 = sbr.rel (0) target = $region25
  $region24: #{paligemma_forward.19} parent=0 // pred_region
    _
  $region25: #{paligemma_forward.19} parent=0 // pred_fallthru
    _
  // Predicated region
  $region26: #{paligemma_forward.19} parent=0 // pred_check
    _
  $region27: #{paligemma_forward.19} parent=0 // pred_check_branch
    %188 = sbr.rel (0) target = $region29
  $region28: #{paligemma_forward.19} parent=0 // pred_region
    _
  $region29: #{paligemma_forward.19} parent=0 // pred_fallthru
    _

// kernel: paligemma_forward.22
$region0: #{paligemma_forward.22}
  #allocation0 [shape = 'u32[]', space=smem, size = 0x4, offset = 0x4, fixed_abs, tag = 'smem constant byte address 0x4 - core index']
  #allocation1 [shape = 'u32[144,128]{1,0:T(1,128)}', space=vmem, size = 0x12000, scoped, tag = 'internal scratch']
  #allocation2 [shape = 'f32[8,32]{1,0:T(8,128)}', space=vmem, size = 0x1000, scoped, tag = 'scratch operand']
  %s0 = inlined_call_operand.vmem [shape: bf16[8,32], index: 0, kind: input, shape index: {}]
  %s1 = inlined_call_operand.vmem [shape: bf16[32,32], index: 1, kind: input, shape index: {}]
  %s2 = inlined_call_operand.vmem [shape: f32[1,32], index: 2, kind: input, shape index: {}]
  %s3 = inlined_call_operand.vmem [shape: bf16[8,32], index: 3, kind: input, shape index: {}]
  %s4 = inlined_call_operand.vmem [shape: bf16[8,32], index: 4, kind: output, shape index: {}]
  %s5 = sld [smem:[#allocation0]]
  $region34: #{paligemma_forward.22} parent=0
    _
  %s7 = ssub.s32 1, %s5
  %s8 = scalar_select 0, %s7, %s5
  // Predicated region
  $region2: #{paligemma_forward.22} parent=0 // pred_check
    _
  $region3: #{paligemma_forward.22} parent=0 // pred_check_branch
    %10 = sbr.rel (0) target = $region5
  $region4: #{paligemma_forward.22} parent=0 // pred_region
    _
  $region5: #{paligemma_forward.22} parent=0 // pred_fallthru
    _
  // Predicated region
  $region6: #{paligemma_forward.22} parent=0 // pred_check
    _
  $region7: #{paligemma_forward.22} parent=0 // pred_check_branch
    %12 = sbr.rel (0) target = $region9
  $region8: #{paligemma_forward.22} parent=0 // pred_region
    _
  $region9: #{paligemma_forward.22} parent=0 // pred_fallthru
    _
  // Predicated region
  $region10: #{paligemma_forward.22} parent=0 // pred_check
    _
  $region11: #{paligemma_forward.22} parent=0 // pred_check_branch
    %14 = sbr.rel (0) target = $region13
  $region12: #{paligemma_forward.22} parent=0 // pred_region
    _
  $region13: #{paligemma_forward.22} parent=0 // pred_fallthru
    _
  // Predicated region
  $region14: #{paligemma_forward.22} parent=0 // pred_check
    _
  $region15: #{paligemma_forward.22} parent=0 // pred_check_branch
    %16 = sbr.rel (0) target = $region17
  $region16: #{paligemma_forward.22} parent=0 // pred_region
    _
  $region17: #{paligemma_forward.22} parent=0 // pred_fallthru
    _
  %p18 = scmp.eq.s32.totalorder 0, 0
  // Predicated region
  $region18: #{paligemma_forward.22} parent=0 // pred_check
    %p19 = pneg %p18
  $region19: #{paligemma_forward.22} parent=0 // pred_check_branch
    %21 = sbr.rel (%p19) target = $region21
  $region20: #{paligemma_forward.22} parent=0 // pred_region
    %vm22 = vcmask 261120
    %23 = vst.msk [vmem:[#allocation2] sm:$0xff] %vm22, 0.0
  $region21: #{paligemma_forward.22} parent=0 // pred_fallthru
    _
  %v24 = vld [vmem:[#allocation2] sm:$0xff]
  %v25 = vld [vmem:[%s0] sm:$0xf]
  %v26 = vld [vmem:[%s1] sm:$0xf]
  %v27 = vld [vmem:[%s1 + $0x4] sm:$0xf]
  %v28 = vld [vmem:[%s1 + $0x8] sm:$0xf]
  %v29 = vld [vmem:[%s1 + $0xc] sm:$0xf]
  %v34 = vunpack.c.l.b16 %v26
  %v35 = vunpack.c.l.b16 %v27
  %v36 = vunpack.c.l.b16 %v28
  %v37 = vunpack.c.l.b16 %v29
  %v38 = vpack.c.b16 %v35, %v34
  %v39 = vpack.c.b16 %v37, %v36
  %vm42 = vcmask 261120
  %v44 = vsel %vm42, %v25, 0
  %46 = vmatprep.subr.bf16.mxu0 0
  %47 = vmatpush1.bf16.msra.mxu0 0
  %48 = vmatprep.subr.bf16.mxu0 0
  %49 = vmatpush1.bf16.msra.mxu0 0
  %50 = vmatprep.subr.bf16.mxu0 0
  %51 = vmatpush1.bf16.msra.mxu0 0
  %52 = vmatprep.subr.bf16.mxu0 0
  %53 = vmatpush1.bf16.msra.mxu0 0
  %54 = vmatprep.subr.bf16.mxu0 0
  %55 = vmatpush1.bf16.msra.mxu0 0
  %56 = vmatprep.subr.bf16.mxu0 0
  %57 = vmatpush1.bf16.msra.mxu0 0
  %58 = vmatprep.subr.bf16.mxu0 0
  %59 = vmatpush1.bf16.msra.mxu0 %v39
  %60 = vmatprep.subr.bf16.mxu0 0
  %61 = vmatpush1.bf16.msra.mxu0 %v38
  %62 = vmatprep.subr.bf16.mxu0 0
  %63 = vmatpush2.bf16.msra.mxu0 0
  %64 = vmatprep.subr.bf16.mxu0 0
  %65 = vmatpush2.bf16.msra.mxu0 0
  %66 = vmatprep.subr.bf16.mxu0 0
  %67 = vmatpush2.bf16.msra.mxu0 0
  %68 = vmatprep.subr.bf16.mxu0 0
  %69 = vmatpush2.bf16.msra.mxu0 0
  %70 = vmatprep.subr.bf16.mxu0 0
  %71 = vmatpush2.bf16.msra.mxu0 0
  %72 = vmatprep.subr.bf16.mxu0 0
  %73 = vmatpush2.bf16.msra.mxu0 0
  %74 = vmatprep.subr.bf16.mxu0 0
  %75 = vmatpush2.bf16.msra.mxu0 0
  %76 = vmatprep.subr.bf16.mxu0 0
  %77 = vmatpush2.bf16.msra.mxu0 0
  %78 = vmatprep.mubr.bf16.mxu0 0
  %79 = vmatmul.mubr.bf16.gmra.mxu0 %v44
  %v80 = vpop.f32.mrf.mxu0
  %v81 = vadd.f32 0.0, %v80
  %v82 = vpop.f32.mrf.mxu0
  %v83 = vpop.f32.mrf.mxu0
  %v84 = vpop.f32.mrf.mxu0
  %85 = vdwg.mxu0
  %v86 = vadd.f32 %v24, %v81
  %87 = vst.msk [vmem:[#allocation2] sm:$0xff] %vm42, %v86
  // Predicated region
  $region22: #{paligemma_forward.22} parent=0 // pred_check
    %p88 = pneg %p18
  $region23: #{paligemma_forward.22} parent=0 // pred_check_branch
    %90 = sbr.rel (%p88) target = $region25
  $region24: #{paligemma_forward.22} parent=0 // pred_region
    %v91 = vld [vmem:[#allocation2] sm:$0xff]
    %v92 = vld [vmem:[%s2] sm:$0x1]
    %v94 = vlaneseq
    %v95 = vshrl.u32 %v94, 7
    %v96 = vsub.s32 0, %v95
    %v97 = vrot.slane %v92, %v96
    %v99 = vadd.f32 %v91, %v97
    %v100 = vld [vmem:[%s3] sm:$0xf]
    %v101 = vunpack.c.l.bf16 %v100
    %v102 = vadd.f32 %v99, %v101
    %v103 = vpack.c.bf16 %v102, %v102
    %vm104 = vcmask 257024
    %105 = vst.msk [vmem:[%s4] sm:$0xf] %vm104, %v103
  $region25: #{paligemma_forward.22} parent=0 // pred_fallthru
    _
  // Predicated region
  $region26: #{paligemma_forward.22} parent=0 // pred_check
    _
  $region27: #{paligemma_forward.22} parent=0 // pred_check_branch
    %107 = sbr.rel (0) target = $region29
  $region28: #{paligemma_forward.22} parent=0 // pred_region
    _
  $region29: #{paligemma_forward.22} parent=0 // pred_fallthru
    _
  // Predicated region
  $region30: #{paligemma_forward.22} parent=0 // pred_check
    _
  $region31: #{paligemma_forward.22} parent=0 // pred_check_branch
    %109 = sbr.rel (0) target = $region33
  $region32: #{paligemma_forward.22} parent=0 // pred_region
    _
  $region33: #{paligemma_forward.22} parent=0 // pred_fallthru
    _

// kernel: paligemma_forward.23
$region0: #{paligemma_forward.23}
  #allocation0 [shape = 'u32[]', space=smem, size = 0x4, offset = 0x4, fixed_abs, tag = 'smem constant byte address 0x4 - core index']
  #allocation1 [shape = 'u32[144,128]{1,0:T(1,128)}', space=vmem, size = 0x12000, scoped, tag = 'internal scratch']
  #allocation2 [shape = 'bf16[8,32]{1,0:T(8,128)(2,1)}', space=vmem, size = 0x800, scoped, tag = 'scratch operand']
  #allocation3 [shape = 'f32[8,32]{1,0:T(8,128)}', space=vmem, size = 0x1000, scoped, tag = 'scratch operand']
  %s0 = inlined_call_operand.vmem [shape: bf16[8,32], index: 0, kind: input, shape index: {}]
  %s1 = inlined_call_operand.vmem [shape: f32[1,32], index: 1, kind: input, shape index: {}]
  %s2 = inlined_call_operand.vmem [shape: f32[1,32], index: 2, kind: input, shape index: {}]
  %s3 = inlined_call_operand.vmem [shape: bf16[32,64], index: 3, kind: input, shape index: {}]
  %s4 = inlined_call_operand.vmem [shape: f32[1,64], index: 4, kind: input, shape index: {}]
  %s5 = inlined_call_operand.vmem [shape: bf16[64,32], index: 5, kind: input, shape index: {}]
  %s6 = inlined_call_operand.vmem [shape: f32[1,32], index: 6, kind: input, shape index: {}]
  %s7 = inlined_call_operand.vmem [shape: bf16[8,32], index: 7, kind: output, shape index: {}]
  %s8 = sld [smem:[#allocation0]]
  $region46: #{paligemma_forward.23} parent=0
    _
  %s10 = ssub.s32 1, %s8
  %s11 = scalar_select 0, %s10, %s8
  // Predicated region
  $region2: #{paligemma_forward.23} parent=0 // pred_check
    _
  $region3: #{paligemma_forward.23} parent=0 // pred_check_branch
    %13 = sbr.rel (0) target = $region5
  $region4: #{paligemma_forward.23} parent=0 // pred_region
    _
  $region5: #{paligemma_forward.23} parent=0 // pred_fallthru
    _
  // Predicated region
  $region6: #{paligemma_forward.23} parent=0 // pred_check
    _
  $region7: #{paligemma_forward.23} parent=0 // pred_check_branch
    %15 = sbr.rel (0) target = $region9
  $region8: #{paligemma_forward.23} parent=0 // pred_region
    _
  $region9: #{paligemma_forward.23} parent=0 // pred_fallthru
    _
  // Predicated region
  $region10: #{paligemma_forward.23} parent=0 // pred_check
    _
  $region11: #{paligemma_forward.23} parent=0 // pred_check_branch
    %17 = sbr.rel (0) target = $region13
  $region12: #{paligemma_forward.23} parent=0 // pred_region
    _
  $region13: #{paligemma_forward.23} parent=0 // pred_fallthru
    _
  // Predicated region
  $region14: #{paligemma_forward.23} parent=0 // pred_check
    _
  $region15: #{paligemma_forward.23} parent=0 // pred_check_branch
    %19 = sbr.rel (0) target = $region17
  $region16: #{paligemma_forward.23} parent=0 // pred_region
    _
  $region17: #{paligemma_forward.23} parent=0 // pred_fallthru
    _
  // Predicated region
  $region18: #{paligemma_forward.23} parent=0 // pred_check
    _
  $region19: #{paligemma_forward.23} parent=0 // pred_check_branch
    %21 = sbr.rel (0) target = $region21
  $region20: #{paligemma_forward.23} parent=0 // pred_region
    _
  $region21: #{paligemma_forward.23} parent=0 // pred_fallthru
    _
  // Predicated region
  $region22: #{paligemma_forward.23} parent=0 // pred_check
    _
  $region23: #{paligemma_forward.23} parent=0 // pred_check_branch
    %23 = sbr.rel (0) target = $region25
  $region24: #{paligemma_forward.23} parent=0 // pred_region
    _
  $region25: #{paligemma_forward.23} parent=0 // pred_fallthru
    _
  // Predicated region
  $region26: #{paligemma_forward.23} parent=0 // pred_check
    _
  $region27: #{paligemma_forward.23} parent=0 // pred_check_branch
    %25 = sbr.rel (0) target = $region29
  $region28: #{paligemma_forward.23} parent=0 // pred_region
    _
  $region29: #{paligemma_forward.23} parent=0 // pred_fallthru
    _
  %p27 = scmp.eq.s32.totalorder 0, 0
  // Predicated region
  $region30: #{paligemma_forward.23} parent=0 // pred_check
    %p28 = pneg %p27
  $region31: #{paligemma_forward.23} parent=0 // pred_check_branch
    %30 = sbr.rel (%p28) target = $region33
  $region32: #{paligemma_forward.23} parent=0 // pred_region
    %v31 = vld [vmem:[%s0] sm:$0xf]
    %v32 = vunpack.c.l.bf16 %v31
    %vm33 = vcmask 261120
    %v34 = vsel %vm33, %v32, 0.0
    %35 = vadd.xlane.f32.xlu0 %v34
    %v36 = vpop.xlane.xlu0 %35
    %v37 = vrcp.pop 32.0
    %v38 = vmul.f32 %v36, %v37
    %v39 = vsub.f32 %v32, %v38
    %v40 = vmul.f32 %v39, %v39
    %v41 = vsel %vm33, %v40, 0.0
    %42 = vadd.xlane.f32.xlu0 %v41
    %v43 = vpop.xlane.xlu0 %42
    %v44 = vmul.f32 %v43, %v37
    %v45 = vadd.f32 %v44, 1e-06
    %v46 = vrsqrt.pop %v45
    %v47 = vmul.f32 %v39, %v46
    %v48 = vld [vmem:[%s1] sm:$0x1]
    %v50 = vlaneseq
    %v51 = vshrl.u32 %v50, 7
    %v52 = vsub.s32 0, %v51
    %v53 = vrot.slane %v48, %v52
    %v55 = vmul.f32 %v47, %v53
    %v56 = vld [vmem:[%s2] sm:$0x1]
    %v58 = vlaneseq
    %v59 = vshrl.u32 %v58, 7
    %v60 = vsub.s32 0, %v59
    %v61 = vrot.slane %v56, %v60
    %v63 = vadd.f32 %v55, %v61
    %v64 = vpack.c.bf16 %v63, %v63
    %vm65 = vcmask 257024
    %66 = vst.msk [vmem:[#allocation2] sm:$0xf] %vm65, %v64
    %67 = vst.msk [vmem:[#allocation3] sm:$0xff] %vm33, 0.0
  $region33: #{paligemma_forward.23} parent=0 // pred_fallthru
    _
  %v68 = vld [vmem:[#allocation2] sm:$0xf]
  %v69 = vld [vmem:[%s3] sm:$0xf]
  %v70 = vld [vmem:[%s3 + $0x4] sm:$0xf]
  %v71 = vld [vmem:[%s3 + $0x8] sm:$0xf]
  %v72 = vld [vmem:[%s3 + $0xc] sm:$0xf]
  %v73 = vld [vmem:[%s4] sm:$0x1]
  %v75 = vlaneseq
  %v76 = vshrl.u32 %v75, 7
  %v77 = vsub.s32 0, %v76
  %v78 = vrot.slane %v73, %v77
  %v84 = vunpack.c.l.b16 %v69
  %v85 = vunpack.c.l.b16 %v70
  %v86 = vunpack.c.l.b16 %v71
  %v87 = vunpack.c.l.b16 %v72
  %v88 = vpack.c.b16 %v85, %v84
  %v89 = vpack.c.b16 %v87, %v86
  %vm92 = vcmask 261120
  %v94 = vsel %vm92, %v68, 0
  %96 = vmatprep.subr.bf16.mxu0 0
  %97 = vmatpush1.bf16.msra.mxu0 0
  %98 = vmatprep.subr.bf16.mxu0 0
  %99 = vmatpush1.bf16.msra.mxu0 0
  %100 = vmatprep.subr.bf16.mxu0 0
  %101 = vmatpush1.bf16.msra.mxu0 0
  %102 = vmatprep.subr.bf16.mxu0 0
  %103 = vmatpush1.bf16.msra.mxu0 0
  %104 = vmatprep.subr.bf16.mxu0 0
  %105 = vmatpush1.bf16.msra.mxu0 0
  %106 = vmatprep.subr.bf16.mxu0 0
  %107 = vmatpush1.bf16.msra.mxu0 0
  %108 = vmatprep.subr.bf16.mxu0 0
  %109 = vmatpush1.bf16.msra.mxu0 %v89
  %110 = vmatprep.subr.bf16.mxu0 0
  %111 = vmatpush1.bf16.msra.mxu0 %v88
  %112 = vmatprep.subr.bf16.mxu0 0
  %113 = vmatpush2.bf16.msra.mxu0 0
  %114 = vmatprep.subr.bf16.mxu0 0
  %115 = vmatpush2.bf16.msra.mxu0 0
  %116 = vmatprep.subr.bf16.mxu0 0
  %117 = vmatpush2.bf16.msra.mxu0 0
  %118 = vmatprep.subr.bf16.mxu0 0
  %119 = vmatpush2.bf16.msra.mxu0 0
  %120 = vmatprep.subr.bf16.mxu0 0
  %121 = vmatpush2.bf16.msra.mxu0 0
  %122 = vmatprep.subr.bf16.mxu0 0
  %123 = vmatpush2.bf16.msra.mxu0 0
  %124 = vmatprep.subr.bf16.mxu0 0
  %125 = vmatpush2.bf16.msra.mxu0 0
  %126 = vmatprep.subr.bf16.mxu0 0
  %127 = vmatpush2.bf16.msra.mxu0 0
  %128 = vmatprep.mubr.bf16.mxu0 0
  %129 = vmatmul.mubr.bf16.gmra.mxu0 %v94
  %v130 = vpop.f32.mrf.mxu0
  %v131 = vadd.f32 %v78, %v130
  %v132 = vpop.f32.mrf.mxu0
  %v133 = vpop.f32.mrf.mxu0
  %v134 = vpop.f32.mrf.mxu0
  %135 = vdwg.mxu0
  %v136 = vmul.f32 %v131, 0.5
  %v137 = vmul.f32 %v131, 0.044715
  %v138 = vmul.f32 %v137, %v131
  %v139 = vmul.f32 %v138, %v131
  %v140 = vadd.f32 %v131, %v139
  %v141 = vmul.f32 %v140, 0.7978846
  %v142 = vtanh.pop %v141
  %v143 = vadd.f32 %v142, 1.0
  %v144 = vmul.f32 %v136, %v143
  %v145 = vpack.c.bf16 %v144, %v144
  %v146 = vld [vmem:[#allocation3] sm:$0xff]
  %v147 = vld [vmem:[%s5] sm:$0xf]
  %v148 = vld [vmem:[%s5 + $0x4] sm:$0xf]
  %v149 = vld [vmem:[%s5 + $0x8] sm:$0xf]
  %v150 = vld [vmem:[%s5 + $0xc] sm:$0xf]
  %v151 = vld [vmem:[%s5 + $0x10] sm:$0xf]
  %v152 = vld [vmem:[%s5 + $0x14] sm:$0xf]
  %v153 = vld [vmem:[%s5 + $0x18] sm:$0xf]
  %v154 = vld [vmem:[%s5 + $0x1c] sm:$0xf]
  %v163 = vunpack.c.l.b16 %v147
  %v164 = vunpack.c.l.b16 %v148
  %v165 = vunpack.c.l.b16 %v149
  %v166 = vunpack.c.l.b16 %v150
  %v167 = vunpack.c.l.b16 %v151
  %v168 = vunpack.c.l.b16 %v152
  %v169 = vunpack.c.l.b16 %v153
  %v170 = vunpack.c.l.b16 %v154
  %v171 = vpack.c.b16 %v164, %v163
  %v172 = vpack.c.b16 %v166, %v165
  %v173 = vpack.c.b16 %v168, %v167
  %v174 = vpack.c.b16 %v170, %v169
  %vm179 = vcmask 523264
  %v181 = vsel %vm179, %v145, 0
  %183 = vmatprep.subr.bf16.mxu0 0
  %184 = vmatpush1.bf16.msra.mxu0 0
  %185 = vmatprep.subr.bf16.mxu0 0
  %186 = vmatpush1.bf16.msra.mxu0 0
  %187 = vmatprep.subr.bf16.mxu0 0
  %188 = vmatpush1.bf16.msra.mxu0 0
  %189 = vmatprep.subr.bf16.mxu0 0
  %190 = vmatpush1.bf16.msra.mxu0 0
  %191 = vmatprep.subr.bf16.mxu0 0
  %192 = vmatpush1.bf16.msra.mxu0 %v174
  %193 = vmatprep.subr.bf16.mxu0 0
  %194 = vmatpush1.bf16.msra.mxu0 %v173
  %195 = vmatprep.subr.bf16.mxu0 0
  %196 = vmatpush1.bf16.msra.mxu0 %v172
  %197 = vmatprep.subr.bf16.mxu0 0
  %198 = vmatpush1.bf16.msra.mxu0 %v171
  %199 = vmatprep.subr.bf16.mxu0 0
  %200 = vmatpush2.bf16.msra.mxu0 0
  %201 = vmatprep.subr.bf16.mxu0 0
  %202 = vmatpush2.bf16.msra.mxu0 0
  %203 = vmatprep.subr.bf16.mxu0 0
  %204 = vmatpush2.bf16.msra.mxu0 0
  %205 = vmatprep.subr.bf16.mxu0 0
  %206 = vmatpush2.bf16.msra.mxu0 0
  %207 = vmatprep.subr.bf16.mxu0 0
  %208 = vmatpush2.bf16.msra.mxu0 0
  %209 = vmatprep.subr.bf16.mxu0 0
  %210 = vmatpush2.bf16.msra.mxu0 0
  %211 = vmatprep.subr.bf16.mxu0 0
  %212 = vmatpush2.bf16.msra.mxu0 0
  %213 = vmatprep.subr.bf16.mxu0 0
  %214 = vmatpush2.bf16.msra.mxu0 0
  %215 = vmatprep.mubr.bf16.mxu0 0
  %216 = vmatmul.mubr.bf16.gmra.mxu0 %v181
  %v217 = vpop.f32.mrf.mxu0
  %v218 = vadd.f32 0.0, %v217
  %v219 = vpop.f32.mrf.mxu0
  %v220 = vpop.f32.mrf.mxu0
  %v221 = vpop.f32.mrf.mxu0
  %222 = vdwg.mxu0
  %v223 = vadd.f32 %v146, %v218
  %224 = vst.msk [vmem:[#allocation3] sm:$0xff] %vm92, %v223
  // Predicated region
  $region34: #{paligemma_forward.23} parent=0 // pred_check
    %p225 = pneg %p27
  $region35: #{paligemma_forward.23} parent=0 // pred_check_branch
    %227 = sbr.rel (%p225) target = $region37
  $region36: #{paligemma_forward.23} parent=0 // pred_region
    %v228 = vld [vmem:[#allocation3] sm:$0xff]
    %v229 = vld [vmem:[%s6] sm:$0x1]
    %v231 = vlaneseq
    %v232 = vshrl.u32 %v231, 7
    %v233 = vsub.s32 0, %v232
    %v234 = vrot.slane %v229, %v233
    %v236 = vadd.f32 %v228, %v234
    %v237 = vld [vmem:[%s0] sm:$0xf]
    %v238 = vunpack.c.l.bf16 %v237
    %v239 = vadd.f32 %v236, %v238
    %v240 = vpack.c.bf16 %v239, %v239
    %vm241 = vcmask 257024
    %242 = vst.msk [vmem:[%s7] sm:$0xf] %vm241, %v240
  $region37: #{paligemma_forward.23} parent=0 // pred_fallthru
    _
  // Predicated region
  $region38: #{paligemma_forward.23} parent=0 // pred_check
    _
  $region39: #{paligemma_forward.23} parent=0 // pred_check_branch
    %244 = sbr.rel (0) target = $region41
  $region40: #{paligemma_forward.23} parent=0 // pred_region
    _
  $region41: #{paligemma_forward.23} parent=0 // pred_fallthru
    _
  // Predicated region
  $region42: #{paligemma_forward.23} parent=0 // pred_check
    _
  $region43: #{paligemma_forward.23} parent=0 // pred_check_branch
    %246 = sbr.rel (0) target = $region45
  $region44: #{paligemma_forward.23} parent=0 // pred_region
    _
  $region45: #{paligemma_forward.23} parent=0 // pred_fallthru
    _

// kernel: paligemma_forward.28
$region0: #{paligemma_forward.28}
  #allocation0 [shape = 'u32[]', space=smem, size = 0x4, offset = 0x4, fixed_abs, tag = 'smem constant byte address 0x4 - core index']
  #allocation1 [shape = 'u32[144,128]{1,0:T(1,128)}', space=vmem, size = 0x12000, scoped, tag = 'internal scratch']
  #allocation2 [shape = 'bf16[8,32]{1,0:T(8,128)(2,1)}', space=vmem, size = 0x800, scoped, tag = 'scratch operand']
  %s0 = inlined_call_operand.vmem [shape: bf16[8,32], index: 0, kind: input, shape index: {}]
  %s1 = inlined_call_operand.vmem [shape: f32[1,32], index: 1, kind: input, shape index: {}]
  %s2 = inlined_call_operand.vmem [shape: f32[1,32], index: 2, kind: input, shape index: {}]
  %s3 = inlined_call_operand.vmem [shape: bf16[32,32], index: 3, kind: input, shape index: {}]
  %s4 = inlined_call_operand.vmem [shape: f32[1,32], index: 4, kind: input, shape index: {}]
  %s5 = inlined_call_operand.vmem [shape: f32[8,32], index: 5, kind: output, shape index: {}]
  %s6 = sld [smem:[#allocation0]]
  $region34: #{paligemma_forward.28} parent=0
    _
  %s8 = ssub.s32 1, %s6
  %s9 = scalar_select 0, %s8, %s6
  // Predicated region
  $region2: #{paligemma_forward.28} parent=0 // pred_check
    _
  $region3: #{paligemma_forward.28} parent=0 // pred_check_branch
    %11 = sbr.rel (0) target = $region5
  $region4: #{paligemma_forward.28} parent=0 // pred_region
    _
  $region5: #{paligemma_forward.28} parent=0 // pred_fallthru
    _
  // Predicated region
  $region6: #{paligemma_forward.28} parent=0 // pred_check
    _
  $region7: #{paligemma_forward.28} parent=0 // pred_check_branch
    %13 = sbr.rel (0) target = $region9
  $region8: #{paligemma_forward.28} parent=0 // pred_region
    _
  $region9: #{paligemma_forward.28} parent=0 // pred_fallthru
    _
  // Predicated region
  $region10: #{paligemma_forward.28} parent=0 // pred_check
    _
  $region11: #{paligemma_forward.28} parent=0 // pred_check_branch
    %15 = sbr.rel (0) target = $region13
  $region12: #{paligemma_forward.28} parent=0 // pred_region
    _
  $region13: #{paligemma_forward.28} parent=0 // pred_fallthru
    _
  // Predicated region
  $region14: #{paligemma_forward.28} parent=0 // pred_check
    _
  $region15: #{paligemma_forward.28} parent=0 // pred_check_branch
    %17 = sbr.rel (0) target = $region17
  $region16: #{paligemma_forward.28} parent=0 // pred_region
    _
  $region17: #{paligemma_forward.28} parent=0 // pred_fallthru
    _
  // Predicated region
  $region18: #{paligemma_forward.28} parent=0 // pred_check
    _
  $region19: #{paligemma_forward.28} parent=0 // pred_check_branch
    %19 = sbr.rel (0) target = $region21
  $region20: #{paligemma_forward.28} parent=0 // pred_region
    _
  $region21: #{paligemma_forward.28} parent=0 // pred_fallthru
    _
  %p21 = scmp.eq.s32.totalorder 0, 0
  // Predicated region
  $region22: #{paligemma_forward.28} parent=0 // pred_check
    %p22 = pneg %p21
  $region23: #{paligemma_forward.28} parent=0 // pred_check_branch
    %24 = sbr.rel (%p22) target = $region25
  $region24: #{paligemma_forward.28} parent=0 // pred_region
    %v25 = vld [vmem:[%s0] sm:$0xf]
    %v26 = vunpack.c.l.bf16 %v25
    %vm27 = vcmask 261120
    %v28 = vsel %vm27, %v26, 0.0
    %29 = vadd.xlane.f32.xlu0 %v28
    %v30 = vpop.xlane.xlu0 %29
    %v31 = vrcp.pop 32.0
    %v32 = vmul.f32 %v30, %v31
    %v33 = vsub.f32 %v26, %v32
    %v34 = vmul.f32 %v33, %v33
    %v35 = vsel %vm27, %v34, 0.0
    %36 = vadd.xlane.f32.xlu0 %v35
    %v37 = vpop.xlane.xlu0 %36
    %v38 = vmul.f32 %v37, %v31
    %v39 = vadd.f32 %v38, 1e-06
    %v40 = vrsqrt.pop %v39
    %v41 = vmul.f32 %v33, %v40
    %v42 = vld [vmem:[%s1] sm:$0x1]
    %v44 = vlaneseq
    %v45 = vshrl.u32 %v44, 7
    %v46 = vsub.s32 0, %v45
    %v47 = vrot.slane %v42, %v46
    %v49 = vmul.f32 %v41, %v47
    %v50 = vld [vmem:[%s2] sm:$0x1]
    %v52 = vlaneseq
    %v53 = vshrl.u32 %v52, 7
    %v54 = vsub.s32 0, %v53
    %v55 = vrot.slane %v50, %v54
    %v57 = vadd.f32 %v49, %v55
    %v58 = vpack.c.bf16 %v57, %v57
    %vm59 = vcmask 257024
    %60 = vst.msk [vmem:[#allocation2] sm:$0xf] %vm59, %v58
  $region25: #{paligemma_forward.28} parent=0 // pred_fallthru
    _
  %v61 = vld [vmem:[#allocation2] sm:$0xf]
  %v62 = vld [vmem:[%s3] sm:$0xf]
  %v63 = vld [vmem:[%s3 + $0x4] sm:$0xf]
  %v64 = vld [vmem:[%s3 + $0x8] sm:$0xf]
  %v65 = vld [vmem:[%s3 + $0xc] sm:$0xf]
  %v66 = vld [vmem:[%s4] sm:$0x1]
  %v68 = vlaneseq
  %v69 = vshrl.u32 %v68, 7
  %v70 = vsub.s32 0, %v69
  %v71 = vrot.slane %v66, %v70
  %v77 = vunpack.c.l.b16 %v62
  %v78 = vunpack.c.l.b16 %v63
  %v79 = vunpack.c.l.b16 %v64
  %v80 = vunpack.c.l.b16 %v65
  %v81 = vpack.c.b16 %v78, %v77
  %v82 = vpack.c.b16 %v80, %v79
  %vm85 = vcmask 261120
  %v87 = vsel %vm85, %v61, 0
  %89 = vmatprep.subr.bf16.mxu0 0
  %90 = vmatpush1.bf16.msra.mxu0 0
  %91 = vmatprep.subr.bf16.mxu0 0
  %92 = vmatpush1.bf16.msra.mxu0 0
  %93 = vmatprep.subr.bf16.mxu0 0
  %94 = vmatpush1.bf16.msra.mxu0 0
  %95 = vmatprep.subr.bf16.mxu0 0
  %96 = vmatpush1.bf16.msra.mxu0 0
  %97 = vmatprep.subr.bf16.mxu0 0
  %98 = vmatpush1.bf16.msra.mxu0 0
  %99 = vmatprep.subr.bf16.mxu0 0
  %100 = vmatpush1.bf16.msra.mxu0 0
  %101 = vmatprep.subr.bf16.mxu0 0
  %102 = vmatpush1.bf16.msra.mxu0 %v82
  %103 = vmatprep.subr.bf16.mxu0 0
  %104 = vmatpush1.bf16.msra.mxu0 %v81
  %105 = vmatprep.subr.bf16.mxu0 0
  %106 = vmatpush2.bf16.msra.mxu0 0
  %107 = vmatprep.subr.bf16.mxu0 0
  %108 = vmatpush2.bf16.msra.mxu0 0
  %109 = vmatprep.subr.bf16.mxu0 0
  %110 = vmatpush2.bf16.msra.mxu0 0
  %111 = vmatprep.subr.bf16.mxu0 0
  %112 = vmatpush2.bf16.msra.mxu0 0
  %113 = vmatprep.subr.bf16.mxu0 0
  %114 = vmatpush2.bf16.msra.mxu0 0
  %115 = vmatprep.subr.bf16.mxu0 0
  %116 = vmatpush2.bf16.msra.mxu0 0
  %117 = vmatprep.subr.bf16.mxu0 0
  %118 = vmatpush2.bf16.msra.mxu0 0
  %119 = vmatprep.subr.bf16.mxu0 0
  %120 = vmatpush2.bf16.msra.mxu0 0
  %121 = vmatprep.mubr.bf16.mxu0 0
  %122 = vmatmul.mubr.bf16.gmra.mxu0 %v87
  %v123 = vpop.f32.mrf.mxu0
  %v124 = vadd.f32 %v71, %v123
  %v125 = vpop.f32.mrf.mxu0
  %v126 = vpop.f32.mrf.mxu0
  %v127 = vpop.f32.mrf.mxu0
  %128 = vdwg.mxu0
  %129 = vst.msk [vmem:[%s5] sm:$0xff] %vm85, %v124
  // Predicated region
  $region26: #{paligemma_forward.28} parent=0 // pred_check
    _
  $region27: #{paligemma_forward.28} parent=0 // pred_check_branch
    %131 = sbr.rel (0) target = $region29
  $region28: #{paligemma_forward.28} parent=0 // pred_region
    _
  $region29: #{paligemma_forward.28} parent=0 // pred_fallthru
    _
  // Predicated region
  $region30: #{paligemma_forward.28} parent=0 // pred_check
    _
  $region31: #{paligemma_forward.28} parent=0 // pred_check_branch
    %133 = sbr.rel (0) target = $region33
  $region32: #{paligemma_forward.28} parent=0 // pred_region
    _
  $region33: #{paligemma_forward.28} parent=0 // pred_fallthru
    _

// kernel: paligemma_forward.29
$region0: #{paligemma_forward.29}
  #allocation0 [shape = 'u32[]', space=smem, size = 0x4, offset = 0x4, fixed_abs, tag = 'smem constant byte address 0x4 - core index']
  #allocation1 [shape = 'u32[144,128]{1,0:T(1,128)}', space=vmem, size = 0x12000, scoped, tag = 'internal scratch']
  #allocation2 [shape = 'bf16[16,32]{1,0:T(8,128)(2,1)}', space=vmem, size = 0x1000, scoped, tag = 'scratch operand']
  %s0 = inlined_call_operand.vmem [shape: bf16[16,32], index: 0, kind: input, shape index: {}]
  %s1 = inlined_call_operand.vmem [shape: f32[1,32], index: 1, kind: input, shape index: {}]
  %s2 = inlined_call_operand.vmem [shape: bf16[32,128], index: 2, kind: input, shape index: {}]
  %s3 = inlined_call_operand.vmem [shape: bf16[16,128], index: 3, kind: output, shape index: {}]
  %s4 = sld [smem:[#allocation0]]
  $region26: #{paligemma_forward.29} parent=0
    _
  %s6 = ssub.s32 1, %s4
  %s7 = scalar_select 0, %s6, %s4
  // Predicated region
  $region2: #{paligemma_forward.29} parent=0 // pred_check
    _
  $region3: #{paligemma_forward.29} parent=0 // pred_check_branch
    %9 = sbr.rel (0) target = $region5
  $region4: #{paligemma_forward.29} parent=0 // pred_region
    _
  $region5: #{paligemma_forward.29} parent=0 // pred_fallthru
    _
  // Predicated region
  $region6: #{paligemma_forward.29} parent=0 // pred_check
    _
  $region7: #{paligemma_forward.29} parent=0 // pred_check_branch
    %11 = sbr.rel (0) target = $region9
  $region8: #{paligemma_forward.29} parent=0 // pred_region
    _
  $region9: #{paligemma_forward.29} parent=0 // pred_fallthru
    _
  // Predicated region
  $region10: #{paligemma_forward.29} parent=0 // pred_check
    _
  $region11: #{paligemma_forward.29} parent=0 // pred_check_branch
    %13 = sbr.rel (0) target = $region13
  $region12: #{paligemma_forward.29} parent=0 // pred_region
    _
  $region13: #{paligemma_forward.29} parent=0 // pred_fallthru
    _
  %p15 = scmp.eq.s32.totalorder 0, 0
  // Predicated region
  $region14: #{paligemma_forward.29} parent=0 // pred_check
    %p16 = pneg %p15
  $region15: #{paligemma_forward.29} parent=0 // pred_check_branch
    %18 = sbr.rel (%p16) target = $region17
  $region16: #{paligemma_forward.29} parent=0 // pred_region
    %v19 = vld [vmem:[%s0] sm:$0xf]
    %v20 = vld [vmem:[%s0 + $0x4] sm:$0xf]
    %v21 = vunpack.c.l.bf16 %v19
    %v22 = vunpack.c.l.bf16 %v20
    %v23 = vmul.f32 %v21, %v21
    %v24 = vmul.f32 %v22, %v22
    %vm25 = vcmask 261120
    %v26 = vsel %vm25, %v23, 0.0
    %27 = vadd.xlane.f32.xlu0 %v26
    %v28 = vpop.xlane.xlu0 %27
    %v29 = vsel %vm25, %v24, 0.0
    %30 = vadd.xlane.f32.xlu0 %v29
    %v31 = vpop.xlane.xlu0 %30
    %v32 = vrcp.pop 32.0
    %v33 = vmul.f32 %v28, %v32
    %v34 = vmul.f32 %v31, %v32
    %v35 = vadd.f32 %v33, 1e-06
    %v36 = vadd.f32 %v34, 1e-06
    %v37 = vrsqrt.pop %v35
    %v38 = vrsqrt.pop %v36
    %v39 = vmul.f32 %v21, %v37
    %v40 = vmul.f32 %v22, %v38
    %v41 = vld [vmem:[%s1] sm:$0x1]
    %v42 = vadd.f32 %v41, 1.0
    %v44 = vlaneseq
    %v45 = vshrl.u32 %v44, 7
    %v46 = vsub.s32 0, %v45
    %v47 = vrot.slane %v42, %v46
    %v49 = vmul.f32 %v39, %v47
    %v50 = vmul.f32 %v40, %v47
    %v51 = vpack.c.bf16 %v50, %v49
    %v53 = vunpack.c.l.b16 %v51
    %v54 = vunpack.c.h.b16 %v51
    %v55 = vpack.c.b16 %v53, %v53
    %v56 = vpack.c.b16 %v54, %v54
    %vm59 = vcmask 257024
    %60 = vst.msk [vmem:[#allocation2] sm:$0xf] %vm59, %v55
    %61 = vst.msk [vmem:[#allocation2 + $0x4] sm:$0xf] %vm59, %v56
  $region17: #{paligemma_forward.29} parent=0 // pred_fallthru
    _
  %v62 = vld [vmem:[#allocation2] sm:$0xf]
  %v63 = vld [vmem:[#allocation2 + $0x4] sm:$0xf]
  %v64 = vld [vmem:[%s2] sm:$0xf]
  %v65 = vld [vmem:[%s2 + $0x4] sm:$0xf]
  %v66 = vld [vmem:[%s2 + $0x8] sm:$0xf]
  %v67 = vld [vmem:[%s2 + $0xc] sm:$0xf]
  %v70 = vunpack.c.l.b16 %v62
  %v71 = vunpack.c.l.b16 %v63
  %v72 = vpack.c.b16 %v71, %v70
  %v77 = vunpack.c.l.b16 %v64
  %v78 = vunpack.c.l.b16 %v65
  %v79 = vunpack.c.l.b16 %v66
  %v80 = vunpack.c.l.b16 %v67
  %v81 = vpack.c.b16 %v78, %v77
  %v82 = vpack.c.b16 %v80, %v79
  %vm85 = vcmask 261120
  %v87 = vsel %vm85, %v72, 0
  %89 = vmatprep.subr.bf16.mxu0 0
  %90 = vmatpush1.bf16.msra.mxu0 0
  %91 = vmatprep.subr.bf16.mxu0 0
  %92 = vmatpush1.bf16.msra.mxu0 0
  %93 = vmatprep.subr.bf16.mxu0 0
  %94 = vmatpush1.bf16.msra.mxu0 0
  %95 = vmatprep.subr.bf16.mxu0 0
  %96 = vmatpush1.bf16.msra.mxu0 0
  %97 = vmatprep.subr.bf16.mxu0 0
  %98 = vmatpush1.bf16.msra.mxu0 0
  %99 = vmatprep.subr.bf16.mxu0 0
  %100 = vmatpush1.bf16.msra.mxu0 0
  %101 = vmatprep.subr.bf16.mxu0 0
  %102 = vmatpush1.bf16.msra.mxu0 %v82
  %103 = vmatprep.subr.bf16.mxu0 0
  %104 = vmatpush1.bf16.msra.mxu0 %v81
  %105 = vmatprep.subr.bf16.mxu0 0
  %106 = vmatpush2.bf16.msra.mxu0 0
  %107 = vmatprep.subr.bf16.mxu0 0
  %108 = vmatpush2.bf16.msra.mxu0 0
  %109 = vmatprep.subr.bf16.mxu0 0
  %110 = vmatpush2.bf16.msra.mxu0 0
  %111 = vmatprep.subr.bf16.mxu0 0
  %112 = vmatpush2.bf16.msra.mxu0 0
  %113 = vmatprep.subr.bf16.mxu0 0
  %114 = vmatpush2.bf16.msra.mxu0 0
  %115 = vmatprep.subr.bf16.mxu0 0
  %116 = vmatpush2.bf16.msra.mxu0 0
  %117 = vmatprep.subr.bf16.mxu0 0
  %118 = vmatpush2.bf16.msra.mxu0 0
  %119 = vmatprep.subr.bf16.mxu0 0
  %120 = vmatpush2.bf16.msra.mxu0 0
  %121 = vmatprep.mubr.bf16.mxu0 0
  %122 = vmatmul.mubr.bf16.gmra.mxu0 %v87
  %v123 = vpop.f32.mrf.mxu0
  %v124 = vadd.f32 0.0, %v123
  %v125 = vpop.f32.mrf.mxu0
  %v126 = vpop.f32.mrf.mxu0
  %v127 = vadd.f32 0.0, %v126
  %v128 = vpop.f32.mrf.mxu0
  %129 = vdwg.mxu0
  %v130 = vpack.c.bf16 %v127, %v124
  %v132 = vunpack.c.l.b16 %v130
  %v133 = vunpack.c.h.b16 %v130
  %v134 = vpack.c.b16 %v132, %v132
  %v135 = vpack.c.b16 %v133, %v133
  %138 = vst [vmem:[%s3] sm:$0xf] %v134
  %139 = vst [vmem:[%s3 + $0x4] sm:$0xf] %v135
  // Predicated region
  $region18: #{paligemma_forward.29} parent=0 // pred_check
    _
  $region19: #{paligemma_forward.29} parent=0 // pred_check_branch
    %141 = sbr.rel (0) target = $region21
  $region20: #{paligemma_forward.29} parent=0 // pred_region
    _
  $region21: #{paligemma_forward.29} parent=0 // pred_fallthru
    _
  // Predicated region
  $region22: #{paligemma_forward.29} parent=0 // pred_check
    _
  $region23: #{paligemma_forward.29} parent=0 // pred_check_branch
    %143 = sbr.rel (0) target = $region25
  $region24: #{paligemma_forward.29} parent=0 // pred_region
    _
  $region25: #{paligemma_forward.29} parent=0 // pred_fallthru
    _

// kernel: paligemma_forward.30
$region0: #{paligemma_forward.30}
  #allocation0 [shape = 'u32[]', space=smem, size = 0x4, offset = 0x4, fixed_abs, tag = 'smem constant byte address 0x4 - core index']
  #allocation1 [shape = 'u32[144,128]{1,0:T(1,128)}', space=vmem, size = 0x12000, scoped, tag = 'internal scratch']
  #allocation2 [shape = 'f32[16,1]{1,0:T(8,128)}', space=vmem, size = 0x2000, scoped, tag = 'scratch operand']
  #allocation3 [shape = 'f32[16,1]{1,0:T(8,128)}', space=vmem, size = 0x2000, scoped, tag = 'scratch operand']
  #allocation4 [shape = 'f32[16,16]{1,0:T(8,128)}', space=vmem, size = 0x2000, scoped, tag = 'scratch operand']
  %s0 = inlined_call_operand.vmem [shape: bf16[2,4,8,16], index: 0, kind: input, shape index: {}]
  %s1 = inlined_call_operand.vmem [shape: bf16[2,2,8,16], index: 1, kind: input, shape index: {}]
  %s2 = inlined_call_operand.vmem [shape: bf16[2,2,8,16], index: 2, kind: input, shape index: {}]
  %s3 = inlined_call_operand.vmem [shape: bf16[2,4,8,16], index: 3, kind: output, shape index: {}]
  %s4 = sld [smem:[#allocation0]]
  $region53: #{paligemma_forward.30} parent=0
    _
  %s6 = ssub.s32 1, %s4
  %s7 = scalar_select 0, %s6, %s4
  loop: start=0, step=1, limit=6
  $region2: #{paligemma_forward.30} parent=0 // loop_pre_header
    _
  $region3: #{paligemma_forward.30} parent=0 // loop_header
    %s9 = sphi 0, %s13
    %p10 = scmp.ge.s32.totalorder %s9, 6
    %s16 = sphi 0, %s42
    %s17 = sphi 0, %s38
    %s18 = sphi 0, %s34
    %s19 = sphi 0, %s30
    %s20 = sphi 0, %s16
    %s21 = sphi 0, %s17
    %s22 = sphi 0, %s18
    %s23 = sphi 0, %s19
    %s24 = sphi 0, %s20
    %s25 = sphi 0, %s21
    %s26 = sphi 0, %s22
    %s27 = sphi 0, %s23
    %s49 = sphi 0, %s51
    %s52 = sphi 0, %s49
    %s53 = sphi 0, %s52
    %s69 = sphi 0, %s53
    %s79 = sphi 0, %s81
    %s82 = sphi 0, %s79
    %s83 = sphi 0, %s82
    %s99 = sphi 0, %s83
    %s109 = sphi 0, %s111
    %s112 = sphi 0, %s109
    %s113 = sphi 0, %s112
    %s129 = sphi 0, %s113
    %s139 = sphi 0, %s141
    %s142 = sphi 0, %s139
    %s143 = sphi 0, %s142
    %s159 = sphi 0, %s143
  $region4: #{paligemma_forward.30} parent=0 // loop_header_branch
    %12 = sbr.rel (%p10) target = $region8
  $region5: #{paligemma_forward.30} parent=0 // loop_body
    %s14 = ssub.s32 %s9, 1
    %s15 = ssub.s32 %s9, 2
    %s28 = sadd.s32 1, %s19
    %p29 = scmp.ge.s32.totalorder %s28, 1
    %s30 = scalar_select %p29, 0, %s28
    %s31 = sadd.s32 1, %s18
    %s32 = scalar_select %p29, %s31, %s18
    %p33 = scmp.ge.s32.totalorder %s32, 1
    %s34 = scalar_select %p33, 0, %s32
    %s35 = sadd.s32 1, %s17
    %s36 = scalar_select %p33, %s35, %s17
    %p37 = scmp.ge.s32.totalorder %s36, 2
    %s38 = scalar_select %p37, 0, %s36
    %s39 = sadd.s32 1, %s16
    %s40 = scalar_select %p37, %s39, %s16
    %p41 = scmp.ge.s32.totalorder %s40, 2
    %s42 = scalar_select %p41, 0, %s40
    %s43 = ssub.s32 %s16, %s42
    %s44 = ssub.s32 %s17, %s38
    %s45 = sor.u32 %s43, %s44
    %s46 = ssub.s32 %s18, %s34
    %s47 = sor.u32 %s45, %s46
    %p48 = scmp.eq.s32.totalorder %s47, 0
    %s50 = sadd.s32 %s49, 1
    %s51 = scalar_select %p48, %s49, %s50
    %p54 = pneg %p48
    %p55 = scmp.eq.s32.totalorder %s9, 3
    %p56 = por %p54, %p55
    %p57 = scmp.ne.s32.totalorder %s49, %s52
    %p58 = scmp.eq.s32.totalorder %s9, 0
    %p59 = por %p57, %p58
    %p60 = scmp.ne.s32.totalorder %s49, %s52
    %p61 = scmp.eq.s32.totalorder %s14, 3
    %p62 = por %p60, %p61
    %p63 = scmp.ne.s32.totalorder %s52, %s53
    %p64 = scmp.eq.s32.totalorder %s14, 0
    %p65 = por %p63, %p64
    %p66 = scmp.ne.s32.totalorder %s52, %s53
    %p67 = scmp.eq.s32.totalorder %s15, 3
    %p68 = por %p66, %p67
    %p70 = scmp.ne.s32.totalorder %s53, %s69
    %p71 = scmp.eq.s32.totalorder %s15, 0
    %p72 = por %p70, %p71
    %s73 = ssub.s32 %s16, %s42
    %s74 = ssub.s32 %s17, %s38
    %s75 = sor.u32 %s73, %s74
    %s76 = ssub.s32 %s19, %s30
    %s77 = sor.u32 %s75, %s76
    %p78 = scmp.eq.s32.totalorder %s77, 0
    %s80 = sadd.s32 %s79, 1
    %s81 = scalar_select %p78, %s79, %s80
    %p84 = pneg %p78
    %p85 = scmp.eq.s32.totalorder %s9, 3
    %p86 = por %p84, %p85
    %p87 = scmp.ne.s32.totalorder %s79, %s82
    %p88 = scmp.eq.s32.totalorder %s9, 0
    %p89 = por %p87, %p88
    %p90 = scmp.ne.s32.totalorder %s79, %s82
    %p91 = scmp.eq.s32.totalorder %s14, 3
    %p92 = por %p90, %p91
    %p93 = scmp.ne.s32.totalorder %s82, %s83
    %p94 = scmp.eq.s32.totalorder %s14, 0
    %p95 = por %p93, %p94
    %p96 = scmp.ne.s32.totalorder %s82, %s83
    %p97 = scmp.eq.s32.totalorder %s15, 3
    %p98 = por %p96, %p97
    %p100 = scmp.ne.s32.totalorder %s83, %s99
    %p101 = scmp.eq.s32.totalorder %s15, 0
    %p102 = por %p100, %p101
    %s103 = ssub.s32 %s16, %s42
    %s104 = ssub.s32 %s17, %s38
    %s105 = sor.u32 %s103, %s104
    %s106 = ssub.s32 %s19, %s30
    %s107 = sor.u32 %s105, %s106
    %p108 = scmp.eq.s32.totalorder %s107, 0
    %s110 = sadd.s32 %s109, 1
    %s111 = scalar_select %p108, %s109, %s110
    %p114 = pneg %p108
    %p115 = scmp.eq.s32.totalorder %s9, 3
    %p116 = por %p114, %p115
    %p117 = scmp.ne.s32.totalorder %s109, %s112
    %p118 = scmp.eq.s32.totalorder %s9, 0
    %p119 = por %p117, %p118
    %p120 = scmp.ne.s32.totalorder %s109, %s112
    %p121 = scmp.eq.s32.totalorder %s14, 3
    %p122 = por %p120, %p121
    %p123 = scmp.ne.s32.totalorder %s112, %s113
    %p124 = scmp.eq.s32.totalorder %s14, 0
    %p125 = por %p123, %p124
    %p126 = scmp.ne.s32.totalorder %s112, %s113
    %p127 = scmp.eq.s32.totalorder %s15, 3
    %p128 = por %p126, %p127
    %p130 = scmp.ne.s32.totalorder %s113, %s129
    %p131 = scmp.eq.s32.totalorder %s15, 0
    %p132 = por %p130, %p131
    %s133 = ssub.s32 %s16, %s42
    %s134 = ssub.s32 %s17, %s38
    %s135 = sor.u32 %s133, %s134
    %s136 = ssub.s32 %s18, %s34
    %s137 = sor.u32 %s135, %s136
    %p138 = scmp.eq.s32.totalorder %s137, 0
    %s140 = sadd.s32 %s139, 1
    %s141 = scalar_select %p138, %s139, %s140
    %p144 = pneg %p138
    %p145 = scmp.eq.s32.totalorder %s9, 3
    %p146 = por %p144, %p145
    %p147 = scmp.ne.s32.totalorder %s139, %s142
    %p148 = scmp.eq.s32.totalorder %s9, 0
    %p149 = por %p147, %p148
    %p150 = scmp.ne.s32.totalorder %s139, %s142
    %p151 = scmp.eq.s32.totalorder %s14, 3
    %p152 = por %p150, %p151
    %p153 = scmp.ne.s32.totalorder %s142, %s143
    %p154 = scmp.eq.s32.totalorder %s14, 0
    %p155 = por %p153, %p154
    %p156 = scmp.ne.s32.totalorder %s142, %s143
    %p157 = scmp.eq.s32.totalorder %s15, 3
    %p158 = por %p156, %p157
    %p160 = scmp.ne.s32.totalorder %s143, %s159
    %p161 = scmp.eq.s32.totalorder %s15, 0
    %p162 = por %p160, %p161
    %p163 = scmp.le.s32.totalorder 1, %s9
    %p164 = scmp.lt.s32.totalorder %s9, 5
    %p165 = pnand %p163, %p164
    %p166 = pneg %p165
    // Predicated region
    $region9: #{paligemma_forward.30} parent=5 // pred_check
      _
    $region10: #{paligemma_forward.30} parent=5 // pred_check_branch
      %168 = sbr.rel (%p165) target = $region12
    $region11: #{paligemma_forward.30} parent=5 // pred_region
      %s169 = ssub.s32 %s9, 1
    $region12: #{paligemma_forward.30} parent=5 // pred_fallthru
      _
    %p170 = scmp.lt.s32.totalorder %s9, 4
    // Predicated region
    $region13: #{paligemma_forward.30} parent=5 // pred_check
      %p171 = pneg %p170
    $region14: #{paligemma_forward.30} parent=5 // pred_check_branch
      %173 = sbr.rel (%p171) target = $region16
    $region15: #{paligemma_forward.30} parent=5 // pred_region
      // Predicated region
      $region17: #{paligemma_forward.30} parent=15 // pred_check
        %p174 = pneg %p59
      $region18: #{paligemma_forward.30} parent=15 // pred_check_branch
        %176 = sbr.rel (%p174) target = $region20
      $region19: #{paligemma_forward.30} parent=15 // pred_region
        %s177 = smul.u32 2, %s17
        %p178 = scmp.lt.s32.totalorder %s16, 1
        %s179 = scalar_select %p178, %s16, 1
        %p180 = scmp.lt.s32.totalorder %s177, 3
        %s181 = scalar_select %p180, %s177, 3
        %p182 = scmp.lt.s32.totalorder %s18, 0
        %s183 = scalar_select %p182, %s18, 0
        %s184 = sadd.s32 %s183, %s181
        %s185 = smul.addr %s179, 4
        %s186 = sadd.s32 %s184, %s185
        %s187 = smul.addr %s186, 4
        %s188 = scalar_lea.vmem %s0, %s187
        %s189 = smul.u32 2, %s17
      $region20: #{paligemma_forward.30} parent=15 // pred_fallthru
        _
      // Predicated region
      $region21: #{paligemma_forward.30} parent=15 // pred_check
        %p190 = pneg %p89
      $region22: #{paligemma_forward.30} parent=15 // pred_check_branch
        %192 = sbr.rel (%p190) target = $region24
      $region23: #{paligemma_forward.30} parent=15 // pred_region
        %p193 = scmp.lt.s32.totalorder %s16, 1
        %s194 = scalar_select %p193, %s16, 1
        %p195 = scmp.lt.s32.totalorder %s17, 1
        %s196 = scalar_select %p195, %s17, 1
        %p197 = scmp.lt.s32.totalorder %s19, 0
        %s198 = scalar_select %p197, %s19, 0
        %s199 = sadd.s32 %s198, %s196
        %s200 = smul.addr %s194, 2
        %s201 = sadd.s32 %s199, %s200
        %s202 = smul.addr %s201, 4
        %s203 = scalar_lea.vmem %s1, %s202
      $region24: #{paligemma_forward.30} parent=15 // pred_fallthru
        _
      // Predicated region
      $region25: #{paligemma_forward.30} parent=15 // pred_check
        %p204 = pneg %p119
      $region26: #{paligemma_forward.30} parent=15 // pred_check_branch
        %206 = sbr.rel (%p204) target = $region28
      $region27: #{paligemma_forward.30} parent=15 // pred_region
        %p207 = scmp.lt.s32.totalorder %s16, 1
        %s208 = scalar_select %p207, %s16, 1
        %p209 = scmp.lt.s32.totalorder %s17, 1
        %s210 = scalar_select %p209, %s17, 1
        %p211 = scmp.lt.s32.totalorder %s19, 0
        %s212 = scalar_select %p211, %s19, 0
        %s213 = sadd.s32 %s212, %s210
        %s214 = smul.addr %s208, 2
        %s215 = sadd.s32 %s213, %s214
        %s216 = smul.addr %s215, 4
        %s217 = scalar_lea.vmem %s2, %s216
      $region28: #{paligemma_forward.30} parent=15 // pred_fallthru
        _
    $region16: #{paligemma_forward.30} parent=5 // pred_fallthru
      _
    %p218 = scmp.le.s32.totalorder 1, %s9
    %p219 = scmp.lt.s32.totalorder %s9, 5
    %p220 = pnand %p218, %p219
    %p221 = pneg %p220
    // Predicated region
    $region29: #{paligemma_forward.30} parent=5 // pred_check
      _
    $region30: #{paligemma_forward.30} parent=5 // pred_check_branch
      %223 = sbr.rel (%p220) target = $region32
    $region31: #{paligemma_forward.30} parent=5 // pred_region
      %s224 = ssub.s32 %s9, 1
      %s225 = smul.u32 2, %s21
      %p226 = scmp.lt.s32.totalorder %s20, 1
      %s227 = scalar_select %p226, %s20, 1
      %p228 = scmp.lt.s32.totalorder %s225, 3
      %s229 = scalar_select %p228, %s225, 3
      %p230 = scmp.lt.s32.totalorder %s22, 0
      %s231 = scalar_select %p230, %s22, 0
      %s232 = sadd.s32 %s231, %s229
      %s233 = smul.addr %s227, 4
      %s234 = sadd.s32 %s232, %s233
      %s235 = smul.addr %s234, 4
      %s236 = scalar_lea.vmem %s0, %s235
      %p237 = pneg %p65
      %p238 = pneg %p62
      %p239 = scmp.lt.s32.totalorder %s20, 1
      %s240 = scalar_select %p239, %s20, 1
      %p241 = scmp.lt.s32.totalorder %s21, 1
      %s242 = scalar_select %p241, %s21, 1
      %p243 = scmp.lt.s32.totalorder %s23, 0
      %s244 = scalar_select %p243, %s23, 0
      %s245 = sadd.s32 %s244, %s242
      %s246 = smul.addr %s240, 2
      %s247 = sadd.s32 %s245, %s246
      %s248 = smul.addr %s247, 4
      %s249 = scalar_lea.vmem %s1, %s248
      %p250 = pneg %p95
      %p251 = pneg %p92
      %p252 = scmp.lt.s32.totalorder %s20, 1
      %s253 = scalar_select %p252, %s20, 1
      %p254 = scmp.lt.s32.totalorder %s21, 1
      %s255 = scalar_select %p254, %s21, 1
      %p256 = scmp.lt.s32.totalorder %s23, 0
      %s257 = scalar_select %p256, %s23, 0
      %s258 = sadd.s32 %s257, %s255
      %s259 = smul.addr %s253, 2
      %s260 = sadd.s32 %s258, %s259
      %s261 = smul.addr %s260, 4
      %s262 = scalar_lea.vmem %s2, %s261
      %p263 = pneg %p125
      %p264 = pneg %p122
      %p265 = pneg %p155
      %p266 = pneg %p152
      %s267 = smul.u32 2, %s21
      %p268 = scmp.lt.s32.totalorder %s20, 1
      %s269 = scalar_select %p268, %s20, 1
      %p270 = scmp.lt.s32.totalorder %s267, 3
      %s271 = scalar_select %p270, %s267, 3
      %p272 = scmp.lt.s32.totalorder %s22, 0
      %s273 = scalar_select %p272, %s22, 0
      %s274 = sadd.s32 %s273, %s271
      %s275 = smul.addr %s269, 4
      %s276 = sadd.s32 %s274, %s275
      %s277 = smul.addr %s276, 4
      %s278 = scalar_lea.vmem %s3, %s277
      %s279 = smul.u32 2, %s21
      %p280 = scmp.lt.s32.totalorder %s20, 1
      %s281 = scalar_select %p280, %s20, 1
      %p282 = scmp.lt.s32.totalorder %s279, 3
      %s283 = scalar_select %p282, %s279, 3
      %p284 = scmp.lt.s32.totalorder %s22, 0
      %s285 = scalar_select %p284, %s22, 0
      %s286 = sadd.s32 %s285, %s283
      %s287 = smul.addr %s281, 4
      %s288 = sadd.s32 %s286, %s287
      %s289 = smul.addr %s288, 4
      %s290 = scalar_lea.vmem %s0, %s289
      %s291 = smul.u32 2, %s21
      %p292 = scmp.lt.s32.totalorder %s20, 1
      %s293 = scalar_select %p292, %s20, 1
      %p294 = scmp.lt.s32.totalorder %s21, 1
      %s295 = scalar_select %p294, %s21, 1
      %p296 = scmp.lt.s32.totalorder %s23, 0
      %s297 = scalar_select %p296, %s23, 0
      %s298 = sadd.s32 %s297, %s295
      %s299 = smul.addr %s293, 2
      %s300 = sadd.s32 %s298, %s299
      %s301 = smul.addr %s300, 4
      %s302 = scalar_lea.vmem %s1, %s301
      %p303 = scmp.lt.s32.totalorder %s20, 1
      %s304 = scalar_select %p303, %s20, 1
      %p305 = scmp.lt.s32.totalorder %s21, 1
      %s306 = scalar_select %p305, %s21, 1
      %p307 = scmp.lt.s32.totalorder %s23, 0
      %s308 = scalar_select %p307, %s23, 0
      %s309 = sadd.s32 %s308, %s306
      %s310 = smul.addr %s304, 2
      %s311 = sadd.s32 %s309, %s310
      %s312 = smul.addr %s311, 4
      %s313 = scalar_lea.vmem %s2, %s312
      %s314 = smul.u32 2, %s21
      %p315 = scmp.lt.s32.totalorder %s20, 1
      %s316 = scalar_select %p315, %s20, 1
      %p317 = scmp.lt.s32.totalorder %s314, 3
      %s318 = scalar_select %p317, %s314, 3
      %p319 = scmp.lt.s32.totalorder %s22, 0
      %s320 = scalar_select %p319, %s22, 0
      %s321 = sadd.s32 %s320, %s318
      %s322 = smul.addr %s316, 4
      %s323 = sadd.s32 %s321, %s322
      %s324 = smul.addr %s323, 4
      %s325 = scalar_lea.vmem %s3, %s324
      %s326 = smul.u32 2, %s21
      %p328 = scmp.eq.s32.totalorder %s23, 0
      // Predicated region
      $region33: #{paligemma_forward.30} parent=31 // pred_check
        %p329 = pneg %p328
      $region34: #{paligemma_forward.30} parent=31 // pred_check_branch
        %331 = sbr.rel (%p329) target = $region36
      $region35: #{paligemma_forward.30} parent=31 // pred_region
        %vm332 = vcmask 7168
        %333 = vst.msk [vmem:[#allocation2] sm:$0xff] %vm332, -1e+30
        %334 = vst.msk [vmem:[#allocation2 + $0x8] sm:$0xff] %vm332, -1e+30
        %335 = vst.msk [vmem:[#allocation3] sm:$0xff] %vm332, 0.0
        %336 = vst.msk [vmem:[#allocation3 + $0x8] sm:$0xff] %vm332, 0.0
        %vm337 = vcmask 130048
        %338 = vst.msk [vmem:[#allocation4] sm:$0xff] %vm337, 0.0
        %339 = vst.msk [vmem:[#allocation4 + $0x8] sm:$0xff] %vm337, 0.0
      $region36: #{paligemma_forward.30} parent=31 // pred_fallthru
        _
      %v340 = vld [vmem:[%s290] sm:$0xf]
      %v341 = vld [vmem:[%s290 + $0x4] sm:$0xf]
      %v342 = vld [vmem:[%s302] sm:$0xf]
      %v345 = vunpack.c.l.b16 %v340
      %v346 = vunpack.c.l.b16 %v341
      %v347 = vpack.c.b16 %v346, %v345
      %vm348 = vcmask 130048
      %v350 = vsel %vm348, %v347, 0
      %v353 = vsel %vm348, %v342, 0
      %355 = vmatprep.subr.bf16.mxu0 0
      %356 = vmatpush1.bf16.xpose.msra.mxu0 0
      %357 = vmatprep.subr.bf16.mxu0 0
      %358 = vmatpush1.bf16.xpose.msra.mxu0 0
      %359 = vmatprep.subr.bf16.mxu0 0
      %360 = vmatpush1.bf16.xpose.msra.mxu0 0
      %361 = vmatprep.subr.bf16.mxu0 0
      %362 = vmatpush1.bf16.xpose.msra.mxu0 0
      %363 = vmatprep.subr.bf16.mxu0 0
      %364 = vmatpush1.bf16.xpose.msra.mxu0 0
      %365 = vmatprep.subr.bf16.mxu0 0
      %366 = vmatpush1.bf16.xpose.msra.mxu0 0
      %367 = vmatprep.subr.bf16.mxu0 0
      %368 = vmatpush1.bf16.xpose.msra.mxu0 0
      %369 = vmatprep.subr.bf16.mxu0 0
      %370 = vmatpush1.bf16.xpose.msra.mxu0 %v353
      %371 = vmatprep.subr.bf16.mxu0 0
      %372 = vmatpush2.bf16.xpose.msra.mxu0 0
      %373 = vmatprep.subr.bf16.mxu0 0
      %374 = vmatpush2.bf16.xpose.msra.mxu0 0
      %375 = vmatprep.subr.bf16.mxu0 0
      %376 = vmatpush2.bf16.xpose.msra.mxu0 0
      %377 = vmatprep.subr.bf16.mxu0 0
      %378 = vmatpush2.bf16.xpose.msra.mxu0 0
      %379 = vmatprep.subr.bf16.mxu0 0
      %380 = vmatpush2.bf16.xpose.msra.mxu0 0
      %381 = vmatprep.subr.bf16.mxu0 0
      %382 = vmatpush2.bf16.xpose.msra.mxu0 0
      %383 = vmatprep.subr.bf16.mxu0 0
      %384 = vmatpush2.bf16.xpose.msra.mxu0 0
      %385 = vmatprep.subr.bf16.mxu0 0
      %386 = vmatpush2.bf16.xpose.msra.mxu0 0
      %387 = vmatprep.mubr.bf16.mxu0 0
      %388 = vmatmul.mubr.bf16.gmra.mxu0 %v350
      %v389 = vpop.f32.mrf.mxu0
      %v390 = vadd.f32 0.0, %v389
      %v391 = vpop.f32.mrf.mxu0
      %v392 = vpop.f32.mrf.mxu0
      %v393 = vadd.f32 0.0, %v392
      %v394 = vpop.f32.mrf.mxu0
      %395 = vdwg.mxu0
      %v396 = vld [vmem:[#allocation2] sm:$0xff]
      %v397 = vld [vmem:[#allocation2 + $0x8] sm:$0xff]
      %vm398 = vcmask 64512
      %v399 = vsel %vm398, %v390, -inf
      %400 = vmax.xlane.f32.xlu0 %v399
      %v401 = vpop.xlane.xlu0 %400
      %v402 = vsel %vm398, %v393, -inf
      %403 = vmax.xlane.f32.xlu0 %v402
      %v404 = vpop.xlane.xlu0 %403
      %v405 = vmax.f32 %v396, %v401
      %v406 = vmax.f32 %v397, %v404
      %v407 = vsub.f32 %v396, %v405
      %v408 = vsub.f32 %v397, %v406
      %v409 = vmul.f32 %v407, 1.442695
      %v410 = vpow.pop %v409
      %v411 = vmul.f32 %v408, 1.442695
      %v412 = vpow.pop %v411
      %414 = vset.pattern.permute.xlu0 0
      %415 = vperm.xlu0 %414, %v405
      %v416 = vpop.permute.xlu0 %415
      %419 = vset.pattern.permute.xlu0 0
      %420 = vperm.xlu0 %419, %v406
      %v421 = vpop.permute.xlu0 %420
      %v423 = vsub.f32 %v390, %v416
      %v424 = vsub.f32 %v393, %v421
      %v425 = vmul.f32 %v423, 1.442695
      %v426 = vpow.pop %v425
      %v427 = vmul.f32 %v424, 1.442695
      %v428 = vpow.pop %v427
      %v429 = vld [vmem:[#allocation3] sm:$0xff]
      %v430 = vld [vmem:[#allocation3 + $0x8] sm:$0xff]
      %v431 = vmul.f32 %v410, %v429
      %v432 = vmul.f32 %v412, %v430
      %v433 = vsel %vm398, %v426, 0.0
      %434 = vadd.xlane.f32.xlu0 %v433
      %v435 = vpop.xlane.xlu0 %434
      %v436 = vsel %vm398, %v428, 0.0
      %437 = vadd.xlane.f32.xlu0 %v436
      %v438 = vpop.xlane.xlu0 %437
      %v439 = vadd.f32 %v431, %v435
      %v440 = vadd.f32 %v432, %v438
      %vm441 = vcmask 7168
      %442 = vst.msk [vmem:[#allocation3] sm:$0xff] %vm441, %v439
      %443 = vst.msk [vmem:[#allocation3 + $0x8] sm:$0xff] %vm441, %v440
      %v444 = vld [vmem:[#allocation4] sm:$0xff]
      %v445 = vld [vmem:[#allocation4 + $0x8] sm:$0xff]
      %447 = vset.pattern.permute.xlu0 0
      %448 = vperm.xlu0 %447, %v410
      %v449 = vpop.permute.xlu0 %448
      %452 = vset.pattern.permute.xlu0 0
      %453 = vperm.xlu0 %452, %v412
      %v454 = vpop.permute.xlu0 %453
      %v456 = vmul.f32 %v449, %v444
      %v457 = vmul.f32 %v454, %v445
      %v458 = vpack.c.bf16 %v428, %v426
      %v459 = vld [vmem:[%s313] sm:$0xf]
      %v461 = vsel %vm398, %v458, 0
      %vm463 = vcmask 1043456
      %v465 = vsel %vm463, %v459, 0
      %467 = vmatprep.subr.bf16.mxu0 0
      %468 = vmatpush1.bf16.msra.mxu0 0
      %469 = vmatprep.subr.bf16.mxu0 0
      %470 = vmatpush1.bf16.msra.mxu0 0
      %471 = vmatprep.subr.bf16.mxu0 0
      %472 = vmatpush1.bf16.msra.mxu0 0
      %473 = vmatprep.subr.bf16.mxu0 0
      %474 = vmatpush1.bf16.msra.mxu0 0
      %475 = vmatprep.subr.bf16.mxu0 0
      %476 = vmatpush1.bf16.msra.mxu0 0
      %477 = vmatprep.subr.bf16.mxu0 0
      %478 = vmatpush1.bf16.msra.mxu0 0
      %479 = vmatprep.subr.bf16.mxu0 0
      %480 = vmatpush1.bf16.msra.mxu0 0
      %481 = vmatprep.subr.bf16.mxu0 0
      %482 = vmatpush1.bf16.msra.mxu0 %v465
      %483 = vmatprep.subr.bf16.mxu0 0
      %484 = vmatpush2.bf16.msra.mxu0 0
      %485 = vmatprep.subr.bf16.mxu0 0
      %486 = vmatpush2.bf16.msra.mxu0 0
      %487 = vmatprep.subr.bf16.mxu0 0
      %488 = vmatpush2.bf16.msra.mxu0 0
      %489 = vmatprep.subr.bf16.mxu0 0
      %490 = vmatpush2.bf16.msra.mxu0 0
      %491 = vmatprep.subr.bf16.mxu0 0
      %492 = vmatpush2.bf16.msra.mxu0 0
      %493 = vmatprep.subr.bf16.mxu0 0
      %494 = vmatpush2.bf16.msra.mxu0 0
      %495 = vmatprep.subr.bf16.mxu0 0
      %496 = vmatpush2.bf16.msra.mxu0 0
      %497 = vmatprep.subr.bf16.mxu0 0
      %498 = vmatpush2.bf16.msra.mxu0 0
      %499 = vmatprep.mubr.bf16.mxu0 0
      %500 = vmatmul.mubr.bf16.gmra.mxu0 %v461
      %v501 = vpop.f32.mrf.mxu0
      %v502 = vadd.f32 0.0, %v501
      %v503 = vpop.f32.mrf.mxu0
      %v504 = vpop.f32.mrf.mxu0
      %v505 = vadd.f32 0.0, %v504
      %v506 = vpop.f32.mrf.mxu0
      %507 = vdwg.mxu0
      %v508 = vadd.f32 %v456, %v502
      %v509 = vadd.f32 %v457, %v505
      %510 = vst.msk [vmem:[#allocation4] sm:$0xff] %vm348, %v508
      %511 = vst.msk [vmem:[#allocation4 + $0x8] sm:$0xff] %vm348, %v509
      %512 = vst.msk [vmem:[#allocation2] sm:$0xff] %vm441, %v405
      %513 = vst.msk [vmem:[#allocation2 + $0x8] sm:$0xff] %vm441, %v406
      // Predicated region
      $region37: #{paligemma_forward.30} parent=31 // pred_check
        %p514 = pneg %p328
      $region38: #{paligemma_forward.30} parent=31 // pred_check_branch
        %516 = sbr.rel (%p514) target = $region40
      $region39: #{paligemma_forward.30} parent=31 // pred_region
        %v517 = vld [vmem:[#allocation4] sm:$0xff]
        %v518 = vld [vmem:[#allocation4 + $0x8] sm:$0xff]
        %v519 = vld [vmem:[#allocation3] sm:$0xff]
        %v520 = vld [vmem:[#allocation3 + $0x8] sm:$0xff]
        %v521 = vrcp.pop %v519
        %v522 = vrcp.pop %v520
        %524 = vset.pattern.permute.xlu0 0
        %525 = vperm.xlu0 %524, %v521
        %v526 = vpop.permute.xlu0 %525
        %529 = vset.pattern.permute.xlu0 0
        %530 = vperm.xlu0 %529, %v522
        %v531 = vpop.permute.xlu0 %530
        %v533 = vmul.f32 %v517, %v526
        %v534 = vmul.f32 %v518, %v531
        %v535 = vpack.c.bf16 %v533, %v533
        %v536 = vpack.c.bf16 %v534, %v534
        %vm537 = vcmask 125952
        %538 = vst.msk [vmem:[%s325] sm:$0xf] %vm537, %v535
        %539 = vst.msk [vmem:[%s325 + $0x4] sm:$0xf] %vm537, %v536
      $region40: #{paligemma_forward.30} parent=31 // pred_fallthru
        _
      %s540 = smul.u32 2, %s21
      %p541 = scmp.lt.s32.totalorder %s20, 1
      %s542 = scalar_select %p541, %s20, 1
      %p543 = scmp.lt.s32.totalorder %s540, 3
      %s544 = scalar_select %p543, %s540, 3
      %p545 = scmp.lt.s32.totalorder %s22, 0
      %s546 = scalar_select %p545, %s22, 0
      %s547 = sadd.s32 %s546, %s544
      %s548 = smul.addr %s542, 4
      %s549 = sadd.s32 %s547, %s548
      %s550 = smul.addr %s549, 4
      %s551 = scalar_lea.vmem %s3, %s550
      // Predicated region
      $region41: #{paligemma_forward.30} parent=31 // pred_check
        %p552 = pneg %p152
      $region42: #{paligemma_forward.30} parent=31 // pred_check_branch
        %554 = sbr.rel (%p552) target = $region44
      $region43: #{paligemma_forward.30} parent=31 // pred_region
        %s555 = smul.u32 2, %s21
      $region44: #{paligemma_forward.30} parent=31 // pred_fallthru
        _
    $region32: #{paligemma_forward.30} parent=5 // pred_fallthru
      _
    %p556 = scmp.le.s32.totalorder 2, %s9
    // Predicated region
    $region45: #{paligemma_forward.30} parent=5 // pred_check
      %p557 = pneg %p556
    $region46: #{paligemma_forward.30} parent=5 // pred_check_branch
      %559 = sbr.rel (%p557) target = $region48
    $region47: #{paligemma_forward.30} parent=5 // pred_region
      %s560 = ssub.s32 %s9, 2
      // Predicated region
      $region49: #{paligemma_forward.30} parent=47 // pred_check
        %p561 = pneg %p158
      $region50: #{paligemma_forward.30} parent=47 // pred_check_branch
        %563 = sbr.rel (%p561) target = $region52
      $region51: #{paligemma_forward.30} parent=47 // pred_region
        %s564 = smul.u32 2, %s25
        %p565 = scmp.lt.s32.totalorder %s24, 1
        %s566 = scalar_select %p565, %s24, 1
        %p567 = scmp.lt.s32.totalorder %s564, 3
        %s568 = scalar_select %p567, %s564, 3
        %p569 = scmp.lt.s32.totalorder %s26, 0
        %s570 = scalar_select %p569, %s26, 0
        %s571 = sadd.s32 %s570, %s568
        %s572 = smul.addr %s566, 4
        %s573 = sadd.s32 %s571, %s572
        %s574 = smul.addr %s573, 4
        %s575 = scalar_lea.vmem %s3, %s574
      $region52: #{paligemma_forward.30} parent=47 // pred_fallthru
        _
    $region48: #{paligemma_forward.30} parent=5 // pred_fallthru
      _
  $region6: #{paligemma_forward.30} parent=0 // loop_footer
    %s13 = sadd.s32 1, %s9
  $region7: #{paligemma_forward.30} parent=0 // loop_footer_branch
    %8 = sbr.rel target = $region3
  $region8: #{paligemma_forward.30} parent=0 // loop_exit
    _

// kernel: paligemma_forward.37
$region0: #{paligemma_forward.37}
  #allocation0 [shape = 'u32[]', space=smem, size = 0x4, offset = 0x4, fixed_abs, tag = 'smem constant byte address 0x4 - core index']
  #allocation1 [shape = 'u32[144,128]{1,0:T(1,128)}', space=vmem, size = 0x12000, scoped, tag = 'internal scratch']
  #allocation2 [shape = 'bf16[16,32]{1,0:T(8,128)(2,1)}', space=vmem, size = 0x1000, scoped, tag = 'scratch operand']
  %s0 = inlined_call_operand.vmem [shape: bf16[16,32], index: 0, kind: input, shape index: {}]
  %s1 = inlined_call_operand.vmem [shape: f32[1,32], index: 1, kind: input, shape index: {}]
  %s2 = inlined_call_operand.vmem [shape: bf16[32,64], index: 2, kind: input, shape index: {}]
  %s3 = inlined_call_operand.hbm [shape: f32[16,64], index: 3, kind: output, shape index: {}]
  %s4 = sld [smem:[#allocation0]]
  $region26: #{paligemma_forward.37} parent=0
    _
  %s6 = ssub.s32 1, %s4
  %s7 = scalar_select 0, %s6, %s4
  $region1: #{paligemma_forward.37} parent=0
    #allocation3 [shape = 'u8[8192]{0}', space=vmem, size = 0x2000, scoped, tag = 'output window, operand 0, single buffered']
    #allocation4 [shape = 's32[1]{0}', space=sflag, size = 0x4, scoped, tag = 'scoped memory for paligemma_forward.37']
    %8 = vsyncpa [#allocation4], 0
    // Predicated region
    $region2: #{paligemma_forward.37} parent=1 // pred_check
      _
    $region3: #{paligemma_forward.37} parent=1 // pred_check_branch
      %10 = sbr.rel (0) target = $region5
    $region4: #{paligemma_forward.37} parent=1 // pred_region
      _
    $region5: #{paligemma_forward.37} parent=1 // pred_fallthru
      _
    // Predicated region
    $region6: #{paligemma_forward.37} parent=1 // pred_check
      _
    $region7: #{paligemma_forward.37} parent=1 // pred_check_branch
      %12 = sbr.rel (0) target = $region9
    $region8: #{paligemma_forward.37} parent=1 // pred_region
      _
    $region9: #{paligemma_forward.37} parent=1 // pred_fallthru
      _
    // Predicated region
    $region10: #{paligemma_forward.37} parent=1 // pred_check
      _
    $region11: #{paligemma_forward.37} parent=1 // pred_check_branch
      %14 = sbr.rel (0) target = $region13
    $region12: #{paligemma_forward.37} parent=1 // pred_region
      _
    $region13: #{paligemma_forward.37} parent=1 // pred_fallthru
      _
    %p16 = scmp.eq.s32.totalorder 0, 0
    // Predicated region
    $region14: #{paligemma_forward.37} parent=1 // pred_check
      %p17 = pneg %p16
    $region15: #{paligemma_forward.37} parent=1 // pred_check_branch
      %19 = sbr.rel (%p17) target = $region17
    $region16: #{paligemma_forward.37} parent=1 // pred_region
      %v20 = vld [vmem:[%s0] sm:$0xf]
      %v21 = vld [vmem:[%s0 + $0x4] sm:$0xf]
      %v22 = vunpack.c.l.bf16 %v20
      %v23 = vunpack.c.l.bf16 %v21
      %v24 = vmul.f32 %v22, %v22
      %v25 = vmul.f32 %v23, %v23
      %vm26 = vcmask 261120
      %v27 = vsel %vm26, %v24, 0.0
      %28 = vadd.xlane.f32.xlu0 %v27
      %v29 = vpop.xlane.xlu0 %28
      %v30 = vsel %vm26, %v25, 0.0
      %31 = vadd.xlane.f32.xlu0 %v30
      %v32 = vpop.xlane.xlu0 %31
      %v33 = vrcp.pop 32.0
      %v34 = vmul.f32 %v29, %v33
      %v35 = vmul.f32 %v32, %v33
      %v36 = vadd.f32 %v34, 1e-06
      %v37 = vadd.f32 %v35, 1e-06
      %v38 = vrsqrt.pop %v36
      %v39 = vrsqrt.pop %v37
      %v40 = vmul.f32 %v22, %v38
      %v41 = vmul.f32 %v23, %v39
      %v42 = vld [vmem:[%s1] sm:$0x1]
      %v43 = vadd.f32 %v42, 1.0
      %v45 = vlaneseq
      %v46 = vshrl.u32 %v45, 7
      %v47 = vsub.s32 0, %v46
      %v48 = vrot.slane %v43, %v47
      %v50 = vmul.f32 %v40, %v48
      %v51 = vmul.f32 %v41, %v48
      %v52 = vpack.c.bf16 %v51, %v50
      %v54 = vunpack.c.l.b16 %v52
      %v55 = vunpack.c.h.b16 %v52
      %v56 = vpack.c.b16 %v54, %v54
      %v57 = vpack.c.b16 %v55, %v55
      %vm60 = vcmask 257024
      %61 = vst.msk [vmem:[#allocation2] sm:$0xf] %vm60, %v56
      %62 = vst.msk [vmem:[#allocation2 + $0x4] sm:$0xf] %vm60, %v57
    $region17: #{paligemma_forward.37} parent=1 // pred_fallthru
      _
    %v63 = vld [vmem:[#allocation2] sm:$0xf]
    %v64 = vld [vmem:[#allocation2 + $0x4] sm:$0xf]
    %v65 = vld [vmem:[%s2] sm:$0xf]
    %v66 = vld [vmem:[%s2 + $0x4] sm:$0xf]
    %v67 = vld [vmem:[%s2 + $0x8] sm:$0xf]
    %v68 = vld [vmem:[%s2 + $0xc] sm:$0xf]
    %v71 = vunpack.c.l.b16 %v63
    %v72 = vunpack.c.l.b16 %v64
    %v73 = vpack.c.b16 %v72, %v71
    %v78 = vunpack.c.l.b16 %v65
    %v79 = vunpack.c.l.b16 %v66
    %v80 = vunpack.c.l.b16 %v67
    %v81 = vunpack.c.l.b16 %v68
    %v82 = vpack.c.b16 %v79, %v78
    %v83 = vpack.c.b16 %v81, %v80
    %vm86 = vcmask 261120
    %v88 = vsel %vm86, %v73, 0
    %90 = vmatprep.subr.bf16.mxu0 0
    %91 = vmatpush1.bf16.msra.mxu0 0
    %92 = vmatprep.subr.bf16.mxu0 0
    %93 = vmatpush1.bf16.msra.mxu0 0
    %94 = vmatprep.subr.bf16.mxu0 0
    %95 = vmatpush1.bf16.msra.mxu0 0
    %96 = vmatprep.subr.bf16.mxu0 0
    %97 = vmatpush1.bf16.msra.mxu0 0
    %98 = vmatprep.subr.bf16.mxu0 0
    %99 = vmatpush1.bf16.msra.mxu0 0
    %100 = vmatprep.subr.bf16.mxu0 0
    %101 = vmatpush1.bf16.msra.mxu0 0
    %102 = vmatprep.subr.bf16.mxu0 0
    %103 = vmatpush1.bf16.msra.mxu0 %v83
    %104 = vmatprep.subr.bf16.mxu0 0
    %105 = vmatpush1.bf16.msra.mxu0 %v82
    %106 = vmatprep.subr.bf16.mxu0 0
    %107 = vmatpush2.bf16.msra.mxu0 0
    %108 = vmatprep.subr.bf16.mxu0 0
    %109 = vmatpush2.bf16.msra.mxu0 0
    %110 = vmatprep.subr.bf16.mxu0 0
    %111 = vmatpush2.bf16.msra.mxu0 0
    %112 = vmatprep.subr.bf16.mxu0 0
    %113 = vmatpush2.bf16.msra.mxu0 0
    %114 = vmatprep.subr.bf16.mxu0 0
    %115 = vmatpush2.bf16.msra.mxu0 0
    %116 = vmatprep.subr.bf16.mxu0 0
    %117 = vmatpush2.bf16.msra.mxu0 0
    %118 = vmatprep.subr.bf16.mxu0 0
    %119 = vmatpush2.bf16.msra.mxu0 0
    %120 = vmatprep.subr.bf16.mxu0 0
    %121 = vmatpush2.bf16.msra.mxu0 0
    %122 = vmatprep.mubr.bf16.mxu0 0
    %123 = vmatmul.mubr.bf16.gmra.mxu0 %v88
    %v124 = vpop.f32.mrf.mxu0
    %v125 = vadd.f32 0.0, %v124
    %v126 = vpop.f32.mrf.mxu0
    %v127 = vpop.f32.mrf.mxu0
    %v128 = vadd.f32 0.0, %v127
    %v129 = vpop.f32.mrf.mxu0
    %130 = vdwg.mxu0
    %vm131 = vcmask 523264
    %132 = vst.msk [vmem:[#allocation3] sm:$0xff] %vm131, %v125
    %133 = vst.msk [vmem:[#allocation3 + $0x8] sm:$0xff] %vm131, %v128
    // Predicated region
    $region18: #{paligemma_forward.37} parent=1 // pred_check
      _
    $region19: #{paligemma_forward.37} parent=1 // pred_check_branch
      %135 = sbr.rel (0) target = $region21
    $region20: #{paligemma_forward.37} parent=1 // pred_region
      %s137 = ssub.s32 256, 256
      %138 = vsyncadd [#allocation4], %s137
      %s139 = sshll.u32 [#allocation3], 4
      %s140 = int_to_ptr.vmem [resolvable:$true] %s139
      %145 = dma.vmem_to_hbm [thread:$0]  %s140, 256, %s3, [#allocation4], 128, 128, 8
    $region21: #{paligemma_forward.37} parent=1 // pred_fallthru
      _
    // Predicated region
    $region22: #{paligemma_forward.37} parent=1 // pred_check
      _
    $region23: #{paligemma_forward.37} parent=1 // pred_check_branch
      %147 = sbr.rel (0) target = $region25
    $region24: #{paligemma_forward.37} parent=1 // pred_region
      %148 = dma.done [#allocation4], 256
    $region25: #{paligemma_forward.37} parent=1 // pred_fallthru
      _
    %149 = vsyncpa [#allocation4], 1

// kernel: paligemma_forward.31
$region0: #{paligemma_forward.31}
  #allocation0 [shape = 'u32[]', space=smem, size = 0x4, offset = 0x4, fixed_abs, tag = 'smem constant byte address 0x4 - core index']
  #allocation1 [shape = 'u32[144,128]{1,0:T(1,128)}', space=vmem, size = 0x12000, scoped, tag = 'internal scratch']
  #allocation2 [shape = 'f32[16,32]{1,0:T(8,128)}', space=vmem, size = 0x2000, scoped, tag = 'scratch operand']
  %s0 = inlined_call_operand.vmem [shape: bf16[16,64], index: 0, kind: input, shape index: {}]
  %s1 = inlined_call_operand.vmem [shape: bf16[64,32], index: 1, kind: input, shape index: {}]
  %s2 = inlined_call_operand.vmem [shape: bf16[16,32], index: 2, kind: input, shape index: {}]
  %s3 = inlined_call_operand.vmem [shape: bf16[16,32], index: 3, kind: output, shape index: {}]
  %s4 = sld [smem:[#allocation0]]
  $region30: #{paligemma_forward.31} parent=0
    _
  %s6 = ssub.s32 1, %s4
  %s7 = scalar_select 0, %s6, %s4
  // Predicated region
  $region2: #{paligemma_forward.31} parent=0 // pred_check
    _
  $region3: #{paligemma_forward.31} parent=0 // pred_check_branch
    %9 = sbr.rel (0) target = $region5
  $region4: #{paligemma_forward.31} parent=0 // pred_region
    _
  $region5: #{paligemma_forward.31} parent=0 // pred_fallthru
    _
  // Predicated region
  $region6: #{paligemma_forward.31} parent=0 // pred_check
    _
  $region7: #{paligemma_forward.31} parent=0 // pred_check_branch
    %11 = sbr.rel (0) target = $region9
  $region8: #{paligemma_forward.31} parent=0 // pred_region
    _
  $region9: #{paligemma_forward.31} parent=0 // pred_fallthru
    _
  // Predicated region
  $region10: #{paligemma_forward.31} parent=0 // pred_check
    _
  $region11: #{paligemma_forward.31} parent=0 // pred_check_branch
    %13 = sbr.rel (0) target = $region13
  $region12: #{paligemma_forward.31} parent=0 // pred_region
    _
  $region13: #{paligemma_forward.31} parent=0 // pred_fallthru
    _
  %p15 = scmp.eq.s32.totalorder 0, 0
  // Predicated region
  $region14: #{paligemma_forward.31} parent=0 // pred_check
    %p16 = pneg %p15
  $region15: #{paligemma_forward.31} parent=0 // pred_check_branch
    %18 = sbr.rel (%p16) target = $region17
  $region16: #{paligemma_forward.31} parent=0 // pred_region
    %vm19 = vcmask 261120
    %20 = vst.msk [vmem:[#allocation2] sm:$0xff] %vm19, 0.0
    %21 = vst.msk [vmem:[#allocation2 + $0x8] sm:$0xff] %vm19, 0.0
  $region17: #{paligemma_forward.31} parent=0 // pred_fallthru
    _
  %v22 = vld [vmem:[#allocation2] sm:$0xff]
  %v23 = vld [vmem:[#allocation2 + $0x8] sm:$0xff]
  %v24 = vld [vmem:[%s0] sm:$0xf]
  %v25 = vld [vmem:[%s0 + $0x4] sm:$0xf]
  %v26 = vld [vmem:[%s1] sm:$0xf]
  %v27 = vld [vmem:[%s1 + $0x4] sm:$0xf]
  %v28 = vld [vmem:[%s1 + $0x8] sm:$0xf]
  %v29 = vld [vmem:[%s1 + $0xc] sm:$0xf]
  %v30 = vld [vmem:[%s1 + $0x10] sm:$0xf]
  %v31 = vld [vmem:[%s1 + $0x14] sm:$0xf]
  %v32 = vld [vmem:[%s1 + $0x18] sm:$0xf]
  %v33 = vld [vmem:[%s1 + $0x1c] sm:$0xf]
  %v36 = vunpack.c.l.b16 %v24
  %v37 = vunpack.c.l.b16 %v25
  %v38 = vpack.c.b16 %v37, %v36
  %v47 = vunpack.c.l.b16 %v26
  %v48 = vunpack.c.l.b16 %v27
  %v49 = vunpack.c.l.b16 %v28
  %v50 = vunpack.c.l.b16 %v29
  %v51 = vunpack.c.l.b16 %v30
  %v52 = vunpack.c.l.b16 %v31
  %v53 = vunpack.c.l.b16 %v32
  %v54 = vunpack.c.l.b16 %v33
  %v55 = vpack.c.b16 %v48, %v47
  %v56 = vpack.c.b16 %v50, %v49
  %v57 = vpack.c.b16 %v52, %v51
  %v58 = vpack.c.b16 %v54, %v53
  %vm63 = vcmask 523264
  %v65 = vsel %vm63, %v38, 0
  %67 = vmatprep.subr.bf16.mxu0 0
  %68 = vmatpush1.bf16.msra.mxu0 0
  %69 = vmatprep.subr.bf16.mxu0 0
  %70 = vmatpush1.bf16.msra.mxu0 0
  %71 = vmatprep.subr.bf16.mxu0 0
  %72 = vmatpush1.bf16.msra.mxu0 0
  %73 = vmatprep.subr.bf16.mxu0 0
  %74 = vmatpush1.bf16.msra.mxu0 0
  %75 = vmatprep.subr.bf16.mxu0 0
  %76 = vmatpush1.bf16.msra.mxu0 %v58
  %77 = vmatprep.subr.bf16.mxu0 0
  %78 = vmatpush1.bf16.msra.mxu0 %v57
  %79 = vmatprep.subr.bf16.mxu0 0
  %80 = vmatpush1.bf16.msra.mxu0 %v56
  %81 = vmatprep.subr.bf16.mxu0 0
  %82 = vmatpush1.bf16.msra.mxu0 %v55
  %83 = vmatprep.subr.bf16.mxu0 0
  %84 = vmatpush2.bf16.msra.mxu0 0
  %85 = vmatprep.subr.bf16.mxu0 0
  %86 = vmatpush2.bf16.msra.mxu0 0
  %87 = vmatprep.subr.bf16.mxu0 0
  %88 = vmatpush2.bf16.msra.mxu0 0
  %89 = vmatprep.subr.bf16.mxu0 0
  %90 = vmatpush2.bf16.msra.mxu0 0
  %91 = vmatprep.subr.bf16.mxu0 0
  %92 = vmatpush2.bf16.msra.mxu0 0
  %93 = vmatprep.subr.bf16.mxu0 0
  %94 = vmatpush2.bf16.msra.mxu0 0
  %95 = vmatprep.subr.bf16.mxu0 0
  %96 = vmatpush2.bf16.msra.mxu0 0
  %97 = vmatprep.subr.bf16.mxu0 0
  %98 = vmatpush2.bf16.msra.mxu0 0
  %99 = vmatprep.mubr.bf16.mxu0 0
  %100 = vmatmul.mubr.bf16.gmra.mxu0 %v65
  %v101 = vpop.f32.mrf.mxu0
  %v102 = vadd.f32 0.0, %v101
  %v103 = vpop.f32.mrf.mxu0
  %v104 = vpop.f32.mrf.mxu0
  %v105 = vadd.f32 0.0, %v104
  %v106 = vpop.f32.mrf.mxu0
  %107 = vdwg.mxu0
  %v108 = vadd.f32 %v22, %v102
  %v109 = vadd.f32 %v23, %v105
  %vm110 = vcmask 261120
  %111 = vst.msk [vmem:[#allocation2] sm:$0xff] %vm110, %v108
  %112 = vst.msk [vmem:[#allocation2 + $0x8] sm:$0xff] %vm110, %v109
  // Predicated region
  $region18: #{paligemma_forward.31} parent=0 // pred_check
    %p113 = pneg %p15
  $region19: #{paligemma_forward.31} parent=0 // pred_check_branch
    %115 = sbr.rel (%p113) target = $region21
  $region20: #{paligemma_forward.31} parent=0 // pred_region
    %v116 = vld [vmem:[#allocation2] sm:$0xff]
    %v117 = vld [vmem:[#allocation2 + $0x8] sm:$0xff]
    %v118 = vld [vmem:[%s2] sm:$0xf]
    %v119 = vld [vmem:[%s2 + $0x4] sm:$0xf]
    %v120 = vunpack.c.l.bf16 %v118
    %v121 = vunpack.c.l.bf16 %v119
    %v122 = vadd.f32 %v116, %v120
    %v123 = vadd.f32 %v117, %v121
    %v124 = vpack.c.bf16 %v123, %v122
    %v126 = vunpack.c.l.b16 %v124
    %v127 = vunpack.c.h.b16 %v124
    %v128 = vpack.c.b16 %v126, %v126
    %v129 = vpack.c.b16 %v127, %v127
    %vm132 = vcmask 257024
    %133 = vst.msk [vmem:[%s3] sm:$0xf] %vm132, %v128
    %134 = vst.msk [vmem:[%s3 + $0x4] sm:$0xf] %vm132, %v129
  $region21: #{paligemma_forward.31} parent=0 // pred_fallthru
    _
  // Predicated region
  $region22: #{paligemma_forward.31} parent=0 // pred_check
    _
  $region23: #{paligemma_forward.31} parent=0 // pred_check_branch
    %136 = sbr.rel (0) target = $region25
  $region24: #{paligemma_forward.31} parent=0 // pred_region
    _
  $region25: #{paligemma_forward.31} parent=0 // pred_fallthru
    _
  // Predicated region
  $region26: #{paligemma_forward.31} parent=0 // pred_check
    _
  $region27: #{paligemma_forward.31} parent=0 // pred_check_branch
    %138 = sbr.rel (0) target = $region29
  $region28: #{paligemma_forward.31} parent=0 // pred_region
    _
  $region29: #{paligemma_forward.31} parent=0 // pred_fallthru
    _

// kernel: paligemma_forward.32
$region0: #{paligemma_forward.32}
  #allocation0 [shape = 'u32[]', space=smem, size = 0x4, offset = 0x4, fixed_abs, tag = 'smem constant byte address 0x4 - core index']
  #allocation1 [shape = 'u32[144,128]{1,0:T(1,128)}', space=vmem, size = 0x12000, scoped, tag = 'internal scratch']
  #allocation2 [shape = 'bf16[16,32]{1,0:T(8,128)(2,1)}', space=vmem, size = 0x1000, scoped, tag = 'scratch operand']
  #allocation3 [shape = 'f32[16,32]{1,0:T(8,128)}', space=vmem, size = 0x2000, scoped, tag = 'scratch operand']
  %s0 = inlined_call_operand.vmem [shape: bf16[16,32], index: 0, kind: input, shape index: {}]
  %s1 = inlined_call_operand.vmem [shape: f32[1,32], index: 1, kind: input, shape index: {}]
  %s2 = inlined_call_operand.vmem [shape: bf16[32,64], index: 2, kind: input, shape index: {}]
  %s3 = inlined_call_operand.vmem [shape: bf16[32,64], index: 3, kind: input, shape index: {}]
  %s4 = inlined_call_operand.vmem [shape: bf16[64,32], index: 4, kind: input, shape index: {}]
  %s5 = inlined_call_operand.vmem [shape: bf16[16,32], index: 5, kind: output, shape index: {}]
  %s6 = sld [smem:[#allocation0]]
  $region38: #{paligemma_forward.32} parent=0
    _
  %s8 = ssub.s32 1, %s6
  %s9 = scalar_select 0, %s8, %s6
  // Predicated region
  $region2: #{paligemma_forward.32} parent=0 // pred_check
    _
  $region3: #{paligemma_forward.32} parent=0 // pred_check_branch
    %11 = sbr.rel (0) target = $region5
  $region4: #{paligemma_forward.32} parent=0 // pred_region
    _
  $region5: #{paligemma_forward.32} parent=0 // pred_fallthru
    _
  // Predicated region
  $region6: #{paligemma_forward.32} parent=0 // pred_check
    _
  $region7: #{paligemma_forward.32} parent=0 // pred_check_branch
    %13 = sbr.rel (0) target = $region9
  $region8: #{paligemma_forward.32} parent=0 // pred_region
    _
  $region9: #{paligemma_forward.32} parent=0 // pred_fallthru
    _
  // Predicated region
  $region10: #{paligemma_forward.32} parent=0 // pred_check
    _
  $region11: #{paligemma_forward.32} parent=0 // pred_check_branch
    %15 = sbr.rel (0) target = $region13
  $region12: #{paligemma_forward.32} parent=0 // pred_region
    _
  $region13: #{paligemma_forward.32} parent=0 // pred_fallthru
    _
  // Predicated region
  $region14: #{paligemma_forward.32} parent=0 // pred_check
    _
  $region15: #{paligemma_forward.32} parent=0 // pred_check_branch
    %17 = sbr.rel (0) target = $region17
  $region16: #{paligemma_forward.32} parent=0 // pred_region
    _
  $region17: #{paligemma_forward.32} parent=0 // pred_fallthru
    _
  // Predicated region
  $region18: #{paligemma_forward.32} parent=0 // pred_check
    _
  $region19: #{paligemma_forward.32} parent=0 // pred_check_branch
    %19 = sbr.rel (0) target = $region21
  $region20: #{paligemma_forward.32} parent=0 // pred_region
    _
  $region21: #{paligemma_forward.32} parent=0 // pred_fallthru
    _
  %p21 = scmp.eq.s32.totalorder 0, 0
  // Predicated region
  $region22: #{paligemma_forward.32} parent=0 // pred_check
    %p22 = pneg %p21
  $region23: #{paligemma_forward.32} parent=0 // pred_check_branch
    %24 = sbr.rel (%p22) target = $region25
  $region24: #{paligemma_forward.32} parent=0 // pred_region
    %v25 = vld [vmem:[%s0] sm:$0xf]
    %v26 = vld [vmem:[%s0 + $0x4] sm:$0xf]
    %v27 = vunpack.c.l.bf16 %v25
    %v28 = vunpack.c.l.bf16 %v26
    %v29 = vmul.f32 %v27, %v27
    %v30 = vmul.f32 %v28, %v28
    %vm31 = vcmask 261120
    %v32 = vsel %vm31, %v29, 0.0
    %33 = vadd.xlane.f32.xlu0 %v32
    %v34 = vpop.xlane.xlu0 %33
    %v35 = vsel %vm31, %v30, 0.0
    %36 = vadd.xlane.f32.xlu0 %v35
    %v37 = vpop.xlane.xlu0 %36
    %v38 = vrcp.pop 32.0
    %v39 = vmul.f32 %v34, %v38
    %v40 = vmul.f32 %v37, %v38
    %v41 = vadd.f32 %v39, 1e-06
    %v42 = vadd.f32 %v40, 1e-06
    %v43 = vrsqrt.pop %v41
    %v44 = vrsqrt.pop %v42
    %v45 = vmul.f32 %v27, %v43
    %v46 = vmul.f32 %v28, %v44
    %v47 = vld [vmem:[%s1] sm:$0x1]
    %v48 = vadd.f32 %v47, 1.0
    %v50 = vlaneseq
    %v51 = vshrl.u32 %v50, 7
    %v52 = vsub.s32 0, %v51
    %v53 = vrot.slane %v48, %v52
    %v55 = vmul.f32 %v45, %v53
    %v56 = vmul.f32 %v46, %v53
    %v57 = vpack.c.bf16 %v56, %v55
    %v59 = vunpack.c.l.b16 %v57
    %v60 = vunpack.c.h.b16 %v57
    %v61 = vpack.c.b16 %v59, %v59
    %v62 = vpack.c.b16 %v60, %v60
    %vm65 = vcmask 257024
    %66 = vst.msk [vmem:[#allocation2] sm:$0xf] %vm65, %v61
    %67 = vst.msk [vmem:[#allocation2 + $0x4] sm:$0xf] %vm65, %v62
    %68 = vst.msk [vmem:[#allocation3] sm:$0xff] %vm31, 0.0
    %69 = vst.msk [vmem:[#allocation3 + $0x8] sm:$0xff] %vm31, 0.0
  $region25: #{paligemma_forward.32} parent=0 // pred_fallthru
    _
  %v70 = vld [vmem:[#allocation2] sm:$0xf]
  %v71 = vld [vmem:[#allocation2 + $0x4] sm:$0xf]
  %v72 = vld [vmem:[%s2] sm:$0xf]
  %v73 = vld [vmem:[%s2 + $0x4] sm:$0xf]
  %v74 = vld [vmem:[%s2 + $0x8] sm:$0xf]
  %v75 = vld [vmem:[%s2 + $0xc] sm:$0xf]
  %v78 = vunpack.c.l.b16 %v70
  %v79 = vunpack.c.l.b16 %v71
  %v80 = vpack.c.b16 %v79, %v78
  %v85 = vunpack.c.l.b16 %v72
  %v86 = vunpack.c.l.b16 %v73
  %v87 = vunpack.c.l.b16 %v74
  %v88 = vunpack.c.l.b16 %v75
  %v89 = vpack.c.b16 %v86, %v85
  %v90 = vpack.c.b16 %v88, %v87
  %vm93 = vcmask 261120
  %v95 = vsel %vm93, %v80, 0
  %97 = vmatprep.subr.bf16.mxu0 0
  %98 = vmatpush1.bf16.msra.mxu0 0
  %99 = vmatprep.subr.bf16.mxu0 0
  %100 = vmatpush1.bf16.msra.mxu0 0
  %101 = vmatprep.subr.bf16.mxu0 0
  %102 = vmatpush1.bf16.msra.mxu0 0
  %103 = vmatprep.subr.bf16.mxu0 0
  %104 = vmatpush1.bf16.msra.mxu0 0
  %105 = vmatprep.subr.bf16.mxu0 0
  %106 = vmatpush1.bf16.msra.mxu0 0
  %107 = vmatprep.subr.bf16.mxu0 0
  %108 = vmatpush1.bf16.msra.mxu0 0
  %109 = vmatprep.subr.bf16.mxu0 0
  %110 = vmatpush1.bf16.msra.mxu0 %v90
  %111 = vmatprep.subr.bf16.mxu0 0
  %112 = vmatpush1.bf16.msra.mxu0 %v89
  %113 = vmatprep.subr.bf16.mxu0 0
  %114 = vmatpush2.bf16.msra.mxu0 0
  %115 = vmatprep.subr.bf16.mxu0 0
  %116 = vmatpush2.bf16.msra.mxu0 0
  %117 = vmatprep.subr.bf16.mxu0 0
  %118 = vmatpush2.bf16.msra.mxu0 0
  %119 = vmatprep.subr.bf16.mxu0 0
  %120 = vmatpush2.bf16.msra.mxu0 0
  %121 = vmatprep.subr.bf16.mxu0 0
  %122 = vmatpush2.bf16.msra.mxu0 0
  %123 = vmatprep.subr.bf16.mxu0 0
  %124 = vmatpush2.bf16.msra.mxu0 0
  %125 = vmatprep.subr.bf16.mxu0 0
  %126 = vmatpush2.bf16.msra.mxu0 0
  %127 = vmatprep.subr.bf16.mxu0 0
  %128 = vmatpush2.bf16.msra.mxu0 0
  %129 = vmatprep.mubr.bf16.mxu0 0
  %130 = vmatmul.mubr.bf16.gmra.mxu0 %v95
  %v131 = vpop.f32.mrf.mxu0
  %v132 = vadd.f32 0.0, %v131
  %v133 = vpop.f32.mrf.mxu0
  %v134 = vpop.f32.mrf.mxu0
  %v135 = vadd.f32 0.0, %v134
  %v136 = vpop.f32.mrf.mxu0
  %137 = vdwg.mxu0
  %v138 = vld [vmem:[%s3] sm:$0xf]
  %v139 = vld [vmem:[%s3 + $0x4] sm:$0xf]
  %v140 = vld [vmem:[%s3 + $0x8] sm:$0xf]
  %v141 = vld [vmem:[%s3 + $0xc] sm:$0xf]
  %v146 = vunpack.c.l.b16 %v138
  %v147 = vunpack.c.l.b16 %v139
  %v148 = vunpack.c.l.b16 %v140
  %v149 = vunpack.c.l.b16 %v141
  %v150 = vpack.c.b16 %v147, %v146
  %v151 = vpack.c.b16 %v149, %v148
  %154 = vmatprep.subr.bf16.mxu0 0
  %155 = vmatpush1.bf16.msra.mxu0 0
  %156 = vmatprep.subr.bf16.mxu0 0
  %157 = vmatpush1.bf16.msra.mxu0 0
  %158 = vmatprep.subr.bf16.mxu0 0
  %159 = vmatpush1.bf16.msra.mxu0 0
  %160 = vmatprep.subr.bf16.mxu0 0
  %161 = vmatpush1.bf16.msra.mxu0 0
  %162 = vmatprep.subr.bf16.mxu0 0
  %163 = vmatpush1.bf16.msra.mxu0 0
  %164 = vmatprep.subr.bf16.mxu0 0
  %165 = vmatpush1.bf16.msra.mxu0 0
  %166 = vmatprep.subr.bf16.mxu0 0
  %167 = vmatpush1.bf16.msra.mxu0 %v151
  %168 = vmatprep.subr.bf16.mxu0 0
  %169 = vmatpush1.bf16.msra.mxu0 %v150
  %170 = vmatprep.subr.bf16.mxu0 0
  %171 = vmatpush2.bf16.msra.mxu0 0
  %172 = vmatprep.subr.bf16.mxu0 0
  %173 = vmatpush2.bf16.msra.mxu0 0
  %174 = vmatprep.subr.bf16.mxu0 0
  %175 = vmatpush2.bf16.msra.mxu0 0
  %176 = vmatprep.subr.bf16.mxu0 0
  %177 = vmatpush2.bf16.msra.mxu0 0
  %178 = vmatprep.subr.bf16.mxu0 0
  %179 = vmatpush2.bf16.msra.mxu0 0
  %180 = vmatprep.subr.bf16.mxu0 0
  %181 = vmatpush2.bf16.msra.mxu0 0
  %182 = vmatprep.subr.bf16.mxu0 0
  %183 = vmatpush2.bf16.msra.mxu0 0
  %184 = vmatprep.subr.bf16.mxu0 0
  %185 = vmatpush2.bf16.msra.mxu0 0
  %186 = vmatprep.mubr.bf16.mxu0 0
  %187 = vmatmul.mubr.bf16.gmra.mxu0 %v95
  %v188 = vpop.f32.mrf.mxu0
  %v189 = vadd.f32 0.0, %v188
  %v190 = vpop.f32.mrf.mxu0
  %v191 = vpop.f32.mrf.mxu0
  %v192 = vadd.f32 0.0, %v191
  %v193 = vpop.f32.mrf.mxu0
  %194 = vdwg.mxu0
  %v195 = vmul.f32 %v132, 0.5
  %v196 = vmul.f32 %v135, 0.5
  %v197 = vmul.f32 %v132, 0.044715
  %v198 = vmul.f32 %v135, 0.044715
  %v199 = vmul.f32 %v197, %v132
  %v200 = vmul.f32 %v198, %v135
  %v201 = vmul.f32 %v199, %v132
  %v202 = vmul.f32 %v200, %v135
  %v203 = vadd.f32 %v132, %v201
  %v204 = vadd.f32 %v135, %v202
  %v205 = vmul.f32 %v203, 0.7978846
  %v206 = vmul.f32 %v204, 0.7978846
  %v207 = vtanh.pop %v205
  %v208 = vtanh.pop %v206
  %v209 = vadd.f32 %v207, 1.0
  %v210 = vadd.f32 %v208, 1.0
  %v211 = vmul.f32 %v195, %v209
  %v212 = vmul.f32 %v196, %v210
  %v213 = vmul.f32 %v211, %v189
  %v214 = vmul.f32 %v212, %v192
  %v215 = vpack.c.bf16 %v214, %v213
  %v216 = vld [vmem:[#allocation3] sm:$0xff]
  %v217 = vld [vmem:[#allocation3 + $0x8] sm:$0xff]
  %v218 = vld [vmem:[%s4] sm:$0xf]
  %v219 = vld [vmem:[%s4 + $0x4] sm:$0xf]
  %v220 = vld [vmem:[%s4 + $0x8] sm:$0xf]
  %v221 = vld [vmem:[%s4 + $0xc] sm:$0xf]
  %v222 = vld [vmem:[%s4 + $0x10] sm:$0xf]
  %v223 = vld [vmem:[%s4 + $0x14] sm:$0xf]
  %v224 = vld [vmem:[%s4 + $0x18] sm:$0xf]
  %v225 = vld [vmem:[%s4 + $0x1c] sm:$0xf]
  %v234 = vunpack.c.l.b16 %v218
  %v235 = vunpack.c.l.b16 %v219
  %v236 = vunpack.c.l.b16 %v220
  %v237 = vunpack.c.l.b16 %v221
  %v238 = vunpack.c.l.b16 %v222
  %v239 = vunpack.c.l.b16 %v223
  %v240 = vunpack.c.l.b16 %v224
  %v241 = vunpack.c.l.b16 %v225
  %v242 = vpack.c.b16 %v235, %v234
  %v243 = vpack.c.b16 %v237, %v236
  %v244 = vpack.c.b16 %v239, %v238
  %v245 = vpack.c.b16 %v241, %v240
  %vm250 = vcmask 523264
  %v252 = vsel %vm250, %v215, 0
  %254 = vmatprep.subr.bf16.mxu0 0
  %255 = vmatpush1.bf16.msra.mxu0 0
  %256 = vmatprep.subr.bf16.mxu0 0
  %257 = vmatpush1.bf16.msra.mxu0 0
  %258 = vmatprep.subr.bf16.mxu0 0
  %259 = vmatpush1.bf16.msra.mxu0 0
  %260 = vmatprep.subr.bf16.mxu0 0
  %261 = vmatpush1.bf16.msra.mxu0 0
  %262 = vmatprep.subr.bf16.mxu0 0
  %263 = vmatpush1.bf16.msra.mxu0 %v245
  %264 = vmatprep.subr.bf16.mxu0 0
  %265 = vmatpush1.bf16.msra.mxu0 %v244
  %266 = vmatprep.subr.bf16.mxu0 0
  %267 = vmatpush1.bf16.msra.mxu0 %v243
  %268 = vmatprep.subr.bf16.mxu0 0
  %269 = vmatpush1.bf16.msra.mxu0 %v242
  %270 = vmatprep.subr.bf16.mxu0 0
  %271 = vmatpush2.bf16.msra.mxu0 0
  %272 = vmatprep.subr.bf16.mxu0 0
  %273 = vmatpush2.bf16.msra.mxu0 0
  %274 = vmatprep.subr.bf16.mxu0 0
  %275 = vmatpush2.bf16.msra.mxu0 0
  %276 = vmatprep.subr.bf16.mxu0 0
  %277 = vmatpush2.bf16.msra.mxu0 0
  %278 = vmatprep.subr.bf16.mxu0 0
  %279 = vmatpush2.bf16.msra.mxu0 0
  %280 = vmatprep.subr.bf16.mxu0 0
  %281 = vmatpush2.bf16.msra.mxu0 0
  %282 = vmatprep.subr.bf16.mxu0 0
  %283 = vmatpush2.bf16.msra.mxu0 0
  %284 = vmatprep.subr.bf16.mxu0 0
  %285 = vmatpush2.bf16.msra.mxu0 0
  %286 = vmatprep.mubr.bf16.mxu0 0
  %287 = vmatmul.mubr.bf16.gmra.mxu0 %v252
  %v288 = vpop.f32.mrf.mxu0
  %v289 = vadd.f32 0.0, %v288
  %v290 = vpop.f32.mrf.mxu0
  %v291 = vpop.f32.mrf.mxu0
  %v292 = vadd.f32 0.0, %v291
  %v293 = vpop.f32.mrf.mxu0
  %294 = vdwg.mxu0
  %v295 = vadd.f32 %v216, %v289
  %v296 = vadd.f32 %v217, %v292
  %297 = vst.msk [vmem:[#allocation3] sm:$0xff] %vm93, %v295
  %298 = vst.msk [vmem:[#allocation3 + $0x8] sm:$0xff] %vm93, %v296
  // Predicated region
  $region26: #{paligemma_forward.32} parent=0 // pred_check
    %p299 = pneg %p21
  $region27: #{paligemma_forward.32} parent=0 // pred_check_branch
    %301 = sbr.rel (%p299) target = $region29
  $region28: #{paligemma_forward.32} parent=0 // pred_region
    %v302 = vld [vmem:[#allocation3] sm:$0xff]
    %v303 = vld [vmem:[#allocation3 + $0x8] sm:$0xff]
    %v304 = vld [vmem:[%s0] sm:$0xf]
    %v305 = vld [vmem:[%s0 + $0x4] sm:$0xf]
    %v306 = vunpack.c.l.bf16 %v304
    %v307 = vunpack.c.l.bf16 %v305
    %v308 = vadd.f32 %v302, %v306
    %v309 = vadd.f32 %v303, %v307
    %v310 = vpack.c.bf16 %v309, %v308
    %v312 = vunpack.c.l.b16 %v310
    %v313 = vunpack.c.h.b16 %v310
    %v314 = vpack.c.b16 %v312, %v312
    %v315 = vpack.c.b16 %v313, %v313
    %vm318 = vcmask 257024
    %319 = vst.msk [vmem:[%s5] sm:$0xf] %vm318, %v314
    %320 = vst.msk [vmem:[%s5 + $0x4] sm:$0xf] %vm318, %v315
  $region29: #{paligemma_forward.32} parent=0 // pred_fallthru
    _
  // Predicated region
  $region30: #{paligemma_forward.32} parent=0 // pred_check
    _
  $region31: #{paligemma_forward.32} parent=0 // pred_check_branch
    %322 = sbr.rel (0) target = $region33
  $region32: #{paligemma_forward.32} parent=0 // pred_region
    _
  $region33: #{paligemma_forward.32} parent=0 // pred_fallthru
    _
  // Predicated region
  $region34: #{paligemma_forward.32} parent=0 // pred_check
    _
  $region35: #{paligemma_forward.32} parent=0 // pred_check_branch
    %324 = sbr.rel (0) target = $region37
  $region36: #{paligemma_forward.32} parent=0 // pred_region
    _
  $region37: #{paligemma_forward.32} parent=0 // pred_fallthru
    _

</llo_original>
